<compile_context>
chip_gen: v7x
topology: tpu7x:2x2x1
jax: 0.10.0
libtpu: 0.0.40
codegen_flags: <defaults>
</compile_context>

<pallas_src>
import functools

import jax
import jax.numpy as jnp
from jax import lax
from jax.experimental import pallas as pl
from jax.experimental.pallas import tpu as pltpu


# ---------------------------------------------------------------------------
# Fused per-repeat kernel:
#   1x1 conv (+BN bias, leaky) -> padded-mid VMEM scratch -> 3x3 conv as 9
#   shifted matmuls (+BN bias, leaky) -> residual add -> store.
# ---------------------------------------------------------------------------
def _resblock_repeat_kernel(x_ref, xa_ref, xb_ref, w1_ref, b1_ref, w2_ref,
                            b2_ref, o_ref, mid_ref, *, use_residual):
    # x_ref  : (1, TH, W, C)   row strip of x (also the residual operand)
    # xa_ref : (1, 1,  W, C)   row just above the strip (clamped at the border)
    # xb_ref : (1, 1,  W, C)   row just below the strip (clamped at the border)
    # w1_ref : (C, Cmid)       1x1 weights, BN1 scale folded in (f32 or bf16)
    # b1_ref : (1, Cmid)       f32
    # w2_ref : (9, Cmid, C)    3x3 taps (HW-major), BN2 scale folded in
    # b2_ref : (1, C)          f32
    # o_ref  : (1, TH, W, C)
    # mid_ref: (TH+2, W+2, Cmid)  VMEM scratch, zero-padded mid window
    s = pl.program_id(1)
    n_s = pl.num_programs(1)
    _, TH, W, C = o_ref.shape
    Cmid = mid_ref.shape[2]
    cdt = w1_ref.dtype          # matmul operand dtype (f32 or bf16)
    mdt = mid_ref.dtype

    w1 = w1_ref[...]            # resident weights
    b1 = b1_ref[...]

    def pw(v):                  # v: (rows, C) in cdt -> LeakyReLU(v @ w1 + b1), f32
        y = jnp.dot(v, w1, preferred_element_type=jnp.float32) + b1
        return jnp.where(y > 0, y, 0.1 * y)

    # ---- 1x1 conv + BN bias + leaky for this strip, written into the padded
    #      (TH+2, W+2, Cmid) window used by the 3x3 conv.  mid never hits HBM.
    x_f32 = x_ref[...].reshape(TH * W, C)
    mid_ref[1:TH + 1, 1:W + 1, :] = (
        pw(x_f32.astype(cdt)).reshape(TH, W, Cmid).astype(mdt))

    # Zero padding along W (columns 0 and W+1 are never written otherwise).
    zcol = jnp.zeros((TH + 2, 1, Cmid), mdt)
    mid_ref[:, 0:1, :] = zcol
    mid_ref[:, W + 1:W + 2, :] = zcol

    # Halo rows: the 3x3 zero padding applies to mid, so at the image border the
    # halo row is zero; inside the image it is the 1x1 conv of the neighbour row.
    @pl.when(s == 0)
    def _():
        mid_ref[0:1, :, :] = jnp.zeros((1, W + 2, Cmid), mdt)

    @pl.when(s > 0)
    def _():
        xa = xa_ref[...].reshape(W, C).astype(cdt)
        mid_ref[0:1, 1:W + 1, :] = pw(xa).reshape(1, W, Cmid).astype(mdt)

    @pl.when(s == n_s - 1)
    def _():
        mid_ref[TH + 1:TH + 2, :, :] = jnp.zeros((1, W + 2, Cmid), mdt)

    @pl.when(s < n_s - 1)
    def _():
        xb = xb_ref[...].reshape(W, C).astype(cdt)
        mid_ref[TH + 1:TH + 2, 1:W + 1, :] = pw(xb).reshape(1, W, Cmid).astype(mdt)

    # ---- 3x3 conv (pad=1) as 9 shifted matmuls, f32 accumulation.
    # (For very small Cmid an im2col fat-K restructuring would feed the MXU
    #  better; kept as 9 taps for robustness.)
    acc = jnp.zeros((TH * W, C), jnp.float32)
    for dy in range(3):
        for dx in range(3):
            patch = mid_ref[dy:dy + TH, dx:dx + W, :].reshape(TH * W, Cmid)
            acc = acc + jnp.dot(patch, w2_ref[dy * 3 + dx],
                                preferred_element_type=jnp.float32)

    y = acc + b2_ref[...]
    y = jnp.where(y > 0, y, 0.1 * y)
    if use_residual:            # compile-time gate: no zero tensor materialized
        y = y + x_f32
    o_ref[...] = y.reshape(1, TH, W, C).astype(o_ref.dtype)


def _pick_strip_rows(H, W, C, Cmid, comp_itemsize, budget_bytes, cap=None):
    """Largest divisor TH of H whose per-step VMEM footprint fits the budget."""
    cap = H if cap is None else max(1, min(cap, H))
    best = 1
    for th in range(1, cap + 1):
        if H % th:
            continue
        est = (
            2 * 2 * th * W * C * 4                          # x strip + out strip (double-buffered, f32)
            + 2 * 2 * 2 * W * C * 4                         # halo-row blocks (above+below)
            + (th + 2) * (W + 2) * Cmid * comp_itemsize     # padded-mid scratch
            + 2 * (C * Cmid + 9 * Cmid * C) * comp_itemsize  # weights
            + 2 * 2 * (Cmid + C) * 4                        # biases
        )
        if est <= budget_bytes:
            best = th
    return best


def _fused_repeat(x, w1, b1, w2, b2, *, use_residual, max_strip_rows,
                  vmem_budget_bytes):
    N, H, W, C = x.shape
    Cmid = w1.shape[1]
    cdt = w1.dtype
    TH = _pick_strip_rows(H, W, C, Cmid, jnp.dtype(cdt).itemsize,
                          vmem_budget_bytes, cap=max_strip_rows)
    S = H // TH

    kernel = functools.partial(_resblock_repeat_kernel,
                               use_residual=use_residual)

    return pl.pallas_call(
        kernel,
        out_shape=jax.ShapeDtypeStruct((N, H, W, C), x.dtype),
        grid=(N, S),
        in_specs=[
            # x strip (doubles as the residual operand inside the kernel)
            pl.BlockSpec((1, TH, W, C), lambda n, s: (n, s, 0, 0)),
            # 1-row halos above / below (block size 1 => block index == row index);
            # clamped at the image border, where the kernel zeroes the mid halo.
            pl.BlockSpec((1, 1, W, C),
                         lambda n, s: (n, jnp.maximum(s * TH - 1, 0), 0, 0)),
            pl.BlockSpec((1, 1, W, C),
                         lambda n, s: (n, jnp.minimum(s * TH + TH, H - 1), 0, 0)),
            # weights / biases: constant index_map => stay resident, no re-DMA
            pl.BlockSpec((C, Cmid), lambda n, s: (0, 0)),
            pl.BlockSpec((1, Cmid), lambda n, s: (0, 0)),
            pl.BlockSpec((9, Cmid, C), lambda n, s: (0, 0, 0)),
            pl.BlockSpec((1, C), lambda n, s: (0, 0)),
        ],
        # NOTE: for very small C a lane-dense repack of (W, C) into the lane axis
        # of the stored output would avoid masked partial stores; kept NHWC here.
        out_specs=pl.BlockSpec((1, TH, W, C), lambda n, s: (n, s, 0, 0)),
        scratch_shapes=[pltpu.VMEM((TH + 2, W + 2, Cmid), cdt)],
        compiler_params=pltpu.CompilerParams(
            dimension_semantics=("parallel", "parallel"),
            vmem_limit_bytes=32 * 1024 * 1024),
    )(x, x, x, w1, b1, w2, b2)


# ---------------------------------------------------------------------------
# ResBlock forward (wrapper).  Input is PyTorch-style NCHW.
# ---------------------------------------------------------------------------
def res_block_forward(x_nchw, params, *, use_residual=True, max_strip_rows=None,
                      vmem_budget_bytes=12 * 1024 * 1024):
    # layout glue: NCHW -> NHWC (channels on the lane axis); kernels run NHWC.
    x = jnp.transpose(x_nchw, (0, 2, 3, 1)).astype(jnp.float32)
    for (w1, b1, w2, b2) in params:
        x = _fused_repeat(x, w1, b1, w2, b2, use_residual=use_residual,
                          max_strip_rows=max_strip_rows,
                          vmem_budget_bytes=vmem_budget_bytes)
    return jnp.transpose(x, (0, 3, 1, 2))  # back to NCHW


# ---------------------------------------------------------------------------
# Deterministic parameters (BN as scale/bias, eps=1e-5) + BN-folding helper.
# ---------------------------------------------------------------------------
def make_params(key, channels, num_repeats):
    Cmid = channels // 2
    eps = 1e-5
    raw = []
    for r in range(num_repeats):
        ks = jax.random.split(jax.random.fold_in(key, r), 10)
        w1 = 0.1 * jax.random.normal(ks[0], (channels, Cmid), jnp.float32)
        g1 = 1.0 + 0.1 * jax.random.normal(ks[1], (1, Cmid), jnp.float32)
        be1 = 0.1 * jax.random.normal(ks[2], (1, Cmid), jnp.float32)
        mu1 = 0.1 * jax.random.normal(ks[3], (1, Cmid), jnp.float32)
        v1 = jnp.abs(jax.random.normal(ks[4], (1, Cmid), jnp.float32)) + 0.5
        s1 = g1 / jnp.sqrt(v1 + eps)
        b1 = be1 - mu1 * s1
        w2 = 0.1 * jax.random.normal(ks[5], (3, 3, Cmid, channels), jnp.float32)
        g2 = 1.0 + 0.1 * jax.random.normal(ks[6], (1, channels), jnp.float32)
        be2 = 0.1 * jax.random.normal(ks[7], (1, channels), jnp.float32)
        mu2 = 0.1 * jax.random.normal(ks[8], (1, channels), jnp.float32)
        v2 = jnp.abs(jax.random.normal(ks[9], (1, channels), jnp.float32)) + 0.5
        s2 = g2 / jnp.sqrt(v2 + eps)
        b2 = be2 - mu2 * s2
        raw.append((w1, s1, b1, w2, s2, b2))
    return raw


def fold_params(raw_params, compute_dtype=jnp.float32):
    """Fold the BN scale into the conv weights; cast weights to the matmul dtype."""
    folded = []
    for (w1, s1, b1, w2, s2, b2) in raw_params:
        Cmid, C = w2.shape[2], w2.shape[3]
        w1f = (w1 * s1).astype(compute_dtype)                      # (C, Cmid)
        w2f = (w2 * s2.reshape(1, 1, 1, C)).astype(compute_dtype)  # (3,3,Cmid,C)
        folded.append((w1f, b1, w2f.reshape(9, Cmid, C), b2))
    return folded


# ---------------------------------------------------------------------------
# Pure-JAX reference (lax.conv, unfolded BN scale/bias) for correctness check.
# ---------------------------------------------------------------------------
def ref_forward(x_nchw, raw_params, use_residual=True):
    x = jnp.transpose(x_nchw, (0, 2, 3, 1)).astype(jnp.float32)
    for (w1, s1, b1, w2, s2, b2) in raw_params:
        y = jnp.einsum("nhwc,co->nhwo", x, w1) * s1[0] + b1[0]
        mid = jnp.where(y > 0, y, 0.1 * y)
        z = lax.conv_general_dilated(mid, w2, (1, 1), ((1, 1), (1, 1)),
                                     dimension_numbers=("NHWC", "HWIO", "NHWC"))
        z = z * s2[0] + b2[0]
        z = jnp.where(z > 0, z, 0.1 * z)
        x = x + z if use_residual else z
    return jnp.transpose(x, (0, 3, 1, 2))


if __name__ == "__main__":
    key = jax.random.PRNGKey(0)
    N, C, H, W = 2, 16, 16, 16          # small shapes consistent with ResBlock
    num_repeats = 2
    x = jax.random.normal(jax.random.fold_in(key, 123), (N, C, H, W),
                          jnp.float32)

    raw = make_params(key, C, num_repeats)
    ref = ref_forward(x, raw, use_residual=True)

    fwd = jax.jit(res_block_forward,
                  static_argnames=("use_residual", "max_strip_rows",
                                   "vmem_budget_bytes"))

    # f32 matmul path, single strip per image
    out = jax.block_until_ready(fwd(x, fold_params(raw, jnp.float32),
                                    use_residual=True))
    assert out.shape == (N, C, H, W)
    assert jnp.allclose(out, ref, atol=1e-4, rtol=1e-4), (
        float(jnp.max(jnp.abs(out - ref))))

    # f32 path with forced multi-strip tiling (exercises the halo stitching)
    out_s = jax.block_until_ready(fwd(x, fold_params(raw, jnp.float32),
                                      use_residual=True, max_strip_rows=4))
    assert jnp.allclose(out_s, ref, atol=1e-4, rtol=1e-4), (
        float(jnp.max(jnp.abs(out_s - ref))))

    # bf16 matmul path (f32 accumulation), looser tolerance
    out_bf = jax.block_until_ready(fwd(x, fold_params(raw, jnp.bfloat16),
                                       use_residual=True, max_strip_rows=8))
    assert jnp.allclose(out_bf, ref, atol=1e-1, rtol=1e-1), (
        float(jnp.max(jnp.abs(out_bf - ref))))

    # no-residual path (compile-time gate, no zero tensor materialized)
    ref_nr = ref_forward(x, raw, use_residual=False)
    out_nr = jax.block_until_ready(fwd(x, fold_params(raw, jnp.float32),
                                       use_residual=False))
    assert jnp.allclose(out_nr, ref_nr, atol=1e-4, rtol=1e-4), (
        float(jnp.max(jnp.abs(out_nr - ref_nr))))

    print("KERNEL_OK")
</pallas_src>

<mosaic_0001>
module attributes {stable_mosaic.version = 11 : i64} {
  func.func @_resblock_repeat_kernel(%arg0: i32, %arg1: i32, %arg2: memref<1x16x16x16xf32, #tpu.memory_space<vmem>>, %arg3: memref<1x1x16x16xf32, #tpu.memory_space<vmem>>, %arg4: memref<1x1x16x16xf32, #tpu.memory_space<vmem>>, %arg5: memref<16x8xf32, #tpu.memory_space<vmem>>, %arg6: memref<1x8xf32, #tpu.memory_space<vmem>>, %arg7: memref<9x8x16xf32, #tpu.memory_space<vmem>>, %arg8: memref<1x16xf32, #tpu.memory_space<vmem>>, %arg9: memref<1x16x16x16xf32, #tpu.memory_space<vmem>>, %arg10: memref<18x18x8xf32, #tpu.memory_space<vmem>>) attributes {dimension_semantics = [#tpu.dimension_semantics<parallel>, #tpu.dimension_semantics<parallel>], iteration_bounds = array<i64: 2, 1>, scalar_prefetch = 0 : i64, scratch_operands = 1 : i64, tpu.core_type = #tpu.core_type<tc>, window_params = [{transform_indices = @transform_0, window_bounds = array<i64: 1, 16, 16, 16>}, {transform_indices = @transform_1, window_bounds = array<i64: 1, 1, 16, 16>}, {transform_indices = @transform_2, window_bounds = array<i64: 1, 1, 16, 16>}, {pipeline_mode = #tpu.pipeline_mode<synchronous>, transform_indices = @transform_3, window_bounds = array<i64: 16, 8>}, {pipeline_mode = #tpu.pipeline_mode<synchronous>, transform_indices = @transform_4, window_bounds = array<i64: 1, 8>}, {pipeline_mode = #tpu.pipeline_mode<synchronous>, transform_indices = @transform_5, window_bounds = array<i64: 9, 8, 16>}, {pipeline_mode = #tpu.pipeline_mode<synchronous>, transform_indices = @transform_6, window_bounds = array<i64: 1, 16>}, {transform_indices = @transform_7, window_bounds = array<i64: 1, 16, 16, 16>}]} {
    %c0 = arith.constant 0 : index
    %c0_0 = arith.constant 0 : index
    %0 = vector.load %arg5[%c0, %c0_0] : memref<16x8xf32, #tpu.memory_space<vmem>>, vector<16x8xf32>
    %c0_1 = arith.constant 0 : index
    %c0_2 = arith.constant 0 : index
    %1 = vector.load %arg6[%c0_1, %c0_2] : memref<1x8xf32, #tpu.memory_space<vmem>>, vector<1x8xf32>
    %c0_3 = arith.constant 0 : index
    %c0_4 = arith.constant 0 : index
    %c0_5 = arith.constant 0 : index
    %c0_6 = arith.constant 0 : index
    %2 = vector.load %arg2[%c0_3, %c0_4, %c0_5, %c0_6] : memref<1x16x16x16xf32, #tpu.memory_space<vmem>>, vector<1x16x16x16xf32>
    %3 = vector.shape_cast %2 : vector<1x16x16x16xf32> to vector<256x16xf32>
    %cst = arith.constant dense<0.000000e+00> : vector<256x8xf32>
    %4 = tpu.matmul %3, %0, %cst {dimension_numbers = #tpu.dot_dimension_numbers<[1], [0], [0], [1], [0, 0, 1, 1], [], []>} : vector<256x16xf32>, vector<16x8xf32>, vector<256x8xf32> -> vector<256x8xf32>
    %5 = vector.broadcast %1 : vector<1x8xf32> to vector<256x8xf32>
    %6 = arith.addf %4, %5 : vector<256x8xf32>
    %cst_7 = arith.constant 0.000000e+00 : f32
    %7 = vector.broadcast %cst_7 : f32 to vector<256x8xf32>
    %8 = arith.cmpf ogt, %6, %7 : vector<256x8xf32>
    %cst_8 = arith.constant 1.000000e-01 : f32
    %9 = vector.broadcast %cst_8 : f32 to vector<256x8xf32>
    %10 = arith.mulf %9, %6 : vector<256x8xf32>
    %11 = arith.select %8, %6, %10 : vector<256x8xi1>, vector<256x8xf32>
    %12 = vector.shape_cast %11 : vector<256x8xf32> to vector<16x16x8xf32>
    %c1 = arith.constant 1 : index
    %c1_9 = arith.constant 1 : index
    %c0_10 = arith.constant 0 : index
    %13 = vector.load %arg10[%c1, %c1_9, %c0_10] : memref<18x18x8xf32, #tpu.memory_space<vmem>>, vector<16x16x8xf32>
    tpu.vector_store %arg10[%c1, %c1_9, %c0_10], %12 {strides = array<i32>} : memref<18x18x8xf32, #tpu.memory_space<vmem>>, vector<16x16x8xf32>,
    %cst_11 = arith.constant 0.000000e+00 : f32
    %14 = vector.broadcast %cst_11 : f32 to vector<18x1x8xf32>
    %c0_12 = arith.constant 0 : index
    %c0_13 = arith.constant 0 : index
    %c0_14 = arith.constant 0 : index
    %15 = vector.load %arg10[%c0_12, %c0_13, %c0_14] : memref<18x18x8xf32, #tpu.memory_space<vmem>>, vector<18x1x8xf32>
    tpu.vector_store %arg10[%c0_12, %c0_13, %c0_14], %14 {strides = array<i32>} : memref<18x18x8xf32, #tpu.memory_space<vmem>>, vector<18x1x8xf32>,
    %c0_15 = arith.constant 0 : index
    %c17 = arith.constant 17 : index
    %c0_16 = arith.constant 0 : index
    %16 = vector.load %arg10[%c0_15, %c17, %c0_16] : memref<18x18x8xf32, #tpu.memory_space<vmem>>, vector<18x1x8xf32>
    tpu.vector_store %arg10[%c0_15, %c17, %c0_16], %14 {strides = array<i32>} : memref<18x18x8xf32, #tpu.memory_space<vmem>>, vector<18x1x8xf32>,
    %c0_i32 = arith.constant 0 : i32
    %17 = arith.cmpi eq, %arg1, %c0_i32 : i32
    %18 = arith.extui %17 : i1 to i32
    %c0_i32_17 = arith.constant 0 : i32
    %19 = arith.cmpi ne, %18, %c0_i32_17 : i32
    scf.if %19 {
      %cst_89 = arith.constant 0.000000e+00 : f32
      %95 = vector.broadcast %cst_89 : f32 to vector<1x18x8xf32>
      %c0_90 = arith.constant 0 : index
      %c0_91 = arith.constant 0 : index
      %c0_92 = arith.constant 0 : index
      %96 = vector.load %arg10[%c0_90, %c0_91, %c0_92] : memref<18x18x8xf32, #tpu.memory_space<vmem>>, vector<1x18x8xf32>
      tpu.vector_store %arg10[%c0_90, %c0_91, %c0_92], %95 {strides = array<i32>} : memref<18x18x8xf32, #tpu.memory_space<vmem>>, vector<1x18x8xf32>,
    } else {
    }
    %c0_i32_18 = arith.constant 0 : i32
    %20 = arith.cmpi sgt, %arg1, %c0_i32_18 : i32
    %21 = arith.extui %20 : i1 to i32
    %c0_i32_19 = arith.constant 0 : i32
    %22 = arith.cmpi ne, %21, %c0_i32_19 : i32
    scf.if %22 {
      %c0_89 = arith.constant 0 : index
      %c0_90 = arith.constant 0 : index
      %c0_91 = arith.constant 0 : index
      %c0_92 = arith.constant 0 : index
      %95 = vector.load %arg3[%c0_89, %c0_90, %c0_91, %c0_92] : memref<1x1x16x16xf32, #tpu.memory_space<vmem>>, vector<1x1x16x16xf32>
      %96 = vector.shape_cast %95 : vector<1x1x16x16xf32> to vector<16x16xf32>
      %cst_93 = arith.constant dense<0.000000e+00> : vector<16x8xf32>
      %97 = tpu.matmul %96, %0, %cst_93 {dimension_numbers = #tpu.dot_dimension_numbers<[1], [0], [0], [1], [0, 0, 1, 1], [], []>} : vector<16x16xf32>, vector<16x8xf32>, vector<16x8xf32> -> vector<16x8xf32>
      %98 = vector.broadcast %1 : vector<1x8xf32> to vector<16x8xf32>
      %99 = arith.addf %97, %98 : vector<16x8xf32>
      %cst_94 = arith.constant 0.000000e+00 : f32
      %100 = vector.broadcast %cst_94 : f32 to vector<16x8xf32>
      %101 = arith.cmpf ogt, %99, %100 : vector<16x8xf32>
      %cst_95 = arith.constant 1.000000e-01 : f32
      %102 = vector.broadcast %cst_95 : f32 to vector<16x8xf32>
      %103 = arith.mulf %102, %99 : vector<16x8xf32>
      %104 = arith.select %101, %99, %103 : vector<16x8xi1>, vector<16x8xf32>
      %105 = vector.shape_cast %104 : vector<16x8xf32> to vector<1x16x8xf32>
      %c0_96 = arith.constant 0 : index
      %c1_97 = arith.constant 1 : index
      %c0_98 = arith.constant 0 : index
      %106 = vector.load %arg10[%c0_96, %c1_97, %c0_98] : memref<18x18x8xf32, #tpu.memory_space<vmem>>, vector<1x16x8xf32>
      tpu.vector_store %arg10[%c0_96, %c1_97, %c0_98], %105 {strides = array<i32>} : memref<18x18x8xf32, #tpu.memory_space<vmem>>, vector<1x16x8xf32>,
    } else {
    }
    %c0_i32_20 = arith.constant 0 : i32
    %23 = arith.cmpi eq, %arg1, %c0_i32_20 : i32
    %24 = arith.extui %23 : i1 to i32
    %c0_i32_21 = arith.constant 0 : i32
    %25 = arith.cmpi ne, %24, %c0_i32_21 : i32
    scf.if %25 {
      %cst_89 = arith.constant 0.000000e+00 : f32
      %95 = vector.broadcast %cst_89 : f32 to vector<1x18x8xf32>
      %c17_90 = arith.constant 17 : index
      %c0_91 = arith.constant 0 : index
      %c0_92 = arith.constant 0 : index
      %96 = vector.load %arg10[%c17_90, %c0_91, %c0_92] : memref<18x18x8xf32, #tpu.memory_space<vmem>>, vector<1x18x8xf32>
      tpu.vector_store %arg10[%c17_90, %c0_91, %c0_92], %95 {strides = array<i32>} : memref<18x18x8xf32, #tpu.memory_space<vmem>>, vector<1x18x8xf32>,
    } else {
    }
    %c0_i32_22 = arith.constant 0 : i32
    %26 = arith.cmpi slt, %arg1, %c0_i32_22 : i32
    %27 = arith.extui %26 : i1 to i32
    %c0_i32_23 = arith.constant 0 : i32
    %28 = arith.cmpi ne, %27, %c0_i32_23 : i32
    scf.if %28 {
      %c0_89 = arith.constant 0 : index
      %c0_90 = arith.constant 0 : index
      %c0_91 = arith.constant 0 : index
      %c0_92 = arith.constant 0 : index
      %95 = vector.load %arg4[%c0_89, %c0_90, %c0_91, %c0_92] : memref<1x1x16x16xf32, #tpu.memory_space<vmem>>, vector<1x1x16x16xf32>
      %96 = vector.shape_cast %95 : vector<1x1x16x16xf32> to vector<16x16xf32>
      %cst_93 = arith.constant dense<0.000000e+00> : vector<16x8xf32>
      %97 = tpu.matmul %96, %0, %cst_93 {dimension_numbers = #tpu.dot_dimension_numbers<[1], [0], [0], [1], [0, 0, 1, 1], [], []>} : vector<16x16xf32>, vector<16x8xf32>, vector<16x8xf32> -> vector<16x8xf32>
      %98 = vector.broadcast %1 : vector<1x8xf32> to vector<16x8xf32>
      %99 = arith.addf %97, %98 : vector<16x8xf32>
      %cst_94 = arith.constant 0.000000e+00 : f32
      %100 = vector.broadcast %cst_94 : f32 to vector<16x8xf32>
      %101 = arith.cmpf ogt, %99, %100 : vector<16x8xf32>
      %cst_95 = arith.constant 1.000000e-01 : f32
      %102 = vector.broadcast %cst_95 : f32 to vector<16x8xf32>
      %103 = arith.mulf %102, %99 : vector<16x8xf32>
      %104 = arith.select %101, %99, %103 : vector<16x8xi1>, vector<16x8xf32>
      %105 = vector.shape_cast %104 : vector<16x8xf32> to vector<1x16x8xf32>
      %c17_96 = arith.constant 17 : index
      %c1_97 = arith.constant 1 : index
      %c0_98 = arith.constant 0 : index
      %106 = vector.load %arg10[%c17_96, %c1_97, %c0_98] : memref<18x18x8xf32, #tpu.memory_space<vmem>>, vector<1x16x8xf32>
      tpu.vector_store %arg10[%c17_96, %c1_97, %c0_98], %105 {strides = array<i32>} : memref<18x18x8xf32, #tpu.memory_space<vmem>>, vector<1x16x8xf32>,
    } else {
    }
    %cst_24 = arith.constant 0.000000e+00 : f32
    %29 = vector.broadcast %cst_24 : f32 to vector<256x16xf32>
    %c0_25 = arith.constant 0 : index
    %c0_26 = arith.constant 0 : index
    %c0_27 = arith.constant 0 : index
    %30 = vector.load %arg10[%c0_25, %c0_26, %c0_27] : memref<18x18x8xf32, #tpu.memory_space<vmem>>, vector<16x16x8xf32>
    %31 = vector.shape_cast %30 : vector<16x16x8xf32> to vector<256x8xf32>
    %c0_28 = arith.constant 0 : index
    %c0_29 = arith.constant 0 : index
    %c0_30 = arith.constant 0 : index
    %32 = vector.load %arg7[%c0_28, %c0_29, %c0_30] : memref<9x8x16xf32, #tpu.memory_space<vmem>>, vector<1x8x16xf32>
    %33 = vector.shape_cast %32 : vector<1x8x16xf32> to vector<8x16xf32>
    %cst_31 = arith.constant dense<0.000000e+00> : vector<256x16xf32>
    %34 = tpu.matmul %31, %33, %cst_31 {dimension_numbers = #tpu.dot_dimension_numbers<[1], [0], [0], [1], [0, 0, 1, 1], [], []>} : vector<256x8xf32>, vector<8x16xf32>, vector<256x16xf32> -> vector<256x16xf32>
    %35 = arith.addf %29, %34 : vector<256x16xf32>
    %c0_32 = arith.constant 0 : index
    %c1_33 = arith.constant 1 : index
    %c0_34 = arith.constant 0 : index
    %36 = vector.load %arg10[%c0_32, %c1_33, %c0_34] : memref<18x18x8xf32, #tpu.memory_space<vmem>>, vector<16x16x8xf32>
    %37 = vector.shape_cast %36 : vector<16x16x8xf32> to vector<256x8xf32>
    %c1_35 = arith.constant 1 : index
    %c0_36 = arith.constant 0 : index
    %c0_37 = arith.constant 0 : index
    %38 = vector.load %arg7[%c1_35, %c0_36, %c0_37] : memref<9x8x16xf32, #tpu.memory_space<vmem>>, vector<1x8x16xf32>
    %39 = vector.shape_cast %38 : vector<1x8x16xf32> to vector<8x16xf32>
    %cst_38 = arith.constant dense<0.000000e+00> : vector<256x16xf32>
    %40 = tpu.matmul %37, %39, %cst_38 {dimension_numbers = #tpu.dot_dimension_numbers<[1], [0], [0], [1], [0, 0, 1, 1], [], []>} : vector<256x8xf32>, vector<8x16xf32>, vector<256x16xf32> -> vector<256x16xf32>
    %41 = arith.addf %35, %40 : vector<256x16xf32>
    %c0_39 = arith.constant 0 : index
    %c2 = arith.constant 2 : index
    %c0_40 = arith.constant 0 : index
    %42 = vector.load %arg10[%c0_39, %c2, %c0_40] : memref<18x18x8xf32, #tpu.memory_space<vmem>>, vector<16x16x8xf32>
    %43 = vector.shape_cast %42 : vector<16x16x8xf32> to vector<256x8xf32>
    %c2_41 = arith.constant 2 : index
    %c0_42 = arith.constant 0 : index
    %c0_43 = arith.constant 0 : index
    %44 = vector.load %arg7[%c2_41, %c0_42, %c0_43] : memref<9x8x16xf32, #tpu.memory_space<vmem>>, vector<1x8x16xf32>
    %45 = vector.shape_cast %44 : vector<1x8x16xf32> to vector<8x16xf32>
    %cst_44 = arith.constant dense<0.000000e+00> : vector<256x16xf32>
    %46 = tpu.matmul %43, %45, %cst_44 {dimension_numbers = #tpu.dot_dimension_numbers<[1], [0], [0], [1], [0, 0, 1, 1], [], []>} : vector<256x8xf32>, vector<8x16xf32>, vector<256x16xf32> -> vector<256x16xf32>
    %47 = arith.addf %41, %46 : vector<256x16xf32>
    %c1_45 = arith.constant 1 : index
    %c0_46 = arith.constant 0 : index
    %c0_47 = arith.constant 0 : index
    %48 = vector.load %arg10[%c1_45, %c0_46, %c0_47] : memref<18x18x8xf32, #tpu.memory_space<vmem>>, vector<16x16x8xf32>
    %49 = vector.shape_cast %48 : vector<16x16x8xf32> to vector<256x8xf32>
    %c3 = arith.constant 3 : index
    %c0_48 = arith.constant 0 : index
    %c0_49 = arith.constant 0 : index
    %50 = vector.load %arg7[%c3, %c0_48, %c0_49] : memref<9x8x16xf32, #tpu.memory_space<vmem>>, vector<1x8x16xf32>
    %51 = vector.shape_cast %50 : vector<1x8x16xf32> to vector<8x16xf32>
    %cst_50 = arith.constant dense<0.000000e+00> : vector<256x16xf32>
    %52 = tpu.matmul %49, %51, %cst_50 {dimension_numbers = #tpu.dot_dimension_numbers<[1], [0], [0], [1], [0, 0, 1, 1], [], []>} : vector<256x8xf32>, vector<8x16xf32>, vector<256x16xf32> -> vector<256x16xf32>
    %53 = arith.addf %47, %52 : vector<256x16xf32>
    %c1_51 = arith.constant 1 : index
    %c1_52 = arith.constant 1 : index
    %c0_53 = arith.constant 0 : index
    %54 = vector.load %arg10[%c1_51, %c1_52, %c0_53] : memref<18x18x8xf32, #tpu.memory_space<vmem>>, vector<16x16x8xf32>
    %55 = vector.shape_cast %54 : vector<16x16x8xf32> to vector<256x8xf32>
    %c4 = arith.constant 4 : index
    %c0_54 = arith.constant 0 : index
    %c0_55 = arith.constant 0 : index
    %56 = vector.load %arg7[%c4, %c0_54, %c0_55] : memref<9x8x16xf32, #tpu.memory_space<vmem>>, vector<1x8x16xf32>
    %57 = vector.shape_cast %56 : vector<1x8x16xf32> to vector<8x16xf32>
    %cst_56 = arith.constant dense<0.000000e+00> : vector<256x16xf32>
    %58 = tpu.matmul %55, %57, %cst_56 {dimension_numbers = #tpu.dot_dimension_numbers<[1], [0], [0], [1], [0, 0, 1, 1], [], []>} : vector<256x8xf32>, vector<8x16xf32>, vector<256x16xf32> -> vector<256x16xf32>
    %59 = arith.addf %53, %58 : vector<256x16xf32>
    %c1_57 = arith.constant 1 : index
    %c2_58 = arith.constant 2 : index
    %c0_59 = arith.constant 0 : index
    %60 = vector.load %arg10[%c1_57, %c2_58, %c0_59] : memref<18x18x8xf32, #tpu.memory_space<vmem>>, vector<16x16x8xf32>
    %61 = vector.shape_cast %60 : vector<16x16x8xf32> to vector<256x8xf32>
    %c5 = arith.constant 5 : index
    %c0_60 = arith.constant 0 : index
    %c0_61 = arith.constant 0 : index
    %62 = vector.load %arg7[%c5, %c0_60, %c0_61] : memref<9x8x16xf32, #tpu.memory_space<vmem>>, vector<1x8x16xf32>
    %63 = vector.shape_cast %62 : vector<1x8x16xf32> to vector<8x16xf32>
    %cst_62 = arith.constant dense<0.000000e+00> : vector<256x16xf32>
    %64 = tpu.matmul %61, %63, %cst_62 {dimension_numbers = #tpu.dot_dimension_numbers<[1], [0], [0], [1], [0, 0, 1, 1], [], []>} : vector<256x8xf32>, vector<8x16xf32>, vector<256x16xf32> -> vector<256x16xf32>
    %65 = arith.addf %59, %64 : vector<256x16xf32>
    %c2_63 = arith.constant 2 : index
    %c0_64 = arith.constant 0 : index
    %c0_65 = arith.constant 0 : index
    %66 = vector.load %arg10[%c2_63, %c0_64, %c0_65] : memref<18x18x8xf32, #tpu.memory_space<vmem>>, vector<16x16x8xf32>
    %67 = vector.shape_cast %66 : vector<16x16x8xf32> to vector<256x8xf32>
    %c6 = arith.constant 6 : index
    %c0_66 = arith.constant 0 : index
    %c0_67 = arith.constant 0 : index
    %68 = vector.load %arg7[%c6, %c0_66, %c0_67] : memref<9x8x16xf32, #tpu.memory_space<vmem>>, vector<1x8x16xf32>
    %69 = vector.shape_cast %68 : vector<1x8x16xf32> to vector<8x16xf32>
    %cst_68 = arith.constant dense<0.000000e+00> : vector<256x16xf32>
    %70 = tpu.matmul %67, %69, %cst_68 {dimension_numbers = #tpu.dot_dimension_numbers<[1], [0], [0], [1], [0, 0, 1, 1], [], []>} : vector<256x8xf32>, vector<8x16xf32>, vector<256x16xf32> -> vector<256x16xf32>
    %71 = arith.addf %65, %70 : vector<256x16xf32>
    %c2_69 = arith.constant 2 : index
    %c1_70 = arith.constant 1 : index
    %c0_71 = arith.constant 0 : index
    %72 = vector.load %arg10[%c2_69, %c1_70, %c0_71] : memref<18x18x8xf32, #tpu.memory_space<vmem>>, vector<16x16x8xf32>
    %73 = vector.shape_cast %72 : vector<16x16x8xf32> to vector<256x8xf32>
    %c7 = arith.constant 7 : index
    %c0_72 = arith.constant 0 : index
    %c0_73 = arith.constant 0 : index
    %74 = vector.load %arg7[%c7, %c0_72, %c0_73] : memref<9x8x16xf32, #tpu.memory_space<vmem>>, vector<1x8x16xf32>
    %75 = vector.shape_cast %74 : vector<1x8x16xf32> to vector<8x16xf32>
    %cst_74 = arith.constant dense<0.000000e+00> : vector<256x16xf32>
    %76 = tpu.matmul %73, %75, %cst_74 {dimension_numbers = #tpu.dot_dimension_numbers<[1], [0], [0], [1], [0, 0, 1, 1], [], []>} : vector<256x8xf32>, vector<8x16xf32>, vector<256x16xf32> -> vector<256x16xf32>
    %77 = arith.addf %71, %76 : vector<256x16xf32>
    %c2_75 = arith.constant 2 : index
    %c2_76 = arith.constant 2 : index
    %c0_77 = arith.constant 0 : index
    %78 = vector.load %arg10[%c2_75, %c2_76, %c0_77] : memref<18x18x8xf32, #tpu.memory_space<vmem>>, vector<16x16x8xf32>
    %79 = vector.shape_cast %78 : vector<16x16x8xf32> to vector<256x8xf32>
    %c8 = arith.constant 8 : index
    %c0_78 = arith.constant 0 : index
    %c0_79 = arith.constant 0 : index
    %80 = vector.load %arg7[%c8, %c0_78, %c0_79] : memref<9x8x16xf32, #tpu.memory_space<vmem>>, vector<1x8x16xf32>
    %81 = vector.shape_cast %80 : vector<1x8x16xf32> to vector<8x16xf32>
    %cst_80 = arith.constant dense<0.000000e+00> : vector<256x16xf32>
    %82 = tpu.matmul %79, %81, %cst_80 {dimension_numbers = #tpu.dot_dimension_numbers<[1], [0], [0], [1], [0, 0, 1, 1], [], []>} : vector<256x8xf32>, vector<8x16xf32>, vector<256x16xf32> -> vector<256x16xf32>
    %83 = arith.addf %77, %82 : vector<256x16xf32>
    %c0_81 = arith.constant 0 : index
    %c0_82 = arith.constant 0 : index
    %84 = vector.load %arg8[%c0_81, %c0_82] : memref<1x16xf32, #tpu.memory_space<vmem>>, vector<1x16xf32>
    %85 = vector.broadcast %84 : vector<1x16xf32> to vector<256x16xf32>
    %86 = arith.addf %83, %85 : vector<256x16xf32>
    %cst_83 = arith.constant 0.000000e+00 : f32
    %87 = vector.broadcast %cst_83 : f32 to vector<256x16xf32>
    %88 = arith.cmpf ogt, %86, %87 : vector<256x16xf32>
    %cst_84 = arith.constant 1.000000e-01 : f32
    %89 = vector.broadcast %cst_84 : f32 to vector<256x16xf32>
    %90 = arith.mulf %89, %86 : vector<256x16xf32>
    %91 = arith.select %88, %86, %90 : vector<256x16xi1>, vector<256x16xf32>
    %92 = arith.addf %91, %3 : vector<256x16xf32>
    %93 = vector.shape_cast %92 : vector<256x16xf32> to vector<1x16x16x16xf32>
    %c0_85 = arith.constant 0 : index
    %c0_86 = arith.constant 0 : index
    %c0_87 = arith.constant 0 : index
    %c0_88 = arith.constant 0 : index
    %94 = vector.load %arg9[%c0_85, %c0_86, %c0_87, %c0_88] : memref<1x16x16x16xf32, #tpu.memory_space<vmem>>, vector<1x16x16x16xf32>
    tpu.vector_store %arg9[%c0_85, %c0_86, %c0_87, %c0_88], %93 {strides = array<i32>} : memref<1x16x16x16xf32, #tpu.memory_space<vmem>>, vector<1x16x16x16xf32>,
    return
  }
  func.func @transform_0(%arg0: i32, %arg1: i32) -> (i32, i32, i32, i32) {
    %c0_i32 = arith.constant 0 : i32
    %c0_i32_0 = arith.constant 0 : i32
    %c0_i32_1 = arith.constant 0 : i32
    return %arg0, %arg1, %c0_i32, %c0_i32_0 : i32, i32, i32, i32
  }
  func.func @transform_1(%arg0: i32, %arg1: i32) -> (i32, i32, i32, i32) {
    %c16_i32 = arith.constant 16 : i32
    %0 = arith.muli %arg1, %c16_i32 : i32
    %c1_i32 = arith.constant 1 : i32
    %1 = arith.subi %0, %c1_i32 : i32
    %c0_i32 = arith.constant 0 : i32
    %2 = arith.maxsi %1, %c0_i32 : i32
    %c0_i32_0 = arith.constant 0 : i32
    %c0_i32_1 = arith.constant 0 : i32
    %c0_i32_2 = arith.constant 0 : i32
    return %arg0, %2, %c0_i32_0, %c0_i32_1 : i32, i32, i32, i32
  }
  func.func @transform_2(%arg0: i32, %arg1: i32) -> (i32, i32, i32, i32) {
    %c16_i32 = arith.constant 16 : i32
    %0 = arith.muli %arg1, %c16_i32 : i32
    %c16_i32_0 = arith.constant 16 : i32
    %1 = arith.addi %0, %c16_i32_0 : i32
    %c15_i32 = arith.constant 15 : i32
    %2 = arith.minsi %1, %c15_i32 : i32
    %c0_i32 = arith.constant 0 : i32
    %c0_i32_1 = arith.constant 0 : i32
    %c0_i32_2 = arith.constant 0 : i32
    return %arg0, %2, %c0_i32, %c0_i32_1 : i32, i32, i32, i32
  }
  func.func @transform_3(%arg0: i32, %arg1: i32) -> (i32, i32) {
    %c0_i32 = arith.constant 0 : i32
    %c0_i32_0 = arith.constant 0 : i32
    %c0_i32_1 = arith.constant 0 : i32
    return %c0_i32, %c0_i32_0 : i32, i32
  }
  func.func @transform_4(%arg0: i32, %arg1: i32) -> (i32, i32) {
    %c0_i32 = arith.constant 0 : i32
    %c0_i32_0 = arith.constant 0 : i32
    %c0_i32_1 = arith.constant 0 : i32
    return %c0_i32, %c0_i32_0 : i32, i32
  }
  func.func @transform_5(%arg0: i32, %arg1: i32) -> (i32, i32, i32) {
    %c0_i32 = arith.constant 0 : i32
    %c0_i32_0 = arith.constant 0 : i32
    %c0_i32_1 = arith.constant 0 : i32
    %c0_i32_2 = arith.constant 0 : i32
    return %c0_i32, %c0_i32_0, %c0_i32_1 : i32, i32, i32
  }
  func.func @transform_6(%arg0: i32, %arg1: i32) -> (i32, i32) {
    %c0_i32 = arith.constant 0 : i32
    %c0_i32_0 = arith.constant 0 : i32
    %c0_i32_1 = arith.constant 0 : i32
    return %c0_i32, %c0_i32_0 : i32, i32
  }
  func.func @transform_7(%arg0: i32, %arg1: i32) -> (i32, i32, i32, i32) {
    %c0_i32 = arith.constant 0 : i32
    %c0_i32_0 = arith.constant 0 : i32
    %c0_i32_1 = arith.constant 0 : i32
    return %arg0, %arg1, %c0_i32, %c0_i32_0 : i32, i32, i32, i32
  }
}

</mosaic_0001>

<llo_original>
// kernel: res_block_forward.2
$region0: #{res_block_forward.2}
  #allocation0 [shape = 'u32[]', space=smem, size = 0x4, offset = 0x4, fixed_abs, tag = 'smem constant byte address 0x4 - core index']
  #allocation1 [shape = 'u32[144,128]{1,0:T(1,128)}', space=vmem, size = 0x12000, scoped, tag = 'internal scratch']
  #allocation2 [shape = 'f32[18,18,8]{2,1,0:T(8,128)}', space=vmem, size = 0x36000, scoped, tag = 'scratch operand']
  %s0 = inlined_call_operand.vmem [shape: f32[2,16,16,16], index: 0, kind: input, shape index: {}, may-alias: {0,1,2}]
  %s1 = inlined_call_operand.vmem [shape: f32[2,16,16,16], index: 1, kind: input, shape index: {}, may-alias: {0,1,2}]
  %s2 = inlined_call_operand.vmem [shape: f32[2,16,16,16], index: 2, kind: input, shape index: {}, may-alias: {0,1,2}]
  %s3 = inlined_call_operand.vmem [shape: f32[16,8], index: 3, kind: input, shape index: {}]
  %s4 = inlined_call_operand.vmem [shape: f32[1,8], index: 4, kind: input, shape index: {}]
  %s5 = inlined_call_operand.vmem [shape: f32[9,8,16], index: 5, kind: input, shape index: {}]
  %s6 = inlined_call_operand.vmem [shape: f32[1,16], index: 6, kind: input, shape index: {}]
  %s7 = inlined_call_operand.vmem [shape: f32[2,16,16,16], index: 7, kind: output, shape index: {}]
  %s8 = sld [smem:[#allocation0]]
  $region77: #{res_block_forward.2} parent=0
    _
  %s10 = ssub.s32 1, %s8
  %s11 = scalar_select 0, %s10, %s8
  loop: start=0, step=1, limit=4
  $region2: #{res_block_forward.2} parent=0 // loop_pre_header
    _
  $region3: #{res_block_forward.2} parent=0 // loop_header
    %s13 = sphi 0, %s17
    %p14 = scmp.ge.s32.totalorder %s13, 4
    %s20 = sphi 0, %s32
    %s21 = sphi 0, %s28
    %s22 = sphi 0, %s20
    %s23 = sphi 0, %s21
    %s24 = sphi 0, %s22
    %s25 = sphi 0, %s23
    %s37 = sphi 0, %s39
    %s40 = sphi 0, %s37
    %s41 = sphi 0, %s40
    %s57 = sphi 0, %s41
    %s73 = sphi 0, %s75
    %s76 = sphi 0, %s73
    %s77 = sphi 0, %s76
    %s93 = sphi 0, %s77
    %s109 = sphi 0, %s111
    %s112 = sphi 0, %s109
    %s113 = sphi 0, %s112
    %s129 = sphi 0, %s113
    %s133 = sphi 0, %s133
    %s135 = sphi 0, %s133
    %s136 = sphi 0, %s135
    %s150 = sphi 0, %s136
    %s154 = sphi 0, %s154
    %s156 = sphi 0, %s154
    %s157 = sphi 0, %s156
    %s171 = sphi 0, %s157
    %s175 = sphi 0, %s175
    %s177 = sphi 0, %s175
    %s178 = sphi 0, %s177
    %s192 = sphi 0, %s178
    %s196 = sphi 0, %s196
    %s198 = sphi 0, %s196
    %s199 = sphi 0, %s198
    %s213 = sphi 0, %s199
    %s221 = sphi 0, %s223
    %s224 = sphi 0, %s221
    %s225 = sphi 0, %s224
    %s241 = sphi 0, %s225
  $region4: #{res_block_forward.2} parent=0 // loop_header_branch
    %16 = sbr.rel (%p14) target = $region8
  $region5: #{res_block_forward.2} parent=0 // loop_body
    %s18 = ssub.s32 %s13, 1
    %s19 = ssub.s32 %s13, 2
    %s26 = sadd.s32 1, %s21
    %p27 = scmp.ge.s32.totalorder %s26, 1
    %s28 = scalar_select %p27, 0, %s26
    %s29 = sadd.s32 1, %s20
    %s30 = scalar_select %p27, %s29, %s20
    %p31 = scmp.ge.s32.totalorder %s30, 2
    %s32 = scalar_select %p31, 0, %s30
    %s33 = ssub.s32 %s20, %s32
    %s34 = ssub.s32 %s21, %s28
    %s35 = sor.u32 %s33, %s34
    %p36 = scmp.eq.s32.totalorder %s35, 0
    %s38 = sadd.s32 %s37, 1
    %s39 = scalar_select %p36, %s37, %s38
    %p42 = pneg %p36
    %p43 = scmp.eq.s32.totalorder %s13, 1
    %p44 = por %p42, %p43
    %p45 = scmp.ne.s32.totalorder %s37, %s40
    %p46 = scmp.eq.s32.totalorder %s13, 0
    %p47 = por %p45, %p46
    %p48 = scmp.ne.s32.totalorder %s37, %s40
    %p49 = scmp.eq.s32.totalorder %s18, 1
    %p50 = por %p48, %p49
    %p51 = scmp.ne.s32.totalorder %s40, %s41
    %p52 = scmp.eq.s32.totalorder %s18, 0
    %p53 = por %p51, %p52
    %p54 = scmp.ne.s32.totalorder %s40, %s41
    %p55 = scmp.eq.s32.totalorder %s19, 1
    %p56 = por %p54, %p55
    %p58 = scmp.ne.s32.totalorder %s41, %s57
    %p59 = scmp.eq.s32.totalorder %s19, 0
    %p60 = por %p58, %p59
    %s61 = smul.u32 %s21, 16
    %s62 = ssub.s32 %s61, 1
    %p63 = scmp.gt.s32.totalorder %s62, 0
    %s64 = scalar_select %p63, %s62, 0
    %s65 = smul.u32 %s28, 16
    %s66 = ssub.s32 %s65, 1
    %p67 = scmp.gt.s32.totalorder %s66, 0
    %s68 = scalar_select %p67, %s66, 0
    %s69 = ssub.s32 %s20, %s32
    %s70 = ssub.s32 %s64, %s68
    %s71 = sor.u32 %s69, %s70
    %p72 = scmp.eq.s32.totalorder %s71, 0
    %s74 = sadd.s32 %s73, 1
    %s75 = scalar_select %p72, %s73, %s74
    %p78 = pneg %p72
    %p79 = scmp.eq.s32.totalorder %s13, 1
    %p80 = por %p78, %p79
    %p81 = scmp.ne.s32.totalorder %s73, %s76
    %p82 = scmp.eq.s32.totalorder %s13, 0
    %p83 = por %p81, %p82
    %p84 = scmp.ne.s32.totalorder %s73, %s76
    %p85 = scmp.eq.s32.totalorder %s18, 1
    %p86 = por %p84, %p85
    %p87 = scmp.ne.s32.totalorder %s76, %s77
    %p88 = scmp.eq.s32.totalorder %s18, 0
    %p89 = por %p87, %p88
    %p90 = scmp.ne.s32.totalorder %s76, %s77
    %p91 = scmp.eq.s32.totalorder %s19, 1
    %p92 = por %p90, %p91
    %p94 = scmp.ne.s32.totalorder %s77, %s93
    %p95 = scmp.eq.s32.totalorder %s19, 0
    %p96 = por %p94, %p95
    %s97 = smul.u32 %s21, 16
    %s98 = sadd.s32 %s97, 16
    %p99 = scmp.lt.s32.totalorder %s98, 15
    %s100 = scalar_select %p99, %s98, 15
    %s101 = smul.u32 %s28, 16
    %s102 = sadd.s32 %s101, 16
    %p103 = scmp.lt.s32.totalorder %s102, 15
    %s104 = scalar_select %p103, %s102, 15
    %s105 = ssub.s32 %s20, %s32
    %s106 = ssub.s32 %s100, %s104
    %s107 = sor.u32 %s105, %s106
    %p108 = scmp.eq.s32.totalorder %s107, 0
    %s110 = sadd.s32 %s109, 1
    %s111 = scalar_select %p108, %s109, %s110
    %p114 = pneg %p108
    %p115 = scmp.eq.s32.totalorder %s13, 1
    %p116 = por %p114, %p115
    %p117 = scmp.ne.s32.totalorder %s109, %s112
    %p118 = scmp.eq.s32.totalorder %s13, 0
    %p119 = por %p117, %p118
    %p120 = scmp.ne.s32.totalorder %s109, %s112
    %p121 = scmp.eq.s32.totalorder %s18, 1
    %p122 = por %p120, %p121
    %p123 = scmp.ne.s32.totalorder %s112, %s113
    %p124 = scmp.eq.s32.totalorder %s18, 0
    %p125 = por %p123, %p124
    %p126 = scmp.ne.s32.totalorder %s112, %s113
    %p127 = scmp.eq.s32.totalorder %s19, 1
    %p128 = por %p126, %p127
    %p130 = scmp.ne.s32.totalorder %s113, %s129
    %p131 = scmp.eq.s32.totalorder %s19, 0
    %p132 = por %p130, %p131
    %s134 = sadd.s32 %s133, 1
    %p137 = scmp.eq.s32.totalorder %s13, 1
    %p138 = scmp.ne.s32.totalorder %s133, %s135
    %p139 = scmp.eq.s32.totalorder %s13, 0
    %p140 = por %p138, %p139
    %p141 = scmp.ne.s32.totalorder %s133, %s135
    %p142 = scmp.eq.s32.totalorder %s18, 1
    %p143 = por %p141, %p142
    %p144 = scmp.ne.s32.totalorder %s135, %s136
    %p145 = scmp.eq.s32.totalorder %s18, 0
    %p146 = por %p144, %p145
    %p147 = scmp.ne.s32.totalorder %s135, %s136
    %p148 = scmp.eq.s32.totalorder %s19, 1
    %p149 = por %p147, %p148
    %p151 = scmp.ne.s32.totalorder %s136, %s150
    %p152 = scmp.eq.s32.totalorder %s19, 0
    %p153 = por %p151, %p152
    %s155 = sadd.s32 %s154, 1
    %p158 = scmp.eq.s32.totalorder %s13, 1
    %p159 = scmp.ne.s32.totalorder %s154, %s156
    %p160 = scmp.eq.s32.totalorder %s13, 0
    %p161 = por %p159, %p160
    %p162 = scmp.ne.s32.totalorder %s154, %s156
    %p163 = scmp.eq.s32.totalorder %s18, 1
    %p164 = por %p162, %p163
    %p165 = scmp.ne.s32.totalorder %s156, %s157
    %p166 = scmp.eq.s32.totalorder %s18, 0
    %p167 = por %p165, %p166
    %p168 = scmp.ne.s32.totalorder %s156, %s157
    %p169 = scmp.eq.s32.totalorder %s19, 1
    %p170 = por %p168, %p169
    %p172 = scmp.ne.s32.totalorder %s157, %s171
    %p173 = scmp.eq.s32.totalorder %s19, 0
    %p174 = por %p172, %p173
    %s176 = sadd.s32 %s175, 1
    %p179 = scmp.eq.s32.totalorder %s13, 1
    %p180 = scmp.ne.s32.totalorder %s175, %s177
    %p181 = scmp.eq.s32.totalorder %s13, 0
    %p182 = por %p180, %p181
    %p183 = scmp.ne.s32.totalorder %s175, %s177
    %p184 = scmp.eq.s32.totalorder %s18, 1
    %p185 = por %p183, %p184
    %p186 = scmp.ne.s32.totalorder %s177, %s178
    %p187 = scmp.eq.s32.totalorder %s18, 0
    %p188 = por %p186, %p187
    %p189 = scmp.ne.s32.totalorder %s177, %s178
    %p190 = scmp.eq.s32.totalorder %s19, 1
    %p191 = por %p189, %p190
    %p193 = scmp.ne.s32.totalorder %s178, %s192
    %p194 = scmp.eq.s32.totalorder %s19, 0
    %p195 = por %p193, %p194
    %s197 = sadd.s32 %s196, 1
    %p200 = scmp.eq.s32.totalorder %s13, 1
    %p201 = scmp.ne.s32.totalorder %s196, %s198
    %p202 = scmp.eq.s32.totalorder %s13, 0
    %p203 = por %p201, %p202
    %p204 = scmp.ne.s32.totalorder %s196, %s198
    %p205 = scmp.eq.s32.totalorder %s18, 1
    %p206 = por %p204, %p205
    %p207 = scmp.ne.s32.totalorder %s198, %s199
    %p208 = scmp.eq.s32.totalorder %s18, 0
    %p209 = por %p207, %p208
    %p210 = scmp.ne.s32.totalorder %s198, %s199
    %p211 = scmp.eq.s32.totalorder %s19, 1
    %p212 = por %p210, %p211
    %p214 = scmp.ne.s32.totalorder %s199, %s213
    %p215 = scmp.eq.s32.totalorder %s19, 0
    %p216 = por %p214, %p215
    %s217 = ssub.s32 %s20, %s32
    %s218 = ssub.s32 %s21, %s28
    %s219 = sor.u32 %s217, %s218
    %p220 = scmp.eq.s32.totalorder %s219, 0
    %s222 = sadd.s32 %s221, 1
    %s223 = scalar_select %p220, %s221, %s222
    %p226 = pneg %p220
    %p227 = scmp.eq.s32.totalorder %s13, 1
    %p228 = por %p226, %p227
    %p229 = scmp.ne.s32.totalorder %s221, %s224
    %p230 = scmp.eq.s32.totalorder %s13, 0
    %p231 = por %p229, %p230
    %p232 = scmp.ne.s32.totalorder %s221, %s224
    %p233 = scmp.eq.s32.totalorder %s18, 1
    %p234 = por %p232, %p233
    %p235 = scmp.ne.s32.totalorder %s224, %s225
    %p236 = scmp.eq.s32.totalorder %s18, 0
    %p237 = por %p235, %p236
    %p238 = scmp.ne.s32.totalorder %s224, %s225
    %p239 = scmp.eq.s32.totalorder %s19, 1
    %p240 = por %p238, %p239
    %p242 = scmp.ne.s32.totalorder %s225, %s241
    %p243 = scmp.eq.s32.totalorder %s19, 0
    %p244 = por %p242, %p243
    %p245 = scmp.le.s32.totalorder 1, %s13
    %p246 = scmp.lt.s32.totalorder %s13, 3
    %p247 = pnand %p245, %p246
    %p248 = pneg %p247
    // Predicated region
    $region9: #{res_block_forward.2} parent=5 // pred_check
      _
    $region10: #{res_block_forward.2} parent=5 // pred_check_branch
      %250 = sbr.rel (%p247) target = $region12
    $region11: #{res_block_forward.2} parent=5 // pred_region
      %s251 = ssub.s32 %s13, 1
      // Predicated region
      $region13: #{res_block_forward.2} parent=11 // pred_check
        %p252 = pneg %p146
      $region14: #{res_block_forward.2} parent=11 // pred_check_branch
        %254 = sbr.rel (%p252) target = $region16
      $region15: #{res_block_forward.2} parent=11 // pred_region
        _
      $region16: #{res_block_forward.2} parent=11 // pred_fallthru
        _
      // Predicated region
      $region17: #{res_block_forward.2} parent=11 // pred_check
        %p255 = pneg %p167
      $region18: #{res_block_forward.2} parent=11 // pred_check_branch
        %257 = sbr.rel (%p255) target = $region20
      $region19: #{res_block_forward.2} parent=11 // pred_region
        _
      $region20: #{res_block_forward.2} parent=11 // pred_fallthru
        _
      // Predicated region
      $region21: #{res_block_forward.2} parent=11 // pred_check
        %p258 = pneg %p188
      $region22: #{res_block_forward.2} parent=11 // pred_check_branch
        %260 = sbr.rel (%p258) target = $region24
      $region23: #{res_block_forward.2} parent=11 // pred_region
        _
      $region24: #{res_block_forward.2} parent=11 // pred_fallthru
        _
      // Predicated region
      $region25: #{res_block_forward.2} parent=11 // pred_check
        %p261 = pneg %p209
      $region26: #{res_block_forward.2} parent=11 // pred_check_branch
        %263 = sbr.rel (%p261) target = $region28
      $region27: #{res_block_forward.2} parent=11 // pred_region
        _
      $region28: #{res_block_forward.2} parent=11 // pred_fallthru
        _
    $region12: #{res_block_forward.2} parent=5 // pred_fallthru
      _
    %p264 = scmp.lt.s32.totalorder %s13, 2
    // Predicated region
    $region29: #{res_block_forward.2} parent=5 // pred_check
      %p265 = pneg %p264
    $region30: #{res_block_forward.2} parent=5 // pred_check_branch
      %267 = sbr.rel (%p265) target = $region32
    $region31: #{res_block_forward.2} parent=5 // pred_region
      // Predicated region
      $region33: #{res_block_forward.2} parent=31 // pred_check
        %p268 = pneg %p47
      $region34: #{res_block_forward.2} parent=31 // pred_check_branch
        %270 = sbr.rel (%p268) target = $region36
      $region35: #{res_block_forward.2} parent=31 // pred_region
        %s271 = smul.u32 16, %s21
        %p272 = scmp.lt.s32.totalorder %s20, 1
        %s273 = scalar_select %p272, %s20, 1
        %p274 = scmp.lt.s32.totalorder %s271, 15
        %s275 = scalar_select %p274, %s271, 15
        %s276 = smul.addr %s275, 2
        %s277 = smul.addr %s273, 32
        %s278 = sadd.s32 %s276, %s277
        %s279 = smul.addr %s278, 8
        %s280 = scalar_lea.vmem %s0, %s279
        %s281 = smul.u32 16, %s21
      $region36: #{res_block_forward.2} parent=31 // pred_fallthru
        _
      // Predicated region
      $region37: #{res_block_forward.2} parent=31 // pred_check
        %p282 = pneg %p83
      $region38: #{res_block_forward.2} parent=31 // pred_check_branch
        %284 = sbr.rel (%p282) target = $region40
      $region39: #{res_block_forward.2} parent=31 // pred_region
        %s285 = smul.u32 %s21, 16
        %s286 = ssub.s32 %s285, 1
        %p287 = scmp.gt.s32.totalorder %s286, 0
        %s288 = scalar_select %p287, %s286, 0
        %p289 = scmp.lt.s32.totalorder %s20, 1
        %s290 = scalar_select %p289, %s20, 1
        %p291 = scmp.lt.s32.totalorder %s288, 15
        %s292 = scalar_select %p291, %s288, 15
        %s293 = smul.addr %s292, 2
        %s294 = smul.addr %s290, 32
        %s295 = sadd.s32 %s293, %s294
        %s296 = smul.addr %s295, 8
        %s297 = scalar_lea.vmem %s1, %s296
        %s298 = smul.u32 %s21, 16
        %s299 = ssub.s32 %s298, 1
        %p300 = scmp.gt.s32.totalorder %s299, 0
        %s301 = scalar_select %p300, %s299, 0
      $region40: #{res_block_forward.2} parent=31 // pred_fallthru
        _
      // Predicated region
      $region41: #{res_block_forward.2} parent=31 // pred_check
        %p302 = pneg %p119
      $region42: #{res_block_forward.2} parent=31 // pred_check_branch
        %304 = sbr.rel (%p302) target = $region44
      $region43: #{res_block_forward.2} parent=31 // pred_region
        %s305 = smul.u32 %s21, 16
        %s306 = sadd.s32 %s305, 16
        %p307 = scmp.lt.s32.totalorder %s306, 15
        %s308 = scalar_select %p307, %s306, 15
        %p309 = scmp.lt.s32.totalorder %s20, 1
        %s310 = scalar_select %p309, %s20, 1
        %p311 = scmp.lt.s32.totalorder %s308, 15
        %s312 = scalar_select %p311, %s308, 15
        %s313 = smul.addr %s312, 2
        %s314 = smul.addr %s310, 32
        %s315 = sadd.s32 %s313, %s314
        %s316 = smul.addr %s315, 8
        %s317 = scalar_lea.vmem %s2, %s316
        %s318 = smul.u32 %s21, 16
        %s319 = sadd.s32 %s318, 16
        %p320 = scmp.lt.s32.totalorder %s319, 15
        %s321 = scalar_select %p320, %s319, 15
      $region44: #{res_block_forward.2} parent=31 // pred_fallthru
        _
    $region32: #{res_block_forward.2} parent=5 // pred_fallthru
      _
    %p322 = scmp.le.s32.totalorder 1, %s13
    %p323 = scmp.lt.s32.totalorder %s13, 3
    %p324 = pnand %p322, %p323
    %p325 = pneg %p324
    // Predicated region
    $region45: #{res_block_forward.2} parent=5 // pred_check
      _
    $region46: #{res_block_forward.2} parent=5 // pred_check_branch
      %327 = sbr.rel (%p324) target = $region48
    $region47: #{res_block_forward.2} parent=5 // pred_region
      %s328 = ssub.s32 %s13, 1
      %s329 = smul.u32 16, %s23
      %p330 = scmp.lt.s32.totalorder %s22, 1
      %s331 = scalar_select %p330, %s22, 1
      %p332 = scmp.lt.s32.totalorder %s329, 15
      %s333 = scalar_select %p332, %s329, 15
      %s334 = smul.addr %s333, 2
      %s335 = smul.addr %s331, 32
      %s336 = sadd.s32 %s334, %s335
      %s337 = smul.addr %s336, 8
      %s338 = scalar_lea.vmem %s0, %s337
      %p339 = pneg %p53
      %p340 = pneg %p50
      %s341 = smul.u32 %s23, 16
      %s342 = ssub.s32 %s341, 1
      %p343 = scmp.gt.s32.totalorder %s342, 0
      %s344 = scalar_select %p343, %s342, 0
      %p345 = scmp.lt.s32.totalorder %s22, 1
      %s346 = scalar_select %p345, %s22, 1
      %p347 = scmp.lt.s32.totalorder %s344, 15
      %s348 = scalar_select %p347, %s344, 15
      %s349 = smul.addr %s348, 2
      %s350 = smul.addr %s346, 32
      %s351 = sadd.s32 %s349, %s350
      %s352 = smul.addr %s351, 8
      %s353 = scalar_lea.vmem %s1, %s352
      %p354 = pneg %p89
      %p355 = pneg %p86
      %s356 = smul.u32 %s23, 16
      %s357 = sadd.s32 %s356, 16
      %p358 = scmp.lt.s32.totalorder %s357, 15
      %s359 = scalar_select %p358, %s357, 15
      %p360 = scmp.lt.s32.totalorder %s22, 1
      %s361 = scalar_select %p360, %s22, 1
      %p362 = scmp.lt.s32.totalorder %s359, 15
      %s363 = scalar_select %p362, %s359, 15
      %s364 = smul.addr %s363, 2
      %s365 = smul.addr %s361, 32
      %s366 = sadd.s32 %s364, %s365
      %s367 = smul.addr %s366, 8
      %s368 = scalar_lea.vmem %s2, %s367
      %p369 = pneg %p125
      %p370 = pneg %p122
      %p371 = pneg %p146
      %p372 = pneg %p143
      %p373 = pneg %p167
      %p374 = pneg %p164
      %p375 = pneg %p188
      %p376 = pneg %p185
      %p377 = pneg %p209
      %p378 = pneg %p206
      %p379 = pneg %p237
      %p380 = pneg %p234
      %s381 = smul.u32 16, %s23
      %p382 = scmp.lt.s32.totalorder %s22, 1
      %s383 = scalar_select %p382, %s22, 1
      %p384 = scmp.lt.s32.totalorder %s381, 15
      %s385 = scalar_select %p384, %s381, 15
      %s386 = smul.addr %s385, 2
      %s387 = smul.addr %s383, 32
      %s388 = sadd.s32 %s386, %s387
      %s389 = smul.addr %s388, 8
      %s390 = scalar_lea.vmem %s7, %s389
      %s391 = smul.u32 16, %s23
      %p392 = scmp.lt.s32.totalorder %s22, 1
      %s393 = scalar_select %p392, %s22, 1
      %p394 = scmp.lt.s32.totalorder %s391, 15
      %s395 = scalar_select %p394, %s391, 15
      %s396 = smul.addr %s395, 2
      %s397 = smul.addr %s393, 32
      %s398 = sadd.s32 %s396, %s397
      %s399 = smul.addr %s398, 8
      %s400 = scalar_lea.vmem %s0, %s399
      %s401 = smul.u32 16, %s23
      %s402 = smul.u32 %s23, 16
      %s403 = ssub.s32 %s402, 1
      %p404 = scmp.gt.s32.totalorder %s403, 0
      %s405 = scalar_select %p404, %s403, 0
      %p406 = scmp.lt.s32.totalorder %s22, 1
      %s407 = scalar_select %p406, %s22, 1
      %p408 = scmp.lt.s32.totalorder %s405, 15
      %s409 = scalar_select %p408, %s405, 15
      %s410 = smul.addr %s409, 2
      %s411 = smul.addr %s407, 32
      %s412 = sadd.s32 %s410, %s411
      %s413 = smul.addr %s412, 8
      %s414 = scalar_lea.vmem %s1, %s413
      %s415 = smul.u32 %s23, 16
      %s416 = ssub.s32 %s415, 1
      %p417 = scmp.gt.s32.totalorder %s416, 0
      %s418 = scalar_select %p417, %s416, 0
      %s419 = smul.u32 %s23, 16
      %s420 = sadd.s32 %s419, 16
      %p421 = scmp.lt.s32.totalorder %s420, 15
      %s422 = scalar_select %p421, %s420, 15
      %p423 = scmp.lt.s32.totalorder %s22, 1
      %s424 = scalar_select %p423, %s22, 1
      %p425 = scmp.lt.s32.totalorder %s422, 15
      %s426 = scalar_select %p425, %s422, 15
      %s427 = smul.addr %s426, 2
      %s428 = smul.addr %s424, 32
      %s429 = sadd.s32 %s427, %s428
      %s430 = smul.addr %s429, 8
      %s431 = scalar_lea.vmem %s2, %s430
      %s432 = smul.u32 %s23, 16
      %s433 = sadd.s32 %s432, 16
      %p434 = scmp.lt.s32.totalorder %s433, 15
      %s435 = scalar_select %p434, %s433, 15
      %s436 = smul.u32 16, %s23
      %p437 = scmp.lt.s32.totalorder %s22, 1
      %s438 = scalar_select %p437, %s22, 1
      %p439 = scmp.lt.s32.totalorder %s436, 15
      %s440 = scalar_select %p439, %s436, 15
      %s441 = smul.addr %s440, 2
      %s442 = smul.addr %s438, 32
      %s443 = sadd.s32 %s441, %s442
      %s444 = smul.addr %s443, 8
      %s445 = scalar_lea.vmem %s7, %s444
      %s446 = smul.u32 16, %s23
      %v447 = vld [vmem:[%s3] sm:$0xff]
      %v448 = vld [vmem:[%s3 + $0x8] sm:$0xff]
      %v449 = vld [vmem:[%s4] sm:$0x1]
      %v450 = vld [vmem:[%s400] sm:$0xff]
      %v451 = vld [vmem:[%s400 + $0x8] sm:$0xff]
      %v452 = vld [vmem:[%s400 + $0x10] sm:$0xff]
      %v453 = vld [vmem:[%s400 + $0x18] sm:$0xff]
      %v454 = vld [vmem:[%s400 + $0x20] sm:$0xff]
      %v455 = vld [vmem:[%s400 + $0x28] sm:$0xff]
      %v456 = vld [vmem:[%s400 + $0x30] sm:$0xff]
      %v457 = vld [vmem:[%s400 + $0x38] sm:$0xff]
      %v458 = vld [vmem:[%s400 + $0x40] sm:$0xff]
      %v459 = vld [vmem:[%s400 + $0x48] sm:$0xff]
      %v460 = vld [vmem:[%s400 + $0x50] sm:$0xff]
      %v461 = vld [vmem:[%s400 + $0x58] sm:$0xff]
      %v462 = vld [vmem:[%s400 + $0x60] sm:$0xff]
      %v463 = vld [vmem:[%s400 + $0x68] sm:$0xff]
      %v464 = vld [vmem:[%s400 + $0x70] sm:$0xff]
      %v465 = vld [vmem:[%s400 + $0x78] sm:$0xff]
      %v466 = vld [vmem:[%s400 + $0x80] sm:$0xff]
      %v467 = vld [vmem:[%s400 + $0x88] sm:$0xff]
      %v468 = vld [vmem:[%s400 + $0x90] sm:$0xff]
      %v469 = vld [vmem:[%s400 + $0x98] sm:$0xff]
      %v470 = vld [vmem:[%s400 + $0xa0] sm:$0xff]
      %v471 = vld [vmem:[%s400 + $0xa8] sm:$0xff]
      %v472 = vld [vmem:[%s400 + $0xb0] sm:$0xff]
      %v473 = vld [vmem:[%s400 + $0xb8] sm:$0xff]
      %v474 = vld [vmem:[%s400 + $0xc0] sm:$0xff]
      %v475 = vld [vmem:[%s400 + $0xc8] sm:$0xff]
      %v476 = vld [vmem:[%s400 + $0xd0] sm:$0xff]
      %v477 = vld [vmem:[%s400 + $0xd8] sm:$0xff]
      %v478 = vld [vmem:[%s400 + $0xe0] sm:$0xff]
      %v479 = vld [vmem:[%s400 + $0xe8] sm:$0xff]
      %v480 = vld [vmem:[%s400 + $0xf0] sm:$0xff]
      %v481 = vld [vmem:[%s400 + $0xf8] sm:$0xff]
      %v483 = vlaneseq
      %v484 = vshrl.u32 %v483, 7
      %v485 = vsub.s32 0, %v484
      %v486 = vrot.slane %v449, %v485
      %vm488 = vcmask 130048
      %v490 = vsel %vm488, %v450, 0
      %v493 = vsel %vm488, %v451, 0
      %v496 = vsel %vm488, %v452, 0
      %v499 = vsel %vm488, %v453, 0
      %v502 = vsel %vm488, %v454, 0
      %v505 = vsel %vm488, %v455, 0
      %v508 = vsel %vm488, %v456, 0
      %v511 = vsel %vm488, %v457, 0
      %v514 = vsel %vm488, %v458, 0
      %v517 = vsel %vm488, %v459, 0
      %v520 = vsel %vm488, %v460, 0
      %v523 = vsel %vm488, %v461, 0
      %v526 = vsel %vm488, %v462, 0
      %v529 = vsel %vm488, %v463, 0
      %v532 = vsel %vm488, %v464, 0
      %v535 = vsel %vm488, %v465, 0
      %v538 = vsel %vm488, %v466, 0
      %v541 = vsel %vm488, %v467, 0
      %v544 = vsel %vm488, %v468, 0
      %v547 = vsel %vm488, %v469, 0
      %v550 = vsel %vm488, %v470, 0
      %v553 = vsel %vm488, %v471, 0
      %v556 = vsel %vm488, %v472, 0
      %v559 = vsel %vm488, %v473, 0
      %v562 = vsel %vm488, %v474, 0
      %v565 = vsel %vm488, %v475, 0
      %v568 = vsel %vm488, %v476, 0
      %v571 = vsel %vm488, %v477, 0
      %v574 = vsel %vm488, %v478, 0
      %v577 = vsel %vm488, %v479, 0
      %v580 = vsel %vm488, %v480, 0
      %v583 = vsel %vm488, %v481, 0
      %585 = vmatprep.subr.mxu0 0.0
      %586 = vmatpush1.msra.mxu0 %v447
      %587 = vmatprep.subr.mxu0 0.0
      %588 = vmatpush1.msra.mxu0 %v448
      %589 = vmatprep.subr.mxu0 0.0
      %590 = vmatpush1.msra.mxu0 0.0
      %591 = vmatprep.subr.mxu0 0.0
      %592 = vmatpush1.msra.mxu0 0.0
      %593 = vmatprep.subr.mxu0 0.0
      %594 = vmatpush1.msra.mxu0 0.0
      %595 = vmatprep.subr.mxu0 0.0
      %596 = vmatpush1.msra.mxu0 0.0
      %597 = vmatprep.subr.mxu0 0.0
      %598 = vmatpush1.msra.mxu0 0.0
      %599 = vmatprep.subr.mxu0 0.0
      %600 = vmatpush1.msra.mxu0 0.0
      %601 = vmatprep.subr.mxu0 0.0
      %602 = vmatpush1.msra.mxu0 0.0
      %603 = vmatprep.subr.mxu0 0.0
      %604 = vmatpush1.msra.mxu0 0.0
      %605 = vmatprep.subr.mxu0 0.0
      %606 = vmatpush1.msra.mxu0 0.0
      %607 = vmatprep.subr.mxu0 0.0
      %608 = vmatpush1.msra.mxu0 0.0
      %609 = vmatprep.subr.mxu0 0.0
      %610 = vmatpush1.msra.mxu0 0.0
      %611 = vmatprep.subr.mxu0 0.0
      %612 = vmatpush1.msra.mxu0 0.0
      %613 = vmatprep.subr.mxu0 0.0
      %614 = vmatpush1.msra.mxu0 0.0
      %615 = vmatprep.subr.mxu0 0.0
      %616 = vmatpush1.msra.mxu0 0.0
      %617 = vmatprep.subr.mxu0 0.0
      %618 = vmatpush1.msra.mxu0 0.0
      %619 = vmatprep.subr.mxu0 0.0
      %620 = vmatpush1.msra.mxu0 0.0
      %621 = vmatprep.subr.mxu0 0.0
      %622 = vmatpush1.msra.mxu0 0.0
      %623 = vmatprep.subr.mxu0 0.0
      %624 = vmatpush1.msra.mxu0 0.0
      %625 = vmatprep.subr.mxu0 0.0
      %626 = vmatpush1.msra.mxu0 0.0
      %627 = vmatprep.subr.mxu0 0.0
      %628 = vmatpush1.msra.mxu0 0.0
      %629 = vmatprep.subr.mxu0 0.0
      %630 = vmatpush1.msra.mxu0 0.0
      %631 = vmatprep.subr.mxu0 0.0
      %632 = vmatpush1.msra.mxu0 0.0
      %633 = vmatprep.subr.mxu0 0.0
      %634 = vmatpush1.msra.mxu0 0.0
      %635 = vmatprep.subr.mxu0 0.0
      %636 = vmatpush1.msra.mxu0 0.0
      %637 = vmatprep.subr.mxu0 0.0
      %638 = vmatpush1.msra.mxu0 0.0
      %639 = vmatprep.subr.mxu0 0.0
      %640 = vmatpush1.msra.mxu0 0.0
      %641 = vmatprep.subr.mxu0 0.0
      %642 = vmatpush1.msra.mxu0 0.0
      %643 = vmatprep.subr.mxu0 0.0
      %644 = vmatpush1.msra.mxu0 0.0
      %645 = vmatprep.subr.mxu0 0.0
      %646 = vmatpush1.msra.mxu0 0.0
      %647 = vmatprep.subr.mxu0 0.0
      %648 = vmatpush1.msra.mxu0 0.0
      %649 = vmatprep.mubr.f32.mxu0 0.0
      %650 = vmatmul.mubr.f32.gmra.mrb[0].mxu0 %v490
      %v651 = vpop.f32.mrb[0].mxu0
      %v652 = vadd.f32 %v486, %v651
      %v653 = vpop.f32.mrb[0].mxu0
      %654 = vmatprep.mubr.f32.mxu0 0.0
      %655 = vmatmul.mubr.f32.gmra.mrb[0].mxu0 %v493
      %v656 = vpop.f32.mrb[0].mxu0
      %v657 = vadd.f32 %v486, %v656
      %v658 = vpop.f32.mrb[0].mxu0
      %659 = vmatprep.mubr.f32.mxu0 0.0
      %660 = vmatmul.mubr.f32.gmra.mrb[0].mxu0 %v496
      %v661 = vpop.f32.mrb[0].mxu0
      %v662 = vadd.f32 %v486, %v661
      %v663 = vpop.f32.mrb[0].mxu0
      %664 = vmatprep.mubr.f32.mxu0 0.0
      %665 = vmatmul.mubr.f32.gmra.mrb[0].mxu0 %v499
      %v666 = vpop.f32.mrb[0].mxu0
      %v667 = vadd.f32 %v486, %v666
      %v668 = vpop.f32.mrb[0].mxu0
      %669 = vmatprep.mubr.f32.mxu0 0.0
      %670 = vmatmul.mubr.f32.gmra.mrb[0].mxu0 %v502
      %v671 = vpop.f32.mrb[0].mxu0
      %v672 = vadd.f32 %v486, %v671
      %v673 = vpop.f32.mrb[0].mxu0
      %674 = vmatprep.mubr.f32.mxu0 0.0
      %675 = vmatmul.mubr.f32.gmra.mrb[0].mxu0 %v505
      %v676 = vpop.f32.mrb[0].mxu0
      %v677 = vadd.f32 %v486, %v676
      %v678 = vpop.f32.mrb[0].mxu0
      %679 = vmatprep.mubr.f32.mxu0 0.0
      %680 = vmatmul.mubr.f32.gmra.mrb[0].mxu0 %v508
      %v681 = vpop.f32.mrb[0].mxu0
      %v682 = vadd.f32 %v486, %v681
      %v683 = vpop.f32.mrb[0].mxu0
      %684 = vmatprep.mubr.f32.mxu0 0.0
      %685 = vmatmul.mubr.f32.gmra.mrb[0].mxu0 %v511
      %v686 = vpop.f32.mrb[0].mxu0
      %v687 = vadd.f32 %v486, %v686
      %v688 = vpop.f32.mrb[0].mxu0
      %689 = vmatprep.mubr.f32.mxu0 0.0
      %690 = vmatmul.mubr.f32.gmra.mrb[0].mxu0 %v514
      %v691 = vpop.f32.mrb[0].mxu0
      %v692 = vadd.f32 %v486, %v691
      %v693 = vpop.f32.mrb[0].mxu0
      %694 = vmatprep.mubr.f32.mxu0 0.0
      %695 = vmatmul.mubr.f32.gmra.mrb[0].mxu0 %v517
      %v696 = vpop.f32.mrb[0].mxu0
      %v697 = vadd.f32 %v486, %v696
      %v698 = vpop.f32.mrb[0].mxu0
      %699 = vmatprep.mubr.f32.mxu0 0.0
      %700 = vmatmul.mubr.f32.gmra.mrb[0].mxu0 %v520
      %v701 = vpop.f32.mrb[0].mxu0
      %v702 = vadd.f32 %v486, %v701
      %v703 = vpop.f32.mrb[0].mxu0
      %704 = vmatprep.mubr.f32.mxu0 0.0
      %705 = vmatmul.mubr.f32.gmra.mrb[0].mxu0 %v523
      %v706 = vpop.f32.mrb[0].mxu0
      %v707 = vadd.f32 %v486, %v706
      %v708 = vpop.f32.mrb[0].mxu0
      %709 = vmatprep.mubr.f32.mxu0 0.0
      %710 = vmatmul.mubr.f32.gmra.mrb[0].mxu0 %v526
      %v711 = vpop.f32.mrb[0].mxu0
      %v712 = vadd.f32 %v486, %v711
      %v713 = vpop.f32.mrb[0].mxu0
      %714 = vmatprep.mubr.f32.mxu0 0.0
      %715 = vmatmul.mubr.f32.gmra.mrb[0].mxu0 %v529
      %v716 = vpop.f32.mrb[0].mxu0
      %v717 = vadd.f32 %v486, %v716
      %v718 = vpop.f32.mrb[0].mxu0
      %719 = vmatprep.mubr.f32.mxu0 0.0
      %720 = vmatmul.mubr.f32.gmra.mrb[0].mxu0 %v532
      %v721 = vpop.f32.mrb[0].mxu0
      %v722 = vadd.f32 %v486, %v721
      %v723 = vpop.f32.mrb[0].mxu0
      %724 = vmatprep.mubr.f32.mxu0 0.0
      %725 = vmatmul.mubr.f32.gmra.mrb[0].mxu0 %v535
      %v726 = vpop.f32.mrb[0].mxu0
      %v727 = vadd.f32 %v486, %v726
      %v728 = vpop.f32.mrb[0].mxu0
      %729 = vmatprep.mubr.f32.mxu0 0.0
      %730 = vmatmul.mubr.f32.gmra.mrb[0].mxu0 %v538
      %v731 = vpop.f32.mrb[0].mxu0
      %v732 = vadd.f32 %v486, %v731
      %v733 = vpop.f32.mrb[0].mxu0
      %734 = vmatprep.mubr.f32.mxu0 0.0
      %735 = vmatmul.mubr.f32.gmra.mrb[0].mxu0 %v541
      %v736 = vpop.f32.mrb[0].mxu0
      %v737 = vadd.f32 %v486, %v736
      %v738 = vpop.f32.mrb[0].mxu0
      %739 = vmatprep.mubr.f32.mxu0 0.0
      %740 = vmatmul.mubr.f32.gmra.mrb[0].mxu0 %v544
      %v741 = vpop.f32.mrb[0].mxu0
      %v742 = vadd.f32 %v486, %v741
      %v743 = vpop.f32.mrb[0].mxu0
      %744 = vmatprep.mubr.f32.mxu0 0.0
      %745 = vmatmul.mubr.f32.gmra.mrb[0].mxu0 %v547
      %v746 = vpop.f32.mrb[0].mxu0
      %v747 = vadd.f32 %v486, %v746
      %v748 = vpop.f32.mrb[0].mxu0
      %749 = vmatprep.mubr.f32.mxu0 0.0
      %750 = vmatmul.mubr.f32.gmra.mrb[0].mxu0 %v550
      %v751 = vpop.f32.mrb[0].mxu0
      %v752 = vadd.f32 %v486, %v751
      %v753 = vpop.f32.mrb[0].mxu0
      %754 = vmatprep.mubr.f32.mxu0 0.0
      %755 = vmatmul.mubr.f32.gmra.mrb[0].mxu0 %v553
      %v756 = vpop.f32.mrb[0].mxu0
      %v757 = vadd.f32 %v486, %v756
      %v758 = vpop.f32.mrb[0].mxu0
      %759 = vmatprep.mubr.f32.mxu0 0.0
      %760 = vmatmul.mubr.f32.gmra.mrb[0].mxu0 %v556
      %v761 = vpop.f32.mrb[0].mxu0
      %v762 = vadd.f32 %v486, %v761
      %v763 = vpop.f32.mrb[0].mxu0
      %764 = vmatprep.mubr.f32.mxu0 0.0
      %765 = vmatmul.mubr.f32.gmra.mrb[0].mxu0 %v559
      %v766 = vpop.f32.mrb[0].mxu0
      %v767 = vadd.f32 %v486, %v766
      %v768 = vpop.f32.mrb[0].mxu0
      %769 = vmatprep.mubr.f32.mxu0 0.0
      %770 = vmatmul.mubr.f32.gmra.mrb[0].mxu0 %v562
      %v771 = vpop.f32.mrb[0].mxu0
      %v772 = vadd.f32 %v486, %v771
      %v773 = vpop.f32.mrb[0].mxu0
      %774 = vmatprep.mubr.f32.mxu0 0.0
      %775 = vmatmul.mubr.f32.gmra.mrb[0].mxu0 %v565
      %v776 = vpop.f32.mrb[0].mxu0
      %v777 = vadd.f32 %v486, %v776
      %v778 = vpop.f32.mrb[0].mxu0
      %779 = vmatprep.mubr.f32.mxu0 0.0
      %780 = vmatmul.mubr.f32.gmra.mrb[0].mxu0 %v568
      %v781 = vpop.f32.mrb[0].mxu0
      %v782 = vadd.f32 %v486, %v781
      %v783 = vpop.f32.mrb[0].mxu0
      %784 = vmatprep.mubr.f32.mxu0 0.0
      %785 = vmatmul.mubr.f32.gmra.mrb[0].mxu0 %v571
      %v786 = vpop.f32.mrb[0].mxu0
      %v787 = vadd.f32 %v486, %v786
      %v788 = vpop.f32.mrb[0].mxu0
      %789 = vmatprep.mubr.f32.mxu0 0.0
      %790 = vmatmul.mubr.f32.gmra.mrb[0].mxu0 %v574
      %v791 = vpop.f32.mrb[0].mxu0
      %v792 = vadd.f32 %v486, %v791
      %v793 = vpop.f32.mrb[0].mxu0
      %794 = vmatprep.mubr.f32.mxu0 0.0
      %795 = vmatmul.mubr.f32.gmra.mrb[0].mxu0 %v577
      %v796 = vpop.f32.mrb[0].mxu0
      %v797 = vadd.f32 %v486, %v796
      %v798 = vpop.f32.mrb[0].mxu0
      %799 = vmatprep.mubr.f32.mxu0 0.0
      %800 = vmatmul.mubr.f32.gmra.mrb[0].mxu0 %v580
      %v801 = vpop.f32.mrb[0].mxu0
      %v802 = vadd.f32 %v486, %v801
      %v803 = vpop.f32.mrb[0].mxu0
      %804 = vmatprep.mubr.f32.mxu0 0.0
      %805 = vmatmul.mubr.f32.gmra.mrb[0].mxu0 %v583
      %v806 = vpop.f32.mrb[0].mxu0
      %v807 = vadd.f32 %v486, %v806
      %v808 = vpop.f32.mrb[0].mxu0
      %809 = vdwg.mxu0
      %vm810 = vcmp.gt.f32.partialorder %v652, 0.0
      %vm811 = vcmp.gt.f32.partialorder %v657, 0.0
      %vm812 = vcmp.gt.f32.partialorder %v662, 0.0
      %vm813 = vcmp.gt.f32.partialorder %v667, 0.0
      %vm814 = vcmp.gt.f32.partialorder %v672, 0.0
      %vm815 = vcmp.gt.f32.partialorder %v677, 0.0
      %vm816 = vcmp.gt.f32.partialorder %v682, 0.0
      %vm817 = vcmp.gt.f32.partialorder %v687, 0.0
      %vm818 = vcmp.gt.f32.partialorder %v692, 0.0
      %vm819 = vcmp.gt.f32.partialorder %v697, 0.0
      %vm820 = vcmp.gt.f32.partialorder %v702, 0.0
      %vm821 = vcmp.gt.f32.partialorder %v707, 0.0
      %vm822 = vcmp.gt.f32.partialorder %v712, 0.0
      %vm823 = vcmp.gt.f32.partialorder %v717, 0.0
      %vm824 = vcmp.gt.f32.partialorder %v722, 0.0
      %vm825 = vcmp.gt.f32.partialorder %v727, 0.0
      %vm826 = vcmp.gt.f32.partialorder %v732, 0.0
      %vm827 = vcmp.gt.f32.partialorder %v737, 0.0
      %vm828 = vcmp.gt.f32.partialorder %v742, 0.0
      %vm829 = vcmp.gt.f32.partialorder %v747, 0.0
      %vm830 = vcmp.gt.f32.partialorder %v752, 0.0
      %vm831 = vcmp.gt.f32.partialorder %v757, 0.0
      %vm832 = vcmp.gt.f32.partialorder %v762, 0.0
      %vm833 = vcmp.gt.f32.partialorder %v767, 0.0
      %vm834 = vcmp.gt.f32.partialorder %v772, 0.0
      %vm835 = vcmp.gt.f32.partialorder %v777, 0.0
      %vm836 = vcmp.gt.f32.partialorder %v782, 0.0
      %vm837 = vcmp.gt.f32.partialorder %v787, 0.0
      %vm838 = vcmp.gt.f32.partialorder %v792, 0.0
      %vm839 = vcmp.gt.f32.partialorder %v797, 0.0
      %vm840 = vcmp.gt.f32.partialorder %v802, 0.0
      %vm841 = vcmp.gt.f32.partialorder %v807, 0.0
      %v842 = vmul.f32 %v652, 0.1
      %v843 = vmul.f32 %v657, 0.1
      %v844 = vmul.f32 %v662, 0.1
      %v845 = vmul.f32 %v667, 0.1
      %v846 = vmul.f32 %v672, 0.1
      %v847 = vmul.f32 %v677, 0.1
      %v848 = vmul.f32 %v682, 0.1
      %v849 = vmul.f32 %v687, 0.1
      %v850 = vmul.f32 %v692, 0.1
      %v851 = vmul.f32 %v697, 0.1
      %v852 = vmul.f32 %v702, 0.1
      %v853 = vmul.f32 %v707, 0.1
      %v854 = vmul.f32 %v712, 0.1
      %v855 = vmul.f32 %v717, 0.1
      %v856 = vmul.f32 %v722, 0.1
      %v857 = vmul.f32 %v727, 0.1
      %v858 = vmul.f32 %v732, 0.1
      %v859 = vmul.f32 %v737, 0.1
      %v860 = vmul.f32 %v742, 0.1
      %v861 = vmul.f32 %v747, 0.1
      %v862 = vmul.f32 %v752, 0.1
      %v863 = vmul.f32 %v757, 0.1
      %v864 = vmul.f32 %v762, 0.1
      %v865 = vmul.f32 %v767, 0.1
      %v866 = vmul.f32 %v772, 0.1
      %v867 = vmul.f32 %v777, 0.1
      %v868 = vmul.f32 %v782, 0.1
      %v869 = vmul.f32 %v787, 0.1
      %v870 = vmul.f32 %v792, 0.1
      %v871 = vmul.f32 %v797, 0.1
      %v872 = vmul.f32 %v802, 0.1
      %v873 = vmul.f32 %v807, 0.1
      %v874 = vsel %vm810, %v652, %v842
      %v875 = vsel %vm811, %v657, %v843
      %v876 = vsel %vm812, %v662, %v844
      %v877 = vsel %vm813, %v667, %v845
      %v878 = vsel %vm814, %v672, %v846
      %v879 = vsel %vm815, %v677, %v847
      %v880 = vsel %vm816, %v682, %v848
      %v881 = vsel %vm817, %v687, %v849
      %v882 = vsel %vm818, %v692, %v850
      %v883 = vsel %vm819, %v697, %v851
      %v884 = vsel %vm820, %v702, %v852
      %v885 = vsel %vm821, %v707, %v853
      %v886 = vsel %vm822, %v712, %v854
      %v887 = vsel %vm823, %v717, %v855
      %v888 = vsel %vm824, %v722, %v856
      %v889 = vsel %vm825, %v727, %v857
      %v890 = vsel %vm826, %v732, %v858
      %v891 = vsel %vm827, %v737, %v859
      %v892 = vsel %vm828, %v742, %v860
      %v893 = vsel %vm829, %v747, %v861
      %v894 = vsel %vm830, %v752, %v862
      %v895 = vsel %vm831, %v757, %v863
      %v896 = vsel %vm832, %v762, %v864
      %v897 = vsel %vm833, %v767, %v865
      %v898 = vsel %vm834, %v772, %v866
      %v899 = vsel %vm835, %v777, %v867
      %v900 = vsel %vm836, %v782, %v868
      %v901 = vsel %vm837, %v787, %v869
      %v902 = vsel %vm838, %v792, %v870
      %v903 = vsel %vm839, %v797, %v871
      %v904 = vsel %vm840, %v802, %v872
      %v905 = vsel %vm841, %v807, %v873
      %s906 = scalar_lea.vmem [#allocation2], 24
      %vm907 = vcmask 64512
      %908 = vst.msk [vmem:[%s906 + $0x1] sm:$0xff] %vm907, %v874
      %909 = vst.msk [vmem:[%s906 + $0x9] sm:$0xff] %vm907, %v875
      %910 = vst.msk [vmem:[%s906 + $0x19] sm:$0xff] %vm907, %v876
      %911 = vst.msk [vmem:[%s906 + $0x21] sm:$0xff] %vm907, %v877
      %912 = vst.msk [vmem:[%s906 + $0x31] sm:$0xff] %vm907, %v878
      %913 = vst.msk [vmem:[%s906 + $0x39] sm:$0xff] %vm907, %v879
      %914 = vst.msk [vmem:[%s906 + $0x49] sm:$0xff] %vm907, %v880
      %915 = vst.msk [vmem:[%s906 + $0x51] sm:$0xff] %vm907, %v881
      %916 = vst.msk [vmem:[%s906 + $0x61] sm:$0xff] %vm907, %v882
      %917 = vst.msk [vmem:[%s906 + $0x69] sm:$0xff] %vm907, %v883
      %918 = vst.msk [vmem:[%s906 + $0x79] sm:$0xff] %vm907, %v884
      %919 = vst.msk [vmem:[%s906 + $0x81] sm:$0xff] %vm907, %v885
      %920 = vst.msk [vmem:[%s906 + $0x91] sm:$0xff] %vm907, %v886
      %921 = vst.msk [vmem:[%s906 + $0x99] sm:$0xff] %vm907, %v887
      %922 = vst.msk [vmem:[%s906 + $0xa9] sm:$0xff] %vm907, %v888
      %923 = vst.msk [vmem:[%s906 + $0xb1] sm:$0xff] %vm907, %v889
      %924 = vst.msk [vmem:[%s906 + $0xc1] sm:$0xff] %vm907, %v890
      %925 = vst.msk [vmem:[%s906 + $0xc9] sm:$0xff] %vm907, %v891
      %926 = vst.msk [vmem:[%s906 + $0xd9] sm:$0xff] %vm907, %v892
      %927 = vst.msk [vmem:[%s906 + $0xe1] sm:$0xff] %vm907, %v893
      %928 = vst.msk [vmem:[%s906 + $0xf1] sm:$0xff] %vm907, %v894
      %929 = vst.msk [vmem:[%s906 + $0xf9] sm:$0xff] %vm907, %v895
      %930 = vst.msk [vmem:[%s906 + $0x109] sm:$0xff] %vm907, %v896
      %931 = vst.msk [vmem:[%s906 + $0x111] sm:$0xff] %vm907, %v897
      %932 = vst.msk [vmem:[%s906 + $0x121] sm:$0xff] %vm907, %v898
      %933 = vst.msk [vmem:[%s906 + $0x129] sm:$0xff] %vm907, %v899
      %934 = vst.msk [vmem:[%s906 + $0x139] sm:$0xff] %vm907, %v900
      %935 = vst.msk [vmem:[%s906 + $0x141] sm:$0xff] %vm907, %v901
      %936 = vst.msk [vmem:[%s906 + $0x151] sm:$0xff] %vm907, %v902
      %937 = vst.msk [vmem:[%s906 + $0x159] sm:$0xff] %vm907, %v903
      %938 = vst.msk [vmem:[%s906 + $0x169] sm:$0xff] %vm907, %v904
      %939 = vst.msk [vmem:[%s906 + $0x171] sm:$0xff] %vm907, %v905
      %vm940 = vcmask 57344
      %941 = vst.msk [vmem:[#allocation2] sm:$0x1] %vm940, 0.0
      %942 = vst.msk [vmem:[#allocation2 + $0x18] sm:$0x1] %vm940, 0.0
      %943 = vst.msk [vmem:[#allocation2 + $0x30] sm:$0x1] %vm940, 0.0
      %944 = vst.msk [vmem:[#allocation2 + $0x48] sm:$0x1] %vm940, 0.0
      %945 = vst.msk [vmem:[#allocation2 + $0x60] sm:$0x1] %vm940, 0.0
      %946 = vst.msk [vmem:[#allocation2 + $0x78] sm:$0x1] %vm940, 0.0
      %947 = vst.msk [vmem:[#allocation2 + $0x90] sm:$0x1] %vm940, 0.0
      %948 = vst.msk [vmem:[#allocation2 + $0xa8] sm:$0x1] %vm940, 0.0
      %949 = vst.msk [vmem:[#allocation2 + $0xc0] sm:$0x1] %vm940, 0.0
      %950 = vst.msk [vmem:[#allocation2 + $0xd8] sm:$0x1] %vm940, 0.0
      %951 = vst.msk [vmem:[#allocation2 + $0xf0] sm:$0x1] %vm940, 0.0
      %952 = vst.msk [vmem:[#allocation2 + $0x108] sm:$0x1] %vm940, 0.0
      %953 = vst.msk [vmem:[#allocation2 + $0x120] sm:$0x1] %vm940, 0.0
      %954 = vst.msk [vmem:[#allocation2 + $0x138] sm:$0x1] %vm940, 0.0
      %955 = vst.msk [vmem:[#allocation2 + $0x150] sm:$0x1] %vm940, 0.0
      %956 = vst.msk [vmem:[#allocation2 + $0x168] sm:$0x1] %vm940, 0.0
      %957 = vst.msk [vmem:[#allocation2 + $0x180] sm:$0x1] %vm940, 0.0
      %958 = vst.msk [vmem:[#allocation2 + $0x198] sm:$0x1] %vm940, 0.0
      %959 = vst.msk [vmem:[#allocation2 + $0x11] sm:$0x1] %vm940, 0.0
      %960 = vst.msk [vmem:[#allocation2 + $0x29] sm:$0x1] %vm940, 0.0
      %961 = vst.msk [vmem:[#allocation2 + $0x41] sm:$0x1] %vm940, 0.0
      %962 = vst.msk [vmem:[#allocation2 + $0x59] sm:$0x1] %vm940, 0.0
      %963 = vst.msk [vmem:[#allocation2 + $0x71] sm:$0x1] %vm940, 0.0
      %964 = vst.msk [vmem:[#allocation2 + $0x89] sm:$0x1] %vm940, 0.0
      %965 = vst.msk [vmem:[#allocation2 + $0xa1] sm:$0x1] %vm940, 0.0
      %966 = vst.msk [vmem:[#allocation2 + $0xb9] sm:$0x1] %vm940, 0.0
      %967 = vst.msk [vmem:[#allocation2 + $0xd1] sm:$0x1] %vm940, 0.0
      %968 = vst.msk [vmem:[#allocation2 + $0xe9] sm:$0x1] %vm940, 0.0
      %969 = vst.msk [vmem:[#allocation2 + $0x101] sm:$0x1] %vm940, 0.0
      %970 = vst.msk [vmem:[#allocation2 + $0x119] sm:$0x1] %vm940, 0.0
      %971 = vst.msk [vmem:[#allocation2 + $0x131] sm:$0x1] %vm940, 0.0
      %972 = vst.msk [vmem:[#allocation2 + $0x149] sm:$0x1] %vm940, 0.0
      %973 = vst.msk [vmem:[#allocation2 + $0x161] sm:$0x1] %vm940, 0.0
      %974 = vst.msk [vmem:[#allocation2 + $0x179] sm:$0x1] %vm940, 0.0
      %975 = vst.msk [vmem:[#allocation2 + $0x191] sm:$0x1] %vm940, 0.0
      %976 = vst.msk [vmem:[#allocation2 + $0x1a9] sm:$0x1] %vm940, 0.0
      %p977 = scmp.eq.s32.totalorder %s23, 0
      // Predicated region
      $region49: #{res_block_forward.2} parent=47 // pred_check
        %p978 = pneg %p977
      $region50: #{res_block_forward.2} parent=47 // pred_check_branch
        %980 = sbr.rel (%p978) target = $region52
      $region51: #{res_block_forward.2} parent=47 // pred_region
        %981 = vst.msk [vmem:[#allocation2] sm:$0xff] %vm907, 0.0
        %982 = vst.msk [vmem:[#allocation2 + $0x8] sm:$0xff] %vm907, 0.0
        %vm983 = vcmask 58368
        %984 = vst.msk [vmem:[#allocation2 + $0x10] sm:$0x3] %vm983, 0.0
      $region52: #{res_block_forward.2} parent=47 // pred_fallthru
        _
      %p985 = scmp.gt.s32.totalorder %s23, 0
      // Predicated region
      $region53: #{res_block_forward.2} parent=47 // pred_check
        %p986 = pneg %p985
      $region54: #{res_block_forward.2} parent=47 // pred_check_branch
        %988 = sbr.rel (%p986) target = $region56
      $region55: #{res_block_forward.2} parent=47 // pred_region
        %v989 = vld [vmem:[%s414] sm:$0xff]
        %v990 = vld [vmem:[%s414 + $0x8] sm:$0xff]
        %v992 = vsel %vm488, %v989, 0
        %v995 = vsel %vm488, %v990, 0
        %997 = vmatprep.subr.mxu0 0.0
        %998 = vmatpush1.msra.mxu0 %v447
        %999 = vmatprep.subr.mxu0 0.0
        %1000 = vmatpush1.msra.mxu0 %v448
        %1001 = vmatprep.subr.mxu0 0.0
        %1002 = vmatpush1.msra.mxu0 0.0
        %1003 = vmatprep.subr.mxu0 0.0
        %1004 = vmatpush1.msra.mxu0 0.0
        %1005 = vmatprep.subr.mxu0 0.0
        %1006 = vmatpush1.msra.mxu0 0.0
        %1007 = vmatprep.subr.mxu0 0.0
        %1008 = vmatpush1.msra.mxu0 0.0
        %1009 = vmatprep.subr.mxu0 0.0
        %1010 = vmatpush1.msra.mxu0 0.0
        %1011 = vmatprep.subr.mxu0 0.0
        %1012 = vmatpush1.msra.mxu0 0.0
        %1013 = vmatprep.subr.mxu0 0.0
        %1014 = vmatpush1.msra.mxu0 0.0
        %1015 = vmatprep.subr.mxu0 0.0
        %1016 = vmatpush1.msra.mxu0 0.0
        %1017 = vmatprep.subr.mxu0 0.0
        %1018 = vmatpush1.msra.mxu0 0.0
        %1019 = vmatprep.subr.mxu0 0.0
        %1020 = vmatpush1.msra.mxu0 0.0
        %1021 = vmatprep.subr.mxu0 0.0
        %1022 = vmatpush1.msra.mxu0 0.0
        %1023 = vmatprep.subr.mxu0 0.0
        %1024 = vmatpush1.msra.mxu0 0.0
        %1025 = vmatprep.subr.mxu0 0.0
        %1026 = vmatpush1.msra.mxu0 0.0
        %1027 = vmatprep.subr.mxu0 0.0
        %1028 = vmatpush1.msra.mxu0 0.0
        %1029 = vmatprep.subr.mxu0 0.0
        %1030 = vmatpush1.msra.mxu0 0.0
        %1031 = vmatprep.subr.mxu0 0.0
        %1032 = vmatpush1.msra.mxu0 0.0
        %1033 = vmatprep.subr.mxu0 0.0
        %1034 = vmatpush1.msra.mxu0 0.0
        %1035 = vmatprep.subr.mxu0 0.0
        %1036 = vmatpush1.msra.mxu0 0.0
        %1037 = vmatprep.subr.mxu0 0.0
        %1038 = vmatpush1.msra.mxu0 0.0
        %1039 = vmatprep.subr.mxu0 0.0
        %1040 = vmatpush1.msra.mxu0 0.0
        %1041 = vmatprep.subr.mxu0 0.0
        %1042 = vmatpush1.msra.mxu0 0.0
        %1043 = vmatprep.subr.mxu0 0.0
        %1044 = vmatpush1.msra.mxu0 0.0
        %1045 = vmatprep.subr.mxu0 0.0
        %1046 = vmatpush1.msra.mxu0 0.0
        %1047 = vmatprep.subr.mxu0 0.0
        %1048 = vmatpush1.msra.mxu0 0.0
        %1049 = vmatprep.subr.mxu0 0.0
        %1050 = vmatpush1.msra.mxu0 0.0
        %1051 = vmatprep.subr.mxu0 0.0
        %1052 = vmatpush1.msra.mxu0 0.0
        %1053 = vmatprep.subr.mxu0 0.0
        %1054 = vmatpush1.msra.mxu0 0.0
        %1055 = vmatprep.subr.mxu0 0.0
        %1056 = vmatpush1.msra.mxu0 0.0
        %1057 = vmatprep.subr.mxu0 0.0
        %1058 = vmatpush1.msra.mxu0 0.0
        %1059 = vmatprep.subr.mxu0 0.0
        %1060 = vmatpush1.msra.mxu0 0.0
        %1061 = vmatprep.mubr.f32.mxu0 0.0
        %1062 = vmatmul.mubr.f32.gmra.mrb[0].mxu0 %v992
        %v1063 = vpop.f32.mrb[0].mxu0
        %v1064 = vadd.f32 %v486, %v1063
        %v1065 = vpop.f32.mrb[0].mxu0
        %1066 = vmatprep.mubr.f32.mxu0 0.0
        %1067 = vmatmul.mubr.f32.gmra.mrb[0].mxu0 %v995
        %v1068 = vpop.f32.mrb[0].mxu0
        %v1069 = vadd.f32 %v486, %v1068
        %v1070 = vpop.f32.mrb[0].mxu0
        %1071 = vdwg.mxu0
        %vm1072 = vcmp.gt.f32.partialorder %v1064, 0.0
        %vm1073 = vcmp.gt.f32.partialorder %v1069, 0.0
        %v1074 = vmul.f32 %v1064, 0.1
        %v1075 = vmul.f32 %v1069, 0.1
        %v1076 = vsel %vm1072, %v1064, %v1074
        %v1077 = vsel %vm1073, %v1069, %v1075
        %1078 = vst.msk [vmem:[#allocation2 + $0x1] sm:$0xff] %vm907, %v1076
        %1079 = vst.msk [vmem:[#allocation2 + $0x9] sm:$0xff] %vm907, %v1077
      $region56: #{res_block_forward.2} parent=47 // pred_fallthru
        _
      // Predicated region
      $region57: #{res_block_forward.2} parent=47 // pred_check
        %p1080 = pneg %p977
      $region58: #{res_block_forward.2} parent=47 // pred_check_branch
        %1082 = sbr.rel (%p1080) target = $region60
      $region59: #{res_block_forward.2} parent=47 // pred_region
        %s1083 = scalar_lea.vmem [#allocation2], 408
        %1084 = vst.msk [vmem:[%s1083] sm:$0xff] %vm907, 0.0
        %1085 = vst.msk [vmem:[%s1083 + $0x8] sm:$0xff] %vm907, 0.0
        %vm1086 = vcmask 58368
        %1087 = vst.msk [vmem:[%s1083 + $0x10] sm:$0x3] %vm1086, 0.0
      $region60: #{res_block_forward.2} parent=47 // pred_fallthru
        _
      %p1088 = scmp.lt.s32.totalorder %s23, 0
      // Predicated region
      $region61: #{res_block_forward.2} parent=47 // pred_check
        %p1089 = pneg %p1088
      $region62: #{res_block_forward.2} parent=47 // pred_check_branch
        %1091 = sbr.rel (%p1089) target = $region64
      $region63: #{res_block_forward.2} parent=47 // pred_region
        %v1092 = vld [vmem:[%s431] sm:$0xff]
        %v1093 = vld [vmem:[%s431 + $0x8] sm:$0xff]
        %v1095 = vsel %vm488, %v1092, 0
        %v1098 = vsel %vm488, %v1093, 0
        %1100 = vmatprep.subr.mxu0 0.0
        %1101 = vmatpush1.msra.mxu0 %v447
        %1102 = vmatprep.subr.mxu0 0.0
        %1103 = vmatpush1.msra.mxu0 %v448
        %1104 = vmatprep.subr.mxu0 0.0
        %1105 = vmatpush1.msra.mxu0 0.0
        %1106 = vmatprep.subr.mxu0 0.0
        %1107 = vmatpush1.msra.mxu0 0.0
        %1108 = vmatprep.subr.mxu0 0.0
        %1109 = vmatpush1.msra.mxu0 0.0
        %1110 = vmatprep.subr.mxu0 0.0
        %1111 = vmatpush1.msra.mxu0 0.0
        %1112 = vmatprep.subr.mxu0 0.0
        %1113 = vmatpush1.msra.mxu0 0.0
        %1114 = vmatprep.subr.mxu0 0.0
        %1115 = vmatpush1.msra.mxu0 0.0
        %1116 = vmatprep.subr.mxu0 0.0
        %1117 = vmatpush1.msra.mxu0 0.0
        %1118 = vmatprep.subr.mxu0 0.0
        %1119 = vmatpush1.msra.mxu0 0.0
        %1120 = vmatprep.subr.mxu0 0.0
        %1121 = vmatpush1.msra.mxu0 0.0
        %1122 = vmatprep.subr.mxu0 0.0
        %1123 = vmatpush1.msra.mxu0 0.0
        %1124 = vmatprep.subr.mxu0 0.0
        %1125 = vmatpush1.msra.mxu0 0.0
        %1126 = vmatprep.subr.mxu0 0.0
        %1127 = vmatpush1.msra.mxu0 0.0
        %1128 = vmatprep.subr.mxu0 0.0
        %1129 = vmatpush1.msra.mxu0 0.0
        %1130 = vmatprep.subr.mxu0 0.0
        %1131 = vmatpush1.msra.mxu0 0.0
        %1132 = vmatprep.subr.mxu0 0.0
        %1133 = vmatpush1.msra.mxu0 0.0
        %1134 = vmatprep.subr.mxu0 0.0
        %1135 = vmatpush1.msra.mxu0 0.0
        %1136 = vmatprep.subr.mxu0 0.0
        %1137 = vmatpush1.msra.mxu0 0.0
        %1138 = vmatprep.subr.mxu0 0.0
        %1139 = vmatpush1.msra.mxu0 0.0
        %1140 = vmatprep.subr.mxu0 0.0
        %1141 = vmatpush1.msra.mxu0 0.0
        %1142 = vmatprep.subr.mxu0 0.0
        %1143 = vmatpush1.msra.mxu0 0.0
        %1144 = vmatprep.subr.mxu0 0.0
        %1145 = vmatpush1.msra.mxu0 0.0
        %1146 = vmatprep.subr.mxu0 0.0
        %1147 = vmatpush1.msra.mxu0 0.0
        %1148 = vmatprep.subr.mxu0 0.0
        %1149 = vmatpush1.msra.mxu0 0.0
        %1150 = vmatprep.subr.mxu0 0.0
        %1151 = vmatpush1.msra.mxu0 0.0
        %1152 = vmatprep.subr.mxu0 0.0
        %1153 = vmatpush1.msra.mxu0 0.0
        %1154 = vmatprep.subr.mxu0 0.0
        %1155 = vmatpush1.msra.mxu0 0.0
        %1156 = vmatprep.subr.mxu0 0.0
        %1157 = vmatpush1.msra.mxu0 0.0
        %1158 = vmatprep.subr.mxu0 0.0
        %1159 = vmatpush1.msra.mxu0 0.0
        %1160 = vmatprep.subr.mxu0 0.0
        %1161 = vmatpush1.msra.mxu0 0.0
        %1162 = vmatprep.subr.mxu0 0.0
        %1163 = vmatpush1.msra.mxu0 0.0
        %1164 = vmatprep.mubr.f32.mxu0 0.0
        %1165 = vmatmul.mubr.f32.gmra.mrb[0].mxu0 %v1095
        %v1166 = vpop.f32.mrb[0].mxu0
        %v1167 = vadd.f32 %v486, %v1166
        %v1168 = vpop.f32.mrb[0].mxu0
        %1169 = vmatprep.mubr.f32.mxu0 0.0
        %1170 = vmatmul.mubr.f32.gmra.mrb[0].mxu0 %v1098
        %v1171 = vpop.f32.mrb[0].mxu0
        %v1172 = vadd.f32 %v486, %v1171
        %v1173 = vpop.f32.mrb[0].mxu0
        %1174 = vdwg.mxu0
        %vm1175 = vcmp.gt.f32.partialorder %v1167, 0.0
        %vm1176 = vcmp.gt.f32.partialorder %v1172, 0.0
        %v1177 = vmul.f32 %v1167, 0.1
        %v1178 = vmul.f32 %v1172, 0.1
        %v1179 = vsel %vm1175, %v1167, %v1177
        %v1180 = vsel %vm1176, %v1172, %v1178
        %s1181 = scalar_lea.vmem [#allocation2], 408
        %1182 = vst.msk [vmem:[%s1181 + $0x1] sm:$0xff] %vm907, %v1179
        %1183 = vst.msk [vmem:[%s1181 + $0x9] sm:$0xff] %vm907, %v1180
      $region64: #{res_block_forward.2} parent=47 // pred_fallthru
        _
      %v1184 = vld [vmem:[#allocation2] sm:$0xff]
      %v1185 = vld [vmem:[#allocation2 + $0x8] sm:$0xff]
      %v1186 = vld [vmem:[#allocation2 + $0x18] sm:$0xff]
      %v1187 = vld [vmem:[#allocation2 + $0x20] sm:$0xff]
      %v1188 = vld [vmem:[#allocation2 + $0x30] sm:$0xff]
      %v1189 = vld [vmem:[#allocation2 + $0x38] sm:$0xff]
      %v1190 = vld [vmem:[#allocation2 + $0x48] sm:$0xff]
      %v1191 = vld [vmem:[#allocation2 + $0x50] sm:$0xff]
      %v1192 = vld [vmem:[#allocation2 + $0x60] sm:$0xff]
      %v1193 = vld [vmem:[#allocation2 + $0x68] sm:$0xff]
      %v1194 = vld [vmem:[#allocation2 + $0x78] sm:$0xff]
      %v1195 = vld [vmem:[#allocation2 + $0x80] sm:$0xff]
      %v1196 = vld [vmem:[#allocation2 + $0x90] sm:$0xff]
      %v1197 = vld [vmem:[#allocation2 + $0x98] sm:$0xff]
      %v1198 = vld [vmem:[#allocation2 + $0xa8] sm:$0xff]
      %v1199 = vld [vmem:[#allocation2 + $0xb0] sm:$0xff]
      %v1200 = vld [vmem:[#allocation2 + $0xc0] sm:$0xff]
      %v1201 = vld [vmem:[#allocation2 + $0xc8] sm:$0xff]
      %v1202 = vld [vmem:[#allocation2 + $0xd8] sm:$0xff]
      %v1203 = vld [vmem:[#allocation2 + $0xe0] sm:$0xff]
      %v1204 = vld [vmem:[#allocation2 + $0xf0] sm:$0xff]
      %v1205 = vld [vmem:[#allocation2 + $0xf8] sm:$0xff]
      %v1206 = vld [vmem:[#allocation2 + $0x108] sm:$0xff]
      %v1207 = vld [vmem:[#allocation2 + $0x110] sm:$0xff]
      %v1208 = vld [vmem:[#allocation2 + $0x120] sm:$0xff]
      %v1209 = vld [vmem:[#allocation2 + $0x128] sm:$0xff]
      %v1210 = vld [vmem:[#allocation2 + $0x138] sm:$0xff]
      %v1211 = vld [vmem:[#allocation2 + $0x140] sm:$0xff]
      %v1212 = vld [vmem:[#allocation2 + $0x150] sm:$0xff]
      %v1213 = vld [vmem:[#allocation2 + $0x158] sm:$0xff]
      %v1214 = vld [vmem:[#allocation2 + $0x168] sm:$0xff]
      %v1215 = vld [vmem:[#allocation2 + $0x170] sm:$0xff]
      %v1216 = vld [vmem:[%s5] sm:$0xff]
      %v1217 = vld [vmem:[#allocation2 + $0x1] sm:$0xff]
      %v1218 = vld [vmem:[#allocation2 + $0x9] sm:$0xff]
      %v1219 = vld [vmem:[#allocation2 + $0x19] sm:$0xff]
      %v1220 = vld [vmem:[#allocation2 + $0x21] sm:$0xff]
      %v1221 = vld [vmem:[#allocation2 + $0x31] sm:$0xff]
      %v1222 = vld [vmem:[#allocation2 + $0x39] sm:$0xff]
      %v1223 = vld [vmem:[#allocation2 + $0x49] sm:$0xff]
      %v1224 = vld [vmem:[#allocation2 + $0x51] sm:$0xff]
      %v1225 = vld [vmem:[#allocation2 + $0x61] sm:$0xff]
      %v1226 = vld [vmem:[#allocation2 + $0x69] sm:$0xff]
      %v1227 = vld [vmem:[#allocation2 + $0x79] sm:$0xff]
      %v1228 = vld [vmem:[#allocation2 + $0x81] sm:$0xff]
      %v1229 = vld [vmem:[#allocation2 + $0x91] sm:$0xff]
      %v1230 = vld [vmem:[#allocation2 + $0x99] sm:$0xff]
      %v1231 = vld [vmem:[#allocation2 + $0xa9] sm:$0xff]
      %v1232 = vld [vmem:[#allocation2 + $0xb1] sm:$0xff]
      %v1233 = vld [vmem:[#allocation2 + $0xc1] sm:$0xff]
      %v1234 = vld [vmem:[#allocation2 + $0xc9] sm:$0xff]
      %v1235 = vld [vmem:[#allocation2 + $0xd9] sm:$0xff]
      %v1236 = vld [vmem:[#allocation2 + $0xe1] sm:$0xff]
      %v1237 = vld [vmem:[#allocation2 + $0xf1] sm:$0xff]
      %v1238 = vld [vmem:[#allocation2 + $0xf9] sm:$0xff]
      %v1239 = vld [vmem:[#allocation2 + $0x109] sm:$0xff]
      %v1240 = vld [vmem:[#allocation2 + $0x111] sm:$0xff]
      %v1241 = vld [vmem:[#allocation2 + $0x121] sm:$0xff]
      %v1242 = vld [vmem:[#allocation2 + $0x129] sm:$0xff]
      %v1243 = vld [vmem:[#allocation2 + $0x139] sm:$0xff]
      %v1244 = vld [vmem:[#allocation2 + $0x141] sm:$0xff]
      %v1245 = vld [vmem:[#allocation2 + $0x151] sm:$0xff]
      %v1246 = vld [vmem:[#allocation2 + $0x159] sm:$0xff]
      %v1247 = vld [vmem:[#allocation2 + $0x169] sm:$0xff]
      %v1248 = vld [vmem:[#allocation2 + $0x171] sm:$0xff]
      %s1249 = scalar_lea.vmem %s5, 8
      %v1250 = vld [vmem:[%s1249] sm:$0xff]
      %v1252 = vsel %vm907, %v1217, 0
      %v1255 = vsel %vm907, %v1218, 0
      %v1258 = vsel %vm907, %v1219, 0
      %v1261 = vsel %vm907, %v1220, 0
      %v1264 = vsel %vm907, %v1221, 0
      %v1267 = vsel %vm907, %v1222, 0
      %v1270 = vsel %vm907, %v1223, 0
      %v1273 = vsel %vm907, %v1224, 0
      %v1276 = vsel %vm907, %v1225, 0
      %v1279 = vsel %vm907, %v1226, 0
      %v1282 = vsel %vm907, %v1227, 0
      %v1285 = vsel %vm907, %v1228, 0
      %v1288 = vsel %vm907, %v1229, 0
      %v1291 = vsel %vm907, %v1230, 0
      %v1294 = vsel %vm907, %v1231, 0
      %v1297 = vsel %vm907, %v1232, 0
      %v1300 = vsel %vm907, %v1233, 0
      %v1303 = vsel %vm907, %v1234, 0
      %v1306 = vsel %vm907, %v1235, 0
      %v1309 = vsel %vm907, %v1236, 0
      %v1312 = vsel %vm907, %v1237, 0
      %v1315 = vsel %vm907, %v1238, 0
      %v1318 = vsel %vm907, %v1239, 0
      %v1321 = vsel %vm907, %v1240, 0
      %v1324 = vsel %vm907, %v1241, 0
      %v1327 = vsel %vm907, %v1242, 0
      %v1330 = vsel %vm907, %v1243, 0
      %v1333 = vsel %vm907, %v1244, 0
      %v1336 = vsel %vm907, %v1245, 0
      %v1339 = vsel %vm907, %v1246, 0
      %v1342 = vsel %vm907, %v1247, 0
      %v1345 = vsel %vm907, %v1248, 0
      %1347 = vmatprep.subr.mxu0 0.0
      %1348 = vmatpush1.msra.mxu0 %v1250
      %1349 = vmatprep.subr.mxu0 0.0
      %1350 = vmatpush1.msra.mxu0 0.0
      %1351 = vmatprep.subr.mxu0 0.0
      %1352 = vmatpush1.msra.mxu0 0.0
      %1353 = vmatprep.subr.mxu0 0.0
      %1354 = vmatpush1.msra.mxu0 0.0
      %1355 = vmatprep.subr.mxu0 0.0
      %1356 = vmatpush1.msra.mxu0 0.0
      %1357 = vmatprep.subr.mxu0 0.0
      %1358 = vmatpush1.msra.mxu0 0.0
      %1359 = vmatprep.subr.mxu0 0.0
      %1360 = vmatpush1.msra.mxu0 0.0
      %1361 = vmatprep.subr.mxu0 0.0
      %1362 = vmatpush1.msra.mxu0 0.0
      %1363 = vmatprep.subr.mxu0 0.0
      %1364 = vmatpush1.msra.mxu0 0.0
      %1365 = vmatprep.subr.mxu0 0.0
      %1366 = vmatpush1.msra.mxu0 0.0
      %1367 = vmatprep.subr.mxu0 0.0
      %1368 = vmatpush1.msra.mxu0 0.0
      %1369 = vmatprep.subr.mxu0 0.0
      %1370 = vmatpush1.msra.mxu0 0.0
      %1371 = vmatprep.subr.mxu0 0.0
      %1372 = vmatpush1.msra.mxu0 0.0
      %1373 = vmatprep.subr.mxu0 0.0
      %1374 = vmatpush1.msra.mxu0 0.0
      %1375 = vmatprep.subr.mxu0 0.0
      %1376 = vmatpush1.msra.mxu0 0.0
      %1377 = vmatprep.subr.mxu0 0.0
      %1378 = vmatpush1.msra.mxu0 0.0
      %1379 = vmatprep.subr.mxu0 0.0
      %1380 = vmatpush1.msra.mxu0 0.0
      %1381 = vmatprep.subr.mxu0 0.0
      %1382 = vmatpush1.msra.mxu0 0.0
      %1383 = vmatprep.subr.mxu0 0.0
      %1384 = vmatpush1.msra.mxu0 0.0
      %1385 = vmatprep.subr.mxu0 0.0
      %1386 = vmatpush1.msra.mxu0 0.0
      %1387 = vmatprep.subr.mxu0 0.0
      %1388 = vmatpush1.msra.mxu0 0.0
      %1389 = vmatprep.subr.mxu0 0.0
      %1390 = vmatpush1.msra.mxu0 0.0
      %1391 = vmatprep.subr.mxu0 0.0
      %1392 = vmatpush1.msra.mxu0 0.0
      %1393 = vmatprep.subr.mxu0 0.0
      %1394 = vmatpush1.msra.mxu0 0.0
      %1395 = vmatprep.subr.mxu0 0.0
      %1396 = vmatpush1.msra.mxu0 0.0
      %1397 = vmatprep.subr.mxu0 0.0
      %1398 = vmatpush1.msra.mxu0 0.0
      %1399 = vmatprep.subr.mxu0 0.0
      %1400 = vmatpush1.msra.mxu0 0.0
      %1401 = vmatprep.subr.mxu0 0.0
      %1402 = vmatpush1.msra.mxu0 0.0
      %1403 = vmatprep.subr.mxu0 0.0
      %1404 = vmatpush1.msra.mxu0 0.0
      %1405 = vmatprep.subr.mxu0 0.0
      %1406 = vmatpush1.msra.mxu0 0.0
      %1407 = vmatprep.subr.mxu0 0.0
      %1408 = vmatpush1.msra.mxu0 0.0
      %1409 = vmatprep.subr.mxu0 0.0
      %1410 = vmatpush1.msra.mxu0 0.0
      %1411 = vmatprep.mubr.f32.mxu0 0.0
      %1412 = vmatmul.mubr.f32.gmra.mrb[0].mxu0 %v1252
      %v1413 = vpop.f32.mrb[0].mxu0
      %v1414 = vadd.f32 0.0, %v1413
      %v1415 = vpop.f32.mrb[0].mxu0
      %1416 = vmatprep.mubr.f32.mxu0 0.0
      %1417 = vmatmul.mubr.f32.gmra.mrb[0].mxu0 %v1255
      %v1418 = vpop.f32.mrb[0].mxu0
      %v1419 = vadd.f32 0.0, %v1418
      %v1420 = vpop.f32.mrb[0].mxu0
      %1421 = vmatprep.mubr.f32.mxu0 0.0
      %1422 = vmatmul.mubr.f32.gmra.mrb[0].mxu0 %v1258
      %v1423 = vpop.f32.mrb[0].mxu0
      %v1424 = vadd.f32 0.0, %v1423
      %v1425 = vpop.f32.mrb[0].mxu0
      %1426 = vmatprep.mubr.f32.mxu0 0.0
      %1427 = vmatmul.mubr.f32.gmra.mrb[0].mxu0 %v1261
      %v1428 = vpop.f32.mrb[0].mxu0
      %v1429 = vadd.f32 0.0, %v1428
      %v1430 = vpop.f32.mrb[0].mxu0
      %1431 = vmatprep.mubr.f32.mxu0 0.0
      %1432 = vmatmul.mubr.f32.gmra.mrb[0].mxu0 %v1264
      %v1433 = vpop.f32.mrb[0].mxu0
      %v1434 = vadd.f32 0.0, %v1433
      %v1435 = vpop.f32.mrb[0].mxu0
      %1436 = vmatprep.mubr.f32.mxu0 0.0
      %1437 = vmatmul.mubr.f32.gmra.mrb[0].mxu0 %v1267
      %v1438 = vpop.f32.mrb[0].mxu0
      %v1439 = vadd.f32 0.0, %v1438
      %v1440 = vpop.f32.mrb[0].mxu0
      %1441 = vmatprep.mubr.f32.mxu0 0.0
      %1442 = vmatmul.mubr.f32.gmra.mrb[0].mxu0 %v1270
      %v1443 = vpop.f32.mrb[0].mxu0
      %v1444 = vadd.f32 0.0, %v1443
      %v1445 = vpop.f32.mrb[0].mxu0
      %1446 = vmatprep.mubr.f32.mxu0 0.0
      %1447 = vmatmul.mubr.f32.gmra.mrb[0].mxu0 %v1273
      %v1448 = vpop.f32.mrb[0].mxu0
      %v1449 = vadd.f32 0.0, %v1448
      %v1450 = vpop.f32.mrb[0].mxu0
      %1451 = vmatprep.mubr.f32.mxu0 0.0
      %1452 = vmatmul.mubr.f32.gmra.mrb[0].mxu0 %v1276
      %v1453 = vpop.f32.mrb[0].mxu0
      %v1454 = vadd.f32 0.0, %v1453
      %v1455 = vpop.f32.mrb[0].mxu0
      %1456 = vmatprep.mubr.f32.mxu0 0.0
      %1457 = vmatmul.mubr.f32.gmra.mrb[0].mxu0 %v1279
      %v1458 = vpop.f32.mrb[0].mxu0
      %v1459 = vadd.f32 0.0, %v1458
      %v1460 = vpop.f32.mrb[0].mxu0
      %1461 = vmatprep.mubr.f32.mxu0 0.0
      %1462 = vmatmul.mubr.f32.gmra.mrb[0].mxu0 %v1282
      %v1463 = vpop.f32.mrb[0].mxu0
      %v1464 = vadd.f32 0.0, %v1463
      %v1465 = vpop.f32.mrb[0].mxu0
      %1466 = vmatprep.mubr.f32.mxu0 0.0
      %1467 = vmatmul.mubr.f32.gmra.mrb[0].mxu0 %v1285
      %v1468 = vpop.f32.mrb[0].mxu0
      %v1469 = vadd.f32 0.0, %v1468
      %v1470 = vpop.f32.mrb[0].mxu0
      %1471 = vmatprep.mubr.f32.mxu0 0.0
      %1472 = vmatmul.mubr.f32.gmra.mrb[0].mxu0 %v1288
      %v1473 = vpop.f32.mrb[0].mxu0
      %v1474 = vadd.f32 0.0, %v1473
      %v1475 = vpop.f32.mrb[0].mxu0
      %1476 = vmatprep.mubr.f32.mxu0 0.0
      %1477 = vmatmul.mubr.f32.gmra.mrb[0].mxu0 %v1291
      %v1478 = vpop.f32.mrb[0].mxu0
      %v1479 = vadd.f32 0.0, %v1478
      %v1480 = vpop.f32.mrb[0].mxu0
      %1481 = vmatprep.mubr.f32.mxu0 0.0
      %1482 = vmatmul.mubr.f32.gmra.mrb[0].mxu0 %v1294
      %v1483 = vpop.f32.mrb[0].mxu0
      %v1484 = vadd.f32 0.0, %v1483
      %v1485 = vpop.f32.mrb[0].mxu0
      %1486 = vmatprep.mubr.f32.mxu0 0.0
      %1487 = vmatmul.mubr.f32.gmra.mrb[0].mxu0 %v1297
      %v1488 = vpop.f32.mrb[0].mxu0
      %v1489 = vadd.f32 0.0, %v1488
      %v1490 = vpop.f32.mrb[0].mxu0
      %1491 = vmatprep.mubr.f32.mxu0 0.0
      %1492 = vmatmul.mubr.f32.gmra.mrb[0].mxu0 %v1300
      %v1493 = vpop.f32.mrb[0].mxu0
      %v1494 = vadd.f32 0.0, %v1493
      %v1495 = vpop.f32.mrb[0].mxu0
      %1496 = vmatprep.mubr.f32.mxu0 0.0
      %1497 = vmatmul.mubr.f32.gmra.mrb[0].mxu0 %v1303
      %v1498 = vpop.f32.mrb[0].mxu0
      %v1499 = vadd.f32 0.0, %v1498
      %v1500 = vpop.f32.mrb[0].mxu0
      %1501 = vmatprep.mubr.f32.mxu0 0.0
      %1502 = vmatmul.mubr.f32.gmra.mrb[0].mxu0 %v1306
      %v1503 = vpop.f32.mrb[0].mxu0
      %v1504 = vadd.f32 0.0, %v1503
      %v1505 = vpop.f32.mrb[0].mxu0
      %1506 = vmatprep.mubr.f32.mxu0 0.0
      %1507 = vmatmul.mubr.f32.gmra.mrb[0].mxu0 %v1309
      %v1508 = vpop.f32.mrb[0].mxu0
      %v1509 = vadd.f32 0.0, %v1508
      %v1510 = vpop.f32.mrb[0].mxu0
      %1511 = vmatprep.mubr.f32.mxu0 0.0
      %1512 = vmatmul.mubr.f32.gmra.mrb[0].mxu0 %v1312
      %v1513 = vpop.f32.mrb[0].mxu0
      %v1514 = vadd.f32 0.0, %v1513
      %v1515 = vpop.f32.mrb[0].mxu0
      %1516 = vmatprep.mubr.f32.mxu0 0.0
      %1517 = vmatmul.mubr.f32.gmra.mrb[0].mxu0 %v1315
      %v1518 = vpop.f32.mrb[0].mxu0
      %v1519 = vadd.f32 0.0, %v1518
      %v1520 = vpop.f32.mrb[0].mxu0
      %1521 = vmatprep.mubr.f32.mxu0 0.0
      %1522 = vmatmul.mubr.f32.gmra.mrb[0].mxu0 %v1318
      %v1523 = vpop.f32.mrb[0].mxu0
      %v1524 = vadd.f32 0.0, %v1523
      %v1525 = vpop.f32.mrb[0].mxu0
      %1526 = vmatprep.mubr.f32.mxu0 0.0
      %1527 = vmatmul.mubr.f32.gmra.mrb[0].mxu0 %v1321
      %v1528 = vpop.f32.mrb[0].mxu0
      %v1529 = vadd.f32 0.0, %v1528
      %v1530 = vpop.f32.mrb[0].mxu0
      %1531 = vmatprep.mubr.f32.mxu0 0.0
      %1532 = vmatmul.mubr.f32.gmra.mrb[0].mxu0 %v1324
      %v1533 = vpop.f32.mrb[0].mxu0
      %v1534 = vadd.f32 0.0, %v1533
      %v1535 = vpop.f32.mrb[0].mxu0
      %1536 = vmatprep.mubr.f32.mxu0 0.0
      %1537 = vmatmul.mubr.f32.gmra.mrb[0].mxu0 %v1327
      %v1538 = vpop.f32.mrb[0].mxu0
      %v1539 = vadd.f32 0.0, %v1538
      %v1540 = vpop.f32.mrb[0].mxu0
      %1541 = vmatprep.mubr.f32.mxu0 0.0
      %1542 = vmatmul.mubr.f32.gmra.mrb[0].mxu0 %v1330
      %v1543 = vpop.f32.mrb[0].mxu0
      %v1544 = vadd.f32 0.0, %v1543
      %v1545 = vpop.f32.mrb[0].mxu0
      %1546 = vmatprep.mubr.f32.mxu0 0.0
      %1547 = vmatmul.mubr.f32.gmra.mrb[0].mxu0 %v1333
      %v1548 = vpop.f32.mrb[0].mxu0
      %v1549 = vadd.f32 0.0, %v1548
      %v1550 = vpop.f32.mrb[0].mxu0
      %1551 = vmatprep.mubr.f32.mxu0 0.0
      %1552 = vmatmul.mubr.f32.gmra.mrb[0].mxu0 %v1336
      %v1553 = vpop.f32.mrb[0].mxu0
      %v1554 = vadd.f32 0.0, %v1553
      %v1555 = vpop.f32.mrb[0].mxu0
      %1556 = vmatprep.mubr.f32.mxu0 0.0
      %1557 = vmatmul.mubr.f32.gmra.mrb[0].mxu0 %v1339
      %v1558 = vpop.f32.mrb[0].mxu0
      %v1559 = vadd.f32 0.0, %v1558
      %v1560 = vpop.f32.mrb[0].mxu0
      %1561 = vmatprep.mubr.f32.mxu0 0.0
      %1562 = vmatmul.mubr.f32.gmra.mrb[0].mxu0 %v1342
      %v1563 = vpop.f32.mrb[0].mxu0
      %v1564 = vadd.f32 0.0, %v1563
      %v1565 = vpop.f32.mrb[0].mxu0
      %1566 = vmatprep.mubr.f32.mxu0 0.0
      %1567 = vmatmul.mubr.f32.gmra.mrb[0].mxu0 %v1345
      %v1568 = vpop.f32.mrb[0].mxu0
      %v1569 = vadd.f32 0.0, %v1568
      %v1570 = vpop.f32.mrb[0].mxu0
      %1571 = vdwg.mxu0
      %v1573 = vsel %vm907, %v1184, 0
      %v1576 = vsel %vm907, %v1185, 0
      %v1579 = vsel %vm907, %v1186, 0
      %v1582 = vsel %vm907, %v1187, 0
      %v1585 = vsel %vm907, %v1188, 0
      %v1588 = vsel %vm907, %v1189, 0
      %v1591 = vsel %vm907, %v1190, 0
      %v1594 = vsel %vm907, %v1191, 0
      %v1597 = vsel %vm907, %v1192, 0
      %v1600 = vsel %vm907, %v1193, 0
      %v1603 = vsel %vm907, %v1194, 0
      %v1606 = vsel %vm907, %v1195, 0
      %v1609 = vsel %vm907, %v1196, 0
      %v1612 = vsel %vm907, %v1197, 0
      %v1615 = vsel %vm907, %v1198, 0
      %v1618 = vsel %vm907, %v1199, 0
      %v1621 = vsel %vm907, %v1200, 0
      %v1624 = vsel %vm907, %v1201, 0
      %v1627 = vsel %vm907, %v1202, 0
      %v1630 = vsel %vm907, %v1203, 0
      %v1633 = vsel %vm907, %v1204, 0
      %v1636 = vsel %vm907, %v1205, 0
      %v1639 = vsel %vm907, %v1206, 0
      %v1642 = vsel %vm907, %v1207, 0
      %v1645 = vsel %vm907, %v1208, 0
      %v1648 = vsel %vm907, %v1209, 0
      %v1651 = vsel %vm907, %v1210, 0
      %v1654 = vsel %vm907, %v1211, 0
      %v1657 = vsel %vm907, %v1212, 0
      %v1660 = vsel %vm907, %v1213, 0
      %v1663 = vsel %vm907, %v1214, 0
      %v1666 = vsel %vm907, %v1215, 0
      %1668 = vmatprep.subr.mxu0 0.0
      %1669 = vmatpush1.msra.mxu0 %v1216
      %1670 = vmatprep.subr.mxu0 0.0
      %1671 = vmatpush1.msra.mxu0 0.0
      %1672 = vmatprep.subr.mxu0 0.0
      %1673 = vmatpush1.msra.mxu0 0.0
      %1674 = vmatprep.subr.mxu0 0.0
      %1675 = vmatpush1.msra.mxu0 0.0
      %1676 = vmatprep.subr.mxu0 0.0
      %1677 = vmatpush1.msra.mxu0 0.0
      %1678 = vmatprep.subr.mxu0 0.0
      %1679 = vmatpush1.msra.mxu0 0.0
      %1680 = vmatprep.subr.mxu0 0.0
      %1681 = vmatpush1.msra.mxu0 0.0
      %1682 = vmatprep.subr.mxu0 0.0
      %1683 = vmatpush1.msra.mxu0 0.0
      %1684 = vmatprep.subr.mxu0 0.0
      %1685 = vmatpush1.msra.mxu0 0.0
      %1686 = vmatprep.subr.mxu0 0.0
      %1687 = vmatpush1.msra.mxu0 0.0
      %1688 = vmatprep.subr.mxu0 0.0
      %1689 = vmatpush1.msra.mxu0 0.0
      %1690 = vmatprep.subr.mxu0 0.0
      %1691 = vmatpush1.msra.mxu0 0.0
      %1692 = vmatprep.subr.mxu0 0.0
      %1693 = vmatpush1.msra.mxu0 0.0
      %1694 = vmatprep.subr.mxu0 0.0
      %1695 = vmatpush1.msra.mxu0 0.0
      %1696 = vmatprep.subr.mxu0 0.0
      %1697 = vmatpush1.msra.mxu0 0.0
      %1698 = vmatprep.subr.mxu0 0.0
      %1699 = vmatpush1.msra.mxu0 0.0
      %1700 = vmatprep.subr.mxu0 0.0
      %1701 = vmatpush1.msra.mxu0 0.0
      %1702 = vmatprep.subr.mxu0 0.0
      %1703 = vmatpush1.msra.mxu0 0.0
      %1704 = vmatprep.subr.mxu0 0.0
      %1705 = vmatpush1.msra.mxu0 0.0
      %1706 = vmatprep.subr.mxu0 0.0
      %1707 = vmatpush1.msra.mxu0 0.0
      %1708 = vmatprep.subr.mxu0 0.0
      %1709 = vmatpush1.msra.mxu0 0.0
      %1710 = vmatprep.subr.mxu0 0.0
      %1711 = vmatpush1.msra.mxu0 0.0
      %1712 = vmatprep.subr.mxu0 0.0
      %1713 = vmatpush1.msra.mxu0 0.0
      %1714 = vmatprep.subr.mxu0 0.0
      %1715 = vmatpush1.msra.mxu0 0.0
      %1716 = vmatprep.subr.mxu0 0.0
      %1717 = vmatpush1.msra.mxu0 0.0
      %1718 = vmatprep.subr.mxu0 0.0
      %1719 = vmatpush1.msra.mxu0 0.0
      %1720 = vmatprep.subr.mxu0 0.0
      %1721 = vmatpush1.msra.mxu0 0.0
      %1722 = vmatprep.subr.mxu0 0.0
      %1723 = vmatpush1.msra.mxu0 0.0
      %1724 = vmatprep.subr.mxu0 0.0
      %1725 = vmatpush1.msra.mxu0 0.0
      %1726 = vmatprep.subr.mxu0 0.0
      %1727 = vmatpush1.msra.mxu0 0.0
      %1728 = vmatprep.subr.mxu0 0.0
      %1729 = vmatpush1.msra.mxu0 0.0
      %1730 = vmatprep.subr.mxu0 0.0
      %1731 = vmatpush1.msra.mxu0 0.0
      %1732 = vmatprep.mubr.f32.mxu0 0.0
      %1733 = vmatmul.mubr.f32.gmra.mrb[0].mxu0 %v1573
      %v1734 = vpop.f32.mrb[0].mxu0
      %v1735 = vadd.f32 %v1414, %v1734
      %v1736 = vpop.f32.mrb[0].mxu0
      %1737 = vmatprep.mubr.f32.mxu0 0.0
      %1738 = vmatmul.mubr.f32.gmra.mrb[0].mxu0 %v1576
      %v1739 = vpop.f32.mrb[0].mxu0
      %v1740 = vadd.f32 %v1419, %v1739
      %v1741 = vpop.f32.mrb[0].mxu0
      %1742 = vmatprep.mubr.f32.mxu0 0.0
      %1743 = vmatmul.mubr.f32.gmra.mrb[0].mxu0 %v1579
      %v1744 = vpop.f32.mrb[0].mxu0
      %v1745 = vadd.f32 %v1424, %v1744
      %v1746 = vpop.f32.mrb[0].mxu0
      %1747 = vmatprep.mubr.f32.mxu0 0.0
      %1748 = vmatmul.mubr.f32.gmra.mrb[0].mxu0 %v1582
      %v1749 = vpop.f32.mrb[0].mxu0
      %v1750 = vadd.f32 %v1429, %v1749
      %v1751 = vpop.f32.mrb[0].mxu0
      %1752 = vmatprep.mubr.f32.mxu0 0.0
      %1753 = vmatmul.mubr.f32.gmra.mrb[0].mxu0 %v1585
      %v1754 = vpop.f32.mrb[0].mxu0
      %v1755 = vadd.f32 %v1434, %v1754
      %v1756 = vpop.f32.mrb[0].mxu0
      %1757 = vmatprep.mubr.f32.mxu0 0.0
      %1758 = vmatmul.mubr.f32.gmra.mrb[0].mxu0 %v1588
      %v1759 = vpop.f32.mrb[0].mxu0
      %v1760 = vadd.f32 %v1439, %v1759
      %v1761 = vpop.f32.mrb[0].mxu0
      %1762 = vmatprep.mubr.f32.mxu0 0.0
      %1763 = vmatmul.mubr.f32.gmra.mrb[0].mxu0 %v1591
      %v1764 = vpop.f32.mrb[0].mxu0
      %v1765 = vadd.f32 %v1444, %v1764
      %v1766 = vpop.f32.mrb[0].mxu0
      %1767 = vmatprep.mubr.f32.mxu0 0.0
      %1768 = vmatmul.mubr.f32.gmra.mrb[0].mxu0 %v1594
      %v1769 = vpop.f32.mrb[0].mxu0
      %v1770 = vadd.f32 %v1449, %v1769
      %v1771 = vpop.f32.mrb[0].mxu0
      %1772 = vmatprep.mubr.f32.mxu0 0.0
      %1773 = vmatmul.mubr.f32.gmra.mrb[0].mxu0 %v1597
      %v1774 = vpop.f32.mrb[0].mxu0
      %v1775 = vadd.f32 %v1454, %v1774
      %v1776 = vpop.f32.mrb[0].mxu0
      %1777 = vmatprep.mubr.f32.mxu0 0.0
      %1778 = vmatmul.mubr.f32.gmra.mrb[0].mxu0 %v1600
      %v1779 = vpop.f32.mrb[0].mxu0
      %v1780 = vadd.f32 %v1459, %v1779
      %v1781 = vpop.f32.mrb[0].mxu0
      %1782 = vmatprep.mubr.f32.mxu0 0.0
      %1783 = vmatmul.mubr.f32.gmra.mrb[0].mxu0 %v1603
      %v1784 = vpop.f32.mrb[0].mxu0
      %v1785 = vadd.f32 %v1464, %v1784
      %v1786 = vpop.f32.mrb[0].mxu0
      %1787 = vmatprep.mubr.f32.mxu0 0.0
      %1788 = vmatmul.mubr.f32.gmra.mrb[0].mxu0 %v1606
      %v1789 = vpop.f32.mrb[0].mxu0
      %v1790 = vadd.f32 %v1469, %v1789
      %v1791 = vpop.f32.mrb[0].mxu0
      %1792 = vmatprep.mubr.f32.mxu0 0.0
      %1793 = vmatmul.mubr.f32.gmra.mrb[0].mxu0 %v1609
      %v1794 = vpop.f32.mrb[0].mxu0
      %v1795 = vadd.f32 %v1474, %v1794
      %v1796 = vpop.f32.mrb[0].mxu0
      %1797 = vmatprep.mubr.f32.mxu0 0.0
      %1798 = vmatmul.mubr.f32.gmra.mrb[0].mxu0 %v1612
      %v1799 = vpop.f32.mrb[0].mxu0
      %v1800 = vadd.f32 %v1479, %v1799
      %v1801 = vpop.f32.mrb[0].mxu0
      %1802 = vmatprep.mubr.f32.mxu0 0.0
      %1803 = vmatmul.mubr.f32.gmra.mrb[0].mxu0 %v1615
      %v1804 = vpop.f32.mrb[0].mxu0
      %v1805 = vadd.f32 %v1484, %v1804
      %v1806 = vpop.f32.mrb[0].mxu0
      %1807 = vmatprep.mubr.f32.mxu0 0.0
      %1808 = vmatmul.mubr.f32.gmra.mrb[0].mxu0 %v1618
      %v1809 = vpop.f32.mrb[0].mxu0
      %v1810 = vadd.f32 %v1489, %v1809
      %v1811 = vpop.f32.mrb[0].mxu0
      %1812 = vmatprep.mubr.f32.mxu0 0.0
      %1813 = vmatmul.mubr.f32.gmra.mrb[0].mxu0 %v1621
      %v1814 = vpop.f32.mrb[0].mxu0
      %v1815 = vadd.f32 %v1494, %v1814
      %v1816 = vpop.f32.mrb[0].mxu0
      %1817 = vmatprep.mubr.f32.mxu0 0.0
      %1818 = vmatmul.mubr.f32.gmra.mrb[0].mxu0 %v1624
      %v1819 = vpop.f32.mrb[0].mxu0
      %v1820 = vadd.f32 %v1499, %v1819
      %v1821 = vpop.f32.mrb[0].mxu0
      %1822 = vmatprep.mubr.f32.mxu0 0.0
      %1823 = vmatmul.mubr.f32.gmra.mrb[0].mxu0 %v1627
      %v1824 = vpop.f32.mrb[0].mxu0
      %v1825 = vadd.f32 %v1504, %v1824
      %v1826 = vpop.f32.mrb[0].mxu0
      %1827 = vmatprep.mubr.f32.mxu0 0.0
      %1828 = vmatmul.mubr.f32.gmra.mrb[0].mxu0 %v1630
      %v1829 = vpop.f32.mrb[0].mxu0
      %v1830 = vadd.f32 %v1509, %v1829
      %v1831 = vpop.f32.mrb[0].mxu0
      %1832 = vmatprep.mubr.f32.mxu0 0.0
      %1833 = vmatmul.mubr.f32.gmra.mrb[0].mxu0 %v1633
      %v1834 = vpop.f32.mrb[0].mxu0
      %v1835 = vadd.f32 %v1514, %v1834
      %v1836 = vpop.f32.mrb[0].mxu0
      %1837 = vmatprep.mubr.f32.mxu0 0.0
      %1838 = vmatmul.mubr.f32.gmra.mrb[0].mxu0 %v1636
      %v1839 = vpop.f32.mrb[0].mxu0
      %v1840 = vadd.f32 %v1519, %v1839
      %v1841 = vpop.f32.mrb[0].mxu0
      %1842 = vmatprep.mubr.f32.mxu0 0.0
      %1843 = vmatmul.mubr.f32.gmra.mrb[0].mxu0 %v1639
      %v1844 = vpop.f32.mrb[0].mxu0
      %v1845 = vadd.f32 %v1524, %v1844
      %v1846 = vpop.f32.mrb[0].mxu0
      %1847 = vmatprep.mubr.f32.mxu0 0.0
      %1848 = vmatmul.mubr.f32.gmra.mrb[0].mxu0 %v1642
      %v1849 = vpop.f32.mrb[0].mxu0
      %v1850 = vadd.f32 %v1529, %v1849
      %v1851 = vpop.f32.mrb[0].mxu0
      %1852 = vmatprep.mubr.f32.mxu0 0.0
      %1853 = vmatmul.mubr.f32.gmra.mrb[0].mxu0 %v1645
      %v1854 = vpop.f32.mrb[0].mxu0
      %v1855 = vadd.f32 %v1534, %v1854
      %v1856 = vpop.f32.mrb[0].mxu0
      %1857 = vmatprep.mubr.f32.mxu0 0.0
      %1858 = vmatmul.mubr.f32.gmra.mrb[0].mxu0 %v1648
      %v1859 = vpop.f32.mrb[0].mxu0
      %v1860 = vadd.f32 %v1539, %v1859
      %v1861 = vpop.f32.mrb[0].mxu0
      %1862 = vmatprep.mubr.f32.mxu0 0.0
      %1863 = vmatmul.mubr.f32.gmra.mrb[0].mxu0 %v1651
      %v1864 = vpop.f32.mrb[0].mxu0
      %v1865 = vadd.f32 %v1544, %v1864
      %v1866 = vpop.f32.mrb[0].mxu0
      %1867 = vmatprep.mubr.f32.mxu0 0.0
      %1868 = vmatmul.mubr.f32.gmra.mrb[0].mxu0 %v1654
      %v1869 = vpop.f32.mrb[0].mxu0
      %v1870 = vadd.f32 %v1549, %v1869
      %v1871 = vpop.f32.mrb[0].mxu0
      %1872 = vmatprep.mubr.f32.mxu0 0.0
      %1873 = vmatmul.mubr.f32.gmra.mrb[0].mxu0 %v1657
      %v1874 = vpop.f32.mrb[0].mxu0
      %v1875 = vadd.f32 %v1554, %v1874
      %v1876 = vpop.f32.mrb[0].mxu0
      %1877 = vmatprep.mubr.f32.mxu0 0.0
      %1878 = vmatmul.mubr.f32.gmra.mrb[0].mxu0 %v1660
      %v1879 = vpop.f32.mrb[0].mxu0
      %v1880 = vadd.f32 %v1559, %v1879
      %v1881 = vpop.f32.mrb[0].mxu0
      %1882 = vmatprep.mubr.f32.mxu0 0.0
      %1883 = vmatmul.mubr.f32.gmra.mrb[0].mxu0 %v1663
      %v1884 = vpop.f32.mrb[0].mxu0
      %v1885 = vadd.f32 %v1564, %v1884
      %v1886 = vpop.f32.mrb[0].mxu0
      %1887 = vmatprep.mubr.f32.mxu0 0.0
      %1888 = vmatmul.mubr.f32.gmra.mrb[0].mxu0 %v1666
      %v1889 = vpop.f32.mrb[0].mxu0
      %v1890 = vadd.f32 %v1569, %v1889
      %v1891 = vpop.f32.mrb[0].mxu0
      %1892 = vdwg.mxu0
      %v1893 = vld [vmem:[#allocation2 + $0x2] sm:$0xff]
      %v1894 = vld [vmem:[#allocation2 + $0xa] sm:$0xff]
      %v1895 = vld [vmem:[#allocation2 + $0x1a] sm:$0xff]
      %v1896 = vld [vmem:[#allocation2 + $0x22] sm:$0xff]
      %v1897 = vld [vmem:[#allocation2 + $0x32] sm:$0xff]
      %v1898 = vld [vmem:[#allocation2 + $0x3a] sm:$0xff]
      %v1899 = vld [vmem:[#allocation2 + $0x4a] sm:$0xff]
      %v1900 = vld [vmem:[#allocation2 + $0x52] sm:$0xff]
      %v1901 = vld [vmem:[#allocation2 + $0x62] sm:$0xff]
      %v1902 = vld [vmem:[#allocation2 + $0x6a] sm:$0xff]
      %v1903 = vld [vmem:[#allocation2 + $0x7a] sm:$0xff]
      %v1904 = vld [vmem:[#allocation2 + $0x82] sm:$0xff]
      %v1905 = vld [vmem:[#allocation2 + $0x92] sm:$0xff]
      %v1906 = vld [vmem:[#allocation2 + $0x9a] sm:$0xff]
      %v1907 = vld [vmem:[#allocation2 + $0xaa] sm:$0xff]
      %v1908 = vld [vmem:[#allocation2 + $0xb2] sm:$0xff]
      %v1909 = vld [vmem:[#allocation2 + $0xc2] sm:$0xff]
      %v1910 = vld [vmem:[#allocation2 + $0xca] sm:$0xff]
      %v1911 = vld [vmem:[#allocation2 + $0xda] sm:$0xff]
      %v1912 = vld [vmem:[#allocation2 + $0xe2] sm:$0xff]
      %v1913 = vld [vmem:[#allocation2 + $0xf2] sm:$0xff]
      %v1914 = vld [vmem:[#allocation2 + $0xfa] sm:$0xff]
      %v1915 = vld [vmem:[#allocation2 + $0x10a] sm:$0xff]
      %v1916 = vld [vmem:[#allocation2 + $0x112] sm:$0xff]
      %v1917 = vld [vmem:[#allocation2 + $0x122] sm:$0xff]
      %v1918 = vld [vmem:[#allocation2 + $0x12a] sm:$0xff]
      %v1919 = vld [vmem:[#allocation2 + $0x13a] sm:$0xff]
      %v1920 = vld [vmem:[#allocation2 + $0x142] sm:$0xff]
      %v1921 = vld [vmem:[#allocation2 + $0x152] sm:$0xff]
      %v1922 = vld [vmem:[#allocation2 + $0x15a] sm:$0xff]
      %v1923 = vld [vmem:[#allocation2 + $0x16a] sm:$0xff]
      %v1924 = vld [vmem:[#allocation2 + $0x172] sm:$0xff]
      %s1925 = scalar_lea.vmem %s5, 16
      %v1926 = vld [vmem:[%s1925] sm:$0xff]
      %v1928 = vsel %vm907, %v1893, 0
      %v1931 = vsel %vm907, %v1894, 0
      %v1934 = vsel %vm907, %v1895, 0
      %v1937 = vsel %vm907, %v1896, 0
      %v1940 = vsel %vm907, %v1897, 0
      %v1943 = vsel %vm907, %v1898, 0
      %v1946 = vsel %vm907, %v1899, 0
      %v1949 = vsel %vm907, %v1900, 0
      %v1952 = vsel %vm907, %v1901, 0
      %v1955 = vsel %vm907, %v1902, 0
      %v1958 = vsel %vm907, %v1903, 0
      %v1961 = vsel %vm907, %v1904, 0
      %v1964 = vsel %vm907, %v1905, 0
      %v1967 = vsel %vm907, %v1906, 0
      %v1970 = vsel %vm907, %v1907, 0
      %v1973 = vsel %vm907, %v1908, 0
      %v1976 = vsel %vm907, %v1909, 0
      %v1979 = vsel %vm907, %v1910, 0
      %v1982 = vsel %vm907, %v1911, 0
      %v1985 = vsel %vm907, %v1912, 0
      %v1988 = vsel %vm907, %v1913, 0
      %v1991 = vsel %vm907, %v1914, 0
      %v1994 = vsel %vm907, %v1915, 0
      %v1997 = vsel %vm907, %v1916, 0
      %v2000 = vsel %vm907, %v1917, 0
      %v2003 = vsel %vm907, %v1918, 0
      %v2006 = vsel %vm907, %v1919, 0
      %v2009 = vsel %vm907, %v1920, 0
      %v2012 = vsel %vm907, %v1921, 0
      %v2015 = vsel %vm907, %v1922, 0
      %v2018 = vsel %vm907, %v1923, 0
      %v2021 = vsel %vm907, %v1924, 0
      %2023 = vmatprep.subr.mxu0 0.0
      %2024 = vmatpush1.msra.mxu0 %v1926
      %2025 = vmatprep.subr.mxu0 0.0
      %2026 = vmatpush1.msra.mxu0 0.0
      %2027 = vmatprep.subr.mxu0 0.0
      %2028 = vmatpush1.msra.mxu0 0.0
      %2029 = vmatprep.subr.mxu0 0.0
      %2030 = vmatpush1.msra.mxu0 0.0
      %2031 = vmatprep.subr.mxu0 0.0
      %2032 = vmatpush1.msra.mxu0 0.0
      %2033 = vmatprep.subr.mxu0 0.0
      %2034 = vmatpush1.msra.mxu0 0.0
      %2035 = vmatprep.subr.mxu0 0.0
      %2036 = vmatpush1.msra.mxu0 0.0
      %2037 = vmatprep.subr.mxu0 0.0
      %2038 = vmatpush1.msra.mxu0 0.0
      %2039 = vmatprep.subr.mxu0 0.0
      %2040 = vmatpush1.msra.mxu0 0.0
      %2041 = vmatprep.subr.mxu0 0.0
      %2042 = vmatpush1.msra.mxu0 0.0
      %2043 = vmatprep.subr.mxu0 0.0
      %2044 = vmatpush1.msra.mxu0 0.0
      %2045 = vmatprep.subr.mxu0 0.0
      %2046 = vmatpush1.msra.mxu0 0.0
      %2047 = vmatprep.subr.mxu0 0.0
      %2048 = vmatpush1.msra.mxu0 0.0
      %2049 = vmatprep.subr.mxu0 0.0
      %2050 = vmatpush1.msra.mxu0 0.0
      %2051 = vmatprep.subr.mxu0 0.0
      %2052 = vmatpush1.msra.mxu0 0.0
      %2053 = vmatprep.subr.mxu0 0.0
      %2054 = vmatpush1.msra.mxu0 0.0
      %2055 = vmatprep.subr.mxu0 0.0
      %2056 = vmatpush1.msra.mxu0 0.0
      %2057 = vmatprep.subr.mxu0 0.0
      %2058 = vmatpush1.msra.mxu0 0.0
      %2059 = vmatprep.subr.mxu0 0.0
      %2060 = vmatpush1.msra.mxu0 0.0
      %2061 = vmatprep.subr.mxu0 0.0
      %2062 = vmatpush1.msra.mxu0 0.0
      %2063 = vmatprep.subr.mxu0 0.0
      %2064 = vmatpush1.msra.mxu0 0.0
      %2065 = vmatprep.subr.mxu0 0.0
      %2066 = vmatpush1.msra.mxu0 0.0
      %2067 = vmatprep.subr.mxu0 0.0
      %2068 = vmatpush1.msra.mxu0 0.0
      %2069 = vmatprep.subr.mxu0 0.0
      %2070 = vmatpush1.msra.mxu0 0.0
      %2071 = vmatprep.subr.mxu0 0.0
      %2072 = vmatpush1.msra.mxu0 0.0
      %2073 = vmatprep.subr.mxu0 0.0
      %2074 = vmatpush1.msra.mxu0 0.0
      %2075 = vmatprep.subr.mxu0 0.0
      %2076 = vmatpush1.msra.mxu0 0.0
      %2077 = vmatprep.subr.mxu0 0.0
      %2078 = vmatpush1.msra.mxu0 0.0
      %2079 = vmatprep.subr.mxu0 0.0
      %2080 = vmatpush1.msra.mxu0 0.0
      %2081 = vmatprep.subr.mxu0 0.0
      %2082 = vmatpush1.msra.mxu0 0.0
      %2083 = vmatprep.subr.mxu0 0.0
      %2084 = vmatpush1.msra.mxu0 0.0
      %2085 = vmatprep.subr.mxu0 0.0
      %2086 = vmatpush1.msra.mxu0 0.0
      %2087 = vmatprep.mubr.f32.mxu0 0.0
      %2088 = vmatmul.mubr.f32.gmra.mrb[0].mxu0 %v1928
      %v2089 = vpop.f32.mrb[0].mxu0
      %v2090 = vadd.f32 0.0, %v2089
      %v2091 = vpop.f32.mrb[0].mxu0
      %2092 = vmatprep.mubr.f32.mxu0 0.0
      %2093 = vmatmul.mubr.f32.gmra.mrb[0].mxu0 %v1931
      %v2094 = vpop.f32.mrb[0].mxu0
      %v2095 = vadd.f32 0.0, %v2094
      %v2096 = vpop.f32.mrb[0].mxu0
      %2097 = vmatprep.mubr.f32.mxu0 0.0
      %2098 = vmatmul.mubr.f32.gmra.mrb[0].mxu0 %v1934
      %v2099 = vpop.f32.mrb[0].mxu0
      %v2100 = vadd.f32 0.0, %v2099
      %v2101 = vpop.f32.mrb[0].mxu0
      %2102 = vmatprep.mubr.f32.mxu0 0.0
      %2103 = vmatmul.mubr.f32.gmra.mrb[0].mxu0 %v1937
      %v2104 = vpop.f32.mrb[0].mxu0
      %v2105 = vadd.f32 0.0, %v2104
      %v2106 = vpop.f32.mrb[0].mxu0
      %2107 = vmatprep.mubr.f32.mxu0 0.0
      %2108 = vmatmul.mubr.f32.gmra.mrb[0].mxu0 %v1940
      %v2109 = vpop.f32.mrb[0].mxu0
      %v2110 = vadd.f32 0.0, %v2109
      %v2111 = vpop.f32.mrb[0].mxu0
      %2112 = vmatprep.mubr.f32.mxu0 0.0
      %2113 = vmatmul.mubr.f32.gmra.mrb[0].mxu0 %v1943
      %v2114 = vpop.f32.mrb[0].mxu0
      %v2115 = vadd.f32 0.0, %v2114
      %v2116 = vpop.f32.mrb[0].mxu0
      %2117 = vmatprep.mubr.f32.mxu0 0.0
      %2118 = vmatmul.mubr.f32.gmra.mrb[0].mxu0 %v1946
      %v2119 = vpop.f32.mrb[0].mxu0
      %v2120 = vadd.f32 0.0, %v2119
      %v2121 = vpop.f32.mrb[0].mxu0
      %2122 = vmatprep.mubr.f32.mxu0 0.0
      %2123 = vmatmul.mubr.f32.gmra.mrb[0].mxu0 %v1949
      %v2124 = vpop.f32.mrb[0].mxu0
      %v2125 = vadd.f32 0.0, %v2124
      %v2126 = vpop.f32.mrb[0].mxu0
      %2127 = vmatprep.mubr.f32.mxu0 0.0
      %2128 = vmatmul.mubr.f32.gmra.mrb[0].mxu0 %v1952
      %v2129 = vpop.f32.mrb[0].mxu0
      %v2130 = vadd.f32 0.0, %v2129
      %v2131 = vpop.f32.mrb[0].mxu0
      %2132 = vmatprep.mubr.f32.mxu0 0.0
      %2133 = vmatmul.mubr.f32.gmra.mrb[0].mxu0 %v1955
      %v2134 = vpop.f32.mrb[0].mxu0
      %v2135 = vadd.f32 0.0, %v2134
      %v2136 = vpop.f32.mrb[0].mxu0
      %2137 = vmatprep.mubr.f32.mxu0 0.0
      %2138 = vmatmul.mubr.f32.gmra.mrb[0].mxu0 %v1958
      %v2139 = vpop.f32.mrb[0].mxu0
      %v2140 = vadd.f32 0.0, %v2139
      %v2141 = vpop.f32.mrb[0].mxu0
      %2142 = vmatprep.mubr.f32.mxu0 0.0
      %2143 = vmatmul.mubr.f32.gmra.mrb[0].mxu0 %v1961
      %v2144 = vpop.f32.mrb[0].mxu0
      %v2145 = vadd.f32 0.0, %v2144
      %v2146 = vpop.f32.mrb[0].mxu0
      %2147 = vmatprep.mubr.f32.mxu0 0.0
      %2148 = vmatmul.mubr.f32.gmra.mrb[0].mxu0 %v1964
      %v2149 = vpop.f32.mrb[0].mxu0
      %v2150 = vadd.f32 0.0, %v2149
      %v2151 = vpop.f32.mrb[0].mxu0
      %2152 = vmatprep.mubr.f32.mxu0 0.0
      %2153 = vmatmul.mubr.f32.gmra.mrb[0].mxu0 %v1967
      %v2154 = vpop.f32.mrb[0].mxu0
      %v2155 = vadd.f32 0.0, %v2154
      %v2156 = vpop.f32.mrb[0].mxu0
      %2157 = vmatprep.mubr.f32.mxu0 0.0
      %2158 = vmatmul.mubr.f32.gmra.mrb[0].mxu0 %v1970
      %v2159 = vpop.f32.mrb[0].mxu0
      %v2160 = vadd.f32 0.0, %v2159
      %v2161 = vpop.f32.mrb[0].mxu0
      %2162 = vmatprep.mubr.f32.mxu0 0.0
      %2163 = vmatmul.mubr.f32.gmra.mrb[0].mxu0 %v1973
      %v2164 = vpop.f32.mrb[0].mxu0
      %v2165 = vadd.f32 0.0, %v2164
      %v2166 = vpop.f32.mrb[0].mxu0
      %2167 = vmatprep.mubr.f32.mxu0 0.0
      %2168 = vmatmul.mubr.f32.gmra.mrb[0].mxu0 %v1976
      %v2169 = vpop.f32.mrb[0].mxu0
      %v2170 = vadd.f32 0.0, %v2169
      %v2171 = vpop.f32.mrb[0].mxu0
      %2172 = vmatprep.mubr.f32.mxu0 0.0
      %2173 = vmatmul.mubr.f32.gmra.mrb[0].mxu0 %v1979
      %v2174 = vpop.f32.mrb[0].mxu0
      %v2175 = vadd.f32 0.0, %v2174
      %v2176 = vpop.f32.mrb[0].mxu0
      %2177 = vmatprep.mubr.f32.mxu0 0.0
      %2178 = vmatmul.mubr.f32.gmra.mrb[0].mxu0 %v1982
      %v2179 = vpop.f32.mrb[0].mxu0
      %v2180 = vadd.f32 0.0, %v2179
      %v2181 = vpop.f32.mrb[0].mxu0
      %2182 = vmatprep.mubr.f32.mxu0 0.0
      %2183 = vmatmul.mubr.f32.gmra.mrb[0].mxu0 %v1985
      %v2184 = vpop.f32.mrb[0].mxu0
      %v2185 = vadd.f32 0.0, %v2184
      %v2186 = vpop.f32.mrb[0].mxu0
      %2187 = vmatprep.mubr.f32.mxu0 0.0
      %2188 = vmatmul.mubr.f32.gmra.mrb[0].mxu0 %v1988
      %v2189 = vpop.f32.mrb[0].mxu0
      %v2190 = vadd.f32 0.0, %v2189
      %v2191 = vpop.f32.mrb[0].mxu0
      %2192 = vmatprep.mubr.f32.mxu0 0.0
      %2193 = vmatmul.mubr.f32.gmra.mrb[0].mxu0 %v1991
      %v2194 = vpop.f32.mrb[0].mxu0
      %v2195 = vadd.f32 0.0, %v2194
      %v2196 = vpop.f32.mrb[0].mxu0
      %2197 = vmatprep.mubr.f32.mxu0 0.0
      %2198 = vmatmul.mubr.f32.gmra.mrb[0].mxu0 %v1994
      %v2199 = vpop.f32.mrb[0].mxu0
      %v2200 = vadd.f32 0.0, %v2199
      %v2201 = vpop.f32.mrb[0].mxu0
      %2202 = vmatprep.mubr.f32.mxu0 0.0
      %2203 = vmatmul.mubr.f32.gmra.mrb[0].mxu0 %v1997
      %v2204 = vpop.f32.mrb[0].mxu0
      %v2205 = vadd.f32 0.0, %v2204
      %v2206 = vpop.f32.mrb[0].mxu0
      %2207 = vmatprep.mubr.f32.mxu0 0.0
      %2208 = vmatmul.mubr.f32.gmra.mrb[0].mxu0 %v2000
      %v2209 = vpop.f32.mrb[0].mxu0
      %v2210 = vadd.f32 0.0, %v2209
      %v2211 = vpop.f32.mrb[0].mxu0
      %2212 = vmatprep.mubr.f32.mxu0 0.0
      %2213 = vmatmul.mubr.f32.gmra.mrb[0].mxu0 %v2003
      %v2214 = vpop.f32.mrb[0].mxu0
      %v2215 = vadd.f32 0.0, %v2214
      %v2216 = vpop.f32.mrb[0].mxu0
      %2217 = vmatprep.mubr.f32.mxu0 0.0
      %2218 = vmatmul.mubr.f32.gmra.mrb[0].mxu0 %v2006
      %v2219 = vpop.f32.mrb[0].mxu0
      %v2220 = vadd.f32 0.0, %v2219
      %v2221 = vpop.f32.mrb[0].mxu0
      %2222 = vmatprep.mubr.f32.mxu0 0.0
      %2223 = vmatmul.mubr.f32.gmra.mrb[0].mxu0 %v2009
      %v2224 = vpop.f32.mrb[0].mxu0
      %v2225 = vadd.f32 0.0, %v2224
      %v2226 = vpop.f32.mrb[0].mxu0
      %2227 = vmatprep.mubr.f32.mxu0 0.0
      %2228 = vmatmul.mubr.f32.gmra.mrb[0].mxu0 %v2012
      %v2229 = vpop.f32.mrb[0].mxu0
      %v2230 = vadd.f32 0.0, %v2229
      %v2231 = vpop.f32.mrb[0].mxu0
      %2232 = vmatprep.mubr.f32.mxu0 0.0
      %2233 = vmatmul.mubr.f32.gmra.mrb[0].mxu0 %v2015
      %v2234 = vpop.f32.mrb[0].mxu0
      %v2235 = vadd.f32 0.0, %v2234
      %v2236 = vpop.f32.mrb[0].mxu0
      %2237 = vmatprep.mubr.f32.mxu0 0.0
      %2238 = vmatmul.mubr.f32.gmra.mrb[0].mxu0 %v2018
      %v2239 = vpop.f32.mrb[0].mxu0
      %v2240 = vadd.f32 0.0, %v2239
      %v2241 = vpop.f32.mrb[0].mxu0
      %2242 = vmatprep.mubr.f32.mxu0 0.0
      %2243 = vmatmul.mubr.f32.gmra.mrb[0].mxu0 %v2021
      %v2244 = vpop.f32.mrb[0].mxu0
      %v2245 = vadd.f32 0.0, %v2244
      %v2246 = vpop.f32.mrb[0].mxu0
      %2247 = vdwg.mxu0
      %v2248 = vadd.f32 %v1735, %v2090
      %v2249 = vadd.f32 %v1740, %v2095
      %v2250 = vadd.f32 %v1745, %v2100
      %v2251 = vadd.f32 %v1750, %v2105
      %v2252 = vadd.f32 %v1755, %v2110
      %v2253 = vadd.f32 %v1760, %v2115
      %v2254 = vadd.f32 %v1765, %v2120
      %v2255 = vadd.f32 %v1770, %v2125
      %v2256 = vadd.f32 %v1775, %v2130
      %v2257 = vadd.f32 %v1780, %v2135
      %v2258 = vadd.f32 %v1785, %v2140
      %v2259 = vadd.f32 %v1790, %v2145
      %v2260 = vadd.f32 %v1795, %v2150
      %v2261 = vadd.f32 %v1800, %v2155
      %v2262 = vadd.f32 %v1805, %v2160
      %v2263 = vadd.f32 %v1810, %v2165
      %v2264 = vadd.f32 %v1815, %v2170
      %v2265 = vadd.f32 %v1820, %v2175
      %v2266 = vadd.f32 %v1825, %v2180
      %v2267 = vadd.f32 %v1830, %v2185
      %v2268 = vadd.f32 %v1835, %v2190
      %v2269 = vadd.f32 %v1840, %v2195
      %v2270 = vadd.f32 %v1845, %v2200
      %v2271 = vadd.f32 %v1850, %v2205
      %v2272 = vadd.f32 %v1855, %v2210
      %v2273 = vadd.f32 %v1860, %v2215
      %v2274 = vadd.f32 %v1865, %v2220
      %v2275 = vadd.f32 %v1870, %v2225
      %v2276 = vadd.f32 %v1875, %v2230
      %v2277 = vadd.f32 %v1880, %v2235
      %v2278 = vadd.f32 %v1885, %v2240
      %v2279 = vadd.f32 %v1890, %v2245
      %v2280 = vld [vmem:[%s906] sm:$0xff]
      %v2281 = vld [vmem:[%s906 + $0x8] sm:$0xff]
      %v2282 = vld [vmem:[%s906 + $0x18] sm:$0xff]
      %v2283 = vld [vmem:[%s906 + $0x20] sm:$0xff]
      %v2284 = vld [vmem:[%s906 + $0x30] sm:$0xff]
      %v2285 = vld [vmem:[%s906 + $0x38] sm:$0xff]
      %v2286 = vld [vmem:[%s906 + $0x48] sm:$0xff]
      %v2287 = vld [vmem:[%s906 + $0x50] sm:$0xff]
      %v2288 = vld [vmem:[%s906 + $0x60] sm:$0xff]
      %v2289 = vld [vmem:[%s906 + $0x68] sm:$0xff]
      %v2290 = vld [vmem:[%s906 + $0x78] sm:$0xff]
      %v2291 = vld [vmem:[%s906 + $0x80] sm:$0xff]
      %v2292 = vld [vmem:[%s906 + $0x90] sm:$0xff]
      %v2293 = vld [vmem:[%s906 + $0x98] sm:$0xff]
      %v2294 = vld [vmem:[%s906 + $0xa8] sm:$0xff]
      %v2295 = vld [vmem:[%s906 + $0xb0] sm:$0xff]
      %v2296 = vld [vmem:[%s906 + $0xc0] sm:$0xff]
      %v2297 = vld [vmem:[%s906 + $0xc8] sm:$0xff]
      %v2298 = vld [vmem:[%s906 + $0xd8] sm:$0xff]
      %v2299 = vld [vmem:[%s906 + $0xe0] sm:$0xff]
      %v2300 = vld [vmem:[%s906 + $0xf0] sm:$0xff]
      %v2301 = vld [vmem:[%s906 + $0xf8] sm:$0xff]
      %v2302 = vld [vmem:[%s906 + $0x108] sm:$0xff]
      %v2303 = vld [vmem:[%s906 + $0x110] sm:$0xff]
      %v2304 = vld [vmem:[%s906 + $0x120] sm:$0xff]
      %v2305 = vld [vmem:[%s906 + $0x128] sm:$0xff]
      %v2306 = vld [vmem:[%s906 + $0x138] sm:$0xff]
      %v2307 = vld [vmem:[%s906 + $0x140] sm:$0xff]
      %v2308 = vld [vmem:[%s906 + $0x150] sm:$0xff]
      %v2309 = vld [vmem:[%s906 + $0x158] sm:$0xff]
      %v2310 = vld [vmem:[%s906 + $0x168] sm:$0xff]
      %v2311 = vld [vmem:[%s906 + $0x170] sm:$0xff]
      %s2312 = scalar_lea.vmem %s5, 24
      %v2313 = vld [vmem:[%s2312] sm:$0xff]
      %v2315 = vsel %vm907, %v2280, 0
      %v2318 = vsel %vm907, %v2281, 0
      %v2321 = vsel %vm907, %v2282, 0
      %v2324 = vsel %vm907, %v2283, 0
      %v2327 = vsel %vm907, %v2284, 0
      %v2330 = vsel %vm907, %v2285, 0
      %v2333 = vsel %vm907, %v2286, 0
      %v2336 = vsel %vm907, %v2287, 0
      %v2339 = vsel %vm907, %v2288, 0
      %v2342 = vsel %vm907, %v2289, 0
      %v2345 = vsel %vm907, %v2290, 0
      %v2348 = vsel %vm907, %v2291, 0
      %v2351 = vsel %vm907, %v2292, 0
      %v2354 = vsel %vm907, %v2293, 0
      %v2357 = vsel %vm907, %v2294, 0
      %v2360 = vsel %vm907, %v2295, 0
      %v2363 = vsel %vm907, %v2296, 0
      %v2366 = vsel %vm907, %v2297, 0
      %v2369 = vsel %vm907, %v2298, 0
      %v2372 = vsel %vm907, %v2299, 0
      %v2375 = vsel %vm907, %v2300, 0
      %v2378 = vsel %vm907, %v2301, 0
      %v2381 = vsel %vm907, %v2302, 0
      %v2384 = vsel %vm907, %v2303, 0
      %v2387 = vsel %vm907, %v2304, 0
      %v2390 = vsel %vm907, %v2305, 0
      %v2393 = vsel %vm907, %v2306, 0
      %v2396 = vsel %vm907, %v2307, 0
      %v2399 = vsel %vm907, %v2308, 0
      %v2402 = vsel %vm907, %v2309, 0
      %v2405 = vsel %vm907, %v2310, 0
      %v2408 = vsel %vm907, %v2311, 0
      %2410 = vmatprep.subr.mxu0 0.0
      %2411 = vmatpush1.msra.mxu0 %v2313
      %2412 = vmatprep.subr.mxu0 0.0
      %2413 = vmatpush1.msra.mxu0 0.0
      %2414 = vmatprep.subr.mxu0 0.0
      %2415 = vmatpush1.msra.mxu0 0.0
      %2416 = vmatprep.subr.mxu0 0.0
      %2417 = vmatpush1.msra.mxu0 0.0
      %2418 = vmatprep.subr.mxu0 0.0
      %2419 = vmatpush1.msra.mxu0 0.0
      %2420 = vmatprep.subr.mxu0 0.0
      %2421 = vmatpush1.msra.mxu0 0.0
      %2422 = vmatprep.subr.mxu0 0.0
      %2423 = vmatpush1.msra.mxu0 0.0
      %2424 = vmatprep.subr.mxu0 0.0
      %2425 = vmatpush1.msra.mxu0 0.0
      %2426 = vmatprep.subr.mxu0 0.0
      %2427 = vmatpush1.msra.mxu0 0.0
      %2428 = vmatprep.subr.mxu0 0.0
      %2429 = vmatpush1.msra.mxu0 0.0
      %2430 = vmatprep.subr.mxu0 0.0
      %2431 = vmatpush1.msra.mxu0 0.0
      %2432 = vmatprep.subr.mxu0 0.0
      %2433 = vmatpush1.msra.mxu0 0.0
      %2434 = vmatprep.subr.mxu0 0.0
      %2435 = vmatpush1.msra.mxu0 0.0
      %2436 = vmatprep.subr.mxu0 0.0
      %2437 = vmatpush1.msra.mxu0 0.0
      %2438 = vmatprep.subr.mxu0 0.0
      %2439 = vmatpush1.msra.mxu0 0.0
      %2440 = vmatprep.subr.mxu0 0.0
      %2441 = vmatpush1.msra.mxu0 0.0
      %2442 = vmatprep.subr.mxu0 0.0
      %2443 = vmatpush1.msra.mxu0 0.0
      %2444 = vmatprep.subr.mxu0 0.0
      %2445 = vmatpush1.msra.mxu0 0.0
      %2446 = vmatprep.subr.mxu0 0.0
      %2447 = vmatpush1.msra.mxu0 0.0
      %2448 = vmatprep.subr.mxu0 0.0
      %2449 = vmatpush1.msra.mxu0 0.0
      %2450 = vmatprep.subr.mxu0 0.0
      %2451 = vmatpush1.msra.mxu0 0.0
      %2452 = vmatprep.subr.mxu0 0.0
      %2453 = vmatpush1.msra.mxu0 0.0
      %2454 = vmatprep.subr.mxu0 0.0
      %2455 = vmatpush1.msra.mxu0 0.0
      %2456 = vmatprep.subr.mxu0 0.0
      %2457 = vmatpush1.msra.mxu0 0.0
      %2458 = vmatprep.subr.mxu0 0.0
      %2459 = vmatpush1.msra.mxu0 0.0
      %2460 = vmatprep.subr.mxu0 0.0
      %2461 = vmatpush1.msra.mxu0 0.0
      %2462 = vmatprep.subr.mxu0 0.0
      %2463 = vmatpush1.msra.mxu0 0.0
      %2464 = vmatprep.subr.mxu0 0.0
      %2465 = vmatpush1.msra.mxu0 0.0
      %2466 = vmatprep.subr.mxu0 0.0
      %2467 = vmatpush1.msra.mxu0 0.0
      %2468 = vmatprep.subr.mxu0 0.0
      %2469 = vmatpush1.msra.mxu0 0.0
      %2470 = vmatprep.subr.mxu0 0.0
      %2471 = vmatpush1.msra.mxu0 0.0
      %2472 = vmatprep.subr.mxu0 0.0
      %2473 = vmatpush1.msra.mxu0 0.0
      %2474 = vmatprep.mubr.f32.mxu0 0.0
      %2475 = vmatmul.mubr.f32.gmra.mrb[0].mxu0 %v2315
      %v2476 = vpop.f32.mrb[0].mxu0
      %v2477 = vadd.f32 0.0, %v2476
      %v2478 = vpop.f32.mrb[0].mxu0
      %2479 = vmatprep.mubr.f32.mxu0 0.0
      %2480 = vmatmul.mubr.f32.gmra.mrb[0].mxu0 %v2318
      %v2481 = vpop.f32.mrb[0].mxu0
      %v2482 = vadd.f32 0.0, %v2481
      %v2483 = vpop.f32.mrb[0].mxu0
      %2484 = vmatprep.mubr.f32.mxu0 0.0
      %2485 = vmatmul.mubr.f32.gmra.mrb[0].mxu0 %v2321
      %v2486 = vpop.f32.mrb[0].mxu0
      %v2487 = vadd.f32 0.0, %v2486
      %v2488 = vpop.f32.mrb[0].mxu0
      %2489 = vmatprep.mubr.f32.mxu0 0.0
      %2490 = vmatmul.mubr.f32.gmra.mrb[0].mxu0 %v2324
      %v2491 = vpop.f32.mrb[0].mxu0
      %v2492 = vadd.f32 0.0, %v2491
      %v2493 = vpop.f32.mrb[0].mxu0
      %2494 = vmatprep.mubr.f32.mxu0 0.0
      %2495 = vmatmul.mubr.f32.gmra.mrb[0].mxu0 %v2327
      %v2496 = vpop.f32.mrb[0].mxu0
      %v2497 = vadd.f32 0.0, %v2496
      %v2498 = vpop.f32.mrb[0].mxu0
      %2499 = vmatprep.mubr.f32.mxu0 0.0
      %2500 = vmatmul.mubr.f32.gmra.mrb[0].mxu0 %v2330
      %v2501 = vpop.f32.mrb[0].mxu0
      %v2502 = vadd.f32 0.0, %v2501
      %v2503 = vpop.f32.mrb[0].mxu0
      %2504 = vmatprep.mubr.f32.mxu0 0.0
      %2505 = vmatmul.mubr.f32.gmra.mrb[0].mxu0 %v2333
      %v2506 = vpop.f32.mrb[0].mxu0
      %v2507 = vadd.f32 0.0, %v2506
      %v2508 = vpop.f32.mrb[0].mxu0
      %2509 = vmatprep.mubr.f32.mxu0 0.0
      %2510 = vmatmul.mubr.f32.gmra.mrb[0].mxu0 %v2336
      %v2511 = vpop.f32.mrb[0].mxu0
      %v2512 = vadd.f32 0.0, %v2511
      %v2513 = vpop.f32.mrb[0].mxu0
      %2514 = vmatprep.mubr.f32.mxu0 0.0
      %2515 = vmatmul.mubr.f32.gmra.mrb[0].mxu0 %v2339
      %v2516 = vpop.f32.mrb[0].mxu0
      %v2517 = vadd.f32 0.0, %v2516
      %v2518 = vpop.f32.mrb[0].mxu0
      %2519 = vmatprep.mubr.f32.mxu0 0.0
      %2520 = vmatmul.mubr.f32.gmra.mrb[0].mxu0 %v2342
      %v2521 = vpop.f32.mrb[0].mxu0
      %v2522 = vadd.f32 0.0, %v2521
      %v2523 = vpop.f32.mrb[0].mxu0
      %2524 = vmatprep.mubr.f32.mxu0 0.0
      %2525 = vmatmul.mubr.f32.gmra.mrb[0].mxu0 %v2345
      %v2526 = vpop.f32.mrb[0].mxu0
      %v2527 = vadd.f32 0.0, %v2526
      %v2528 = vpop.f32.mrb[0].mxu0
      %2529 = vmatprep.mubr.f32.mxu0 0.0
      %2530 = vmatmul.mubr.f32.gmra.mrb[0].mxu0 %v2348
      %v2531 = vpop.f32.mrb[0].mxu0
      %v2532 = vadd.f32 0.0, %v2531
      %v2533 = vpop.f32.mrb[0].mxu0
      %2534 = vmatprep.mubr.f32.mxu0 0.0
      %2535 = vmatmul.mubr.f32.gmra.mrb[0].mxu0 %v2351
      %v2536 = vpop.f32.mrb[0].mxu0
      %v2537 = vadd.f32 0.0, %v2536
      %v2538 = vpop.f32.mrb[0].mxu0
      %2539 = vmatprep.mubr.f32.mxu0 0.0
      %2540 = vmatmul.mubr.f32.gmra.mrb[0].mxu0 %v2354
      %v2541 = vpop.f32.mrb[0].mxu0
      %v2542 = vadd.f32 0.0, %v2541
      %v2543 = vpop.f32.mrb[0].mxu0
      %2544 = vmatprep.mubr.f32.mxu0 0.0
      %2545 = vmatmul.mubr.f32.gmra.mrb[0].mxu0 %v2357
      %v2546 = vpop.f32.mrb[0].mxu0
      %v2547 = vadd.f32 0.0, %v2546
      %v2548 = vpop.f32.mrb[0].mxu0
      %2549 = vmatprep.mubr.f32.mxu0 0.0
      %2550 = vmatmul.mubr.f32.gmra.mrb[0].mxu0 %v2360
      %v2551 = vpop.f32.mrb[0].mxu0
      %v2552 = vadd.f32 0.0, %v2551
      %v2553 = vpop.f32.mrb[0].mxu0
      %2554 = vmatprep.mubr.f32.mxu0 0.0
      %2555 = vmatmul.mubr.f32.gmra.mrb[0].mxu0 %v2363
      %v2556 = vpop.f32.mrb[0].mxu0
      %v2557 = vadd.f32 0.0, %v2556
      %v2558 = vpop.f32.mrb[0].mxu0
      %2559 = vmatprep.mubr.f32.mxu0 0.0
      %2560 = vmatmul.mubr.f32.gmra.mrb[0].mxu0 %v2366
      %v2561 = vpop.f32.mrb[0].mxu0
      %v2562 = vadd.f32 0.0, %v2561
      %v2563 = vpop.f32.mrb[0].mxu0
      %2564 = vmatprep.mubr.f32.mxu0 0.0
      %2565 = vmatmul.mubr.f32.gmra.mrb[0].mxu0 %v2369
      %v2566 = vpop.f32.mrb[0].mxu0
      %v2567 = vadd.f32 0.0, %v2566
      %v2568 = vpop.f32.mrb[0].mxu0
      %2569 = vmatprep.mubr.f32.mxu0 0.0
      %2570 = vmatmul.mubr.f32.gmra.mrb[0].mxu0 %v2372
      %v2571 = vpop.f32.mrb[0].mxu0
      %v2572 = vadd.f32 0.0, %v2571
      %v2573 = vpop.f32.mrb[0].mxu0
      %2574 = vmatprep.mubr.f32.mxu0 0.0
      %2575 = vmatmul.mubr.f32.gmra.mrb[0].mxu0 %v2375
      %v2576 = vpop.f32.mrb[0].mxu0
      %v2577 = vadd.f32 0.0, %v2576
      %v2578 = vpop.f32.mrb[0].mxu0
      %2579 = vmatprep.mubr.f32.mxu0 0.0
      %2580 = vmatmul.mubr.f32.gmra.mrb[0].mxu0 %v2378
      %v2581 = vpop.f32.mrb[0].mxu0
      %v2582 = vadd.f32 0.0, %v2581
      %v2583 = vpop.f32.mrb[0].mxu0
      %2584 = vmatprep.mubr.f32.mxu0 0.0
      %2585 = vmatmul.mubr.f32.gmra.mrb[0].mxu0 %v2381
      %v2586 = vpop.f32.mrb[0].mxu0
      %v2587 = vadd.f32 0.0, %v2586
      %v2588 = vpop.f32.mrb[0].mxu0
      %2589 = vmatprep.mubr.f32.mxu0 0.0
      %2590 = vmatmul.mubr.f32.gmra.mrb[0].mxu0 %v2384
      %v2591 = vpop.f32.mrb[0].mxu0
      %v2592 = vadd.f32 0.0, %v2591
      %v2593 = vpop.f32.mrb[0].mxu0
      %2594 = vmatprep.mubr.f32.mxu0 0.0
      %2595 = vmatmul.mubr.f32.gmra.mrb[0].mxu0 %v2387
      %v2596 = vpop.f32.mrb[0].mxu0
      %v2597 = vadd.f32 0.0, %v2596
      %v2598 = vpop.f32.mrb[0].mxu0
      %2599 = vmatprep.mubr.f32.mxu0 0.0
      %2600 = vmatmul.mubr.f32.gmra.mrb[0].mxu0 %v2390
      %v2601 = vpop.f32.mrb[0].mxu0
      %v2602 = vadd.f32 0.0, %v2601
      %v2603 = vpop.f32.mrb[0].mxu0
      %2604 = vmatprep.mubr.f32.mxu0 0.0
      %2605 = vmatmul.mubr.f32.gmra.mrb[0].mxu0 %v2393
      %v2606 = vpop.f32.mrb[0].mxu0
      %v2607 = vadd.f32 0.0, %v2606
      %v2608 = vpop.f32.mrb[0].mxu0
      %2609 = vmatprep.mubr.f32.mxu0 0.0
      %2610 = vmatmul.mubr.f32.gmra.mrb[0].mxu0 %v2396
      %v2611 = vpop.f32.mrb[0].mxu0
      %v2612 = vadd.f32 0.0, %v2611
      %v2613 = vpop.f32.mrb[0].mxu0
      %2614 = vmatprep.mubr.f32.mxu0 0.0
      %2615 = vmatmul.mubr.f32.gmra.mrb[0].mxu0 %v2399
      %v2616 = vpop.f32.mrb[0].mxu0
      %v2617 = vadd.f32 0.0, %v2616
      %v2618 = vpop.f32.mrb[0].mxu0
      %2619 = vmatprep.mubr.f32.mxu0 0.0
      %2620 = vmatmul.mubr.f32.gmra.mrb[0].mxu0 %v2402
      %v2621 = vpop.f32.mrb[0].mxu0
      %v2622 = vadd.f32 0.0, %v2621
      %v2623 = vpop.f32.mrb[0].mxu0
      %2624 = vmatprep.mubr.f32.mxu0 0.0
      %2625 = vmatmul.mubr.f32.gmra.mrb[0].mxu0 %v2405
      %v2626 = vpop.f32.mrb[0].mxu0
      %v2627 = vadd.f32 0.0, %v2626
      %v2628 = vpop.f32.mrb[0].mxu0
      %2629 = vmatprep.mubr.f32.mxu0 0.0
      %2630 = vmatmul.mubr.f32.gmra.mrb[0].mxu0 %v2408
      %v2631 = vpop.f32.mrb[0].mxu0
      %v2632 = vadd.f32 0.0, %v2631
      %v2633 = vpop.f32.mrb[0].mxu0
      %2634 = vdwg.mxu0
      %v2635 = vadd.f32 %v2248, %v2477
      %v2636 = vadd.f32 %v2249, %v2482
      %v2637 = vadd.f32 %v2250, %v2487
      %v2638 = vadd.f32 %v2251, %v2492
      %v2639 = vadd.f32 %v2252, %v2497
      %v2640 = vadd.f32 %v2253, %v2502
      %v2641 = vadd.f32 %v2254, %v2507
      %v2642 = vadd.f32 %v2255, %v2512
      %v2643 = vadd.f32 %v2256, %v2517
      %v2644 = vadd.f32 %v2257, %v2522
      %v2645 = vadd.f32 %v2258, %v2527
      %v2646 = vadd.f32 %v2259, %v2532
      %v2647 = vadd.f32 %v2260, %v2537
      %v2648 = vadd.f32 %v2261, %v2542
      %v2649 = vadd.f32 %v2262, %v2547
      %v2650 = vadd.f32 %v2263, %v2552
      %v2651 = vadd.f32 %v2264, %v2557
      %v2652 = vadd.f32 %v2265, %v2562
      %v2653 = vadd.f32 %v2266, %v2567
      %v2654 = vadd.f32 %v2267, %v2572
      %v2655 = vadd.f32 %v2268, %v2577
      %v2656 = vadd.f32 %v2269, %v2582
      %v2657 = vadd.f32 %v2270, %v2587
      %v2658 = vadd.f32 %v2271, %v2592
      %v2659 = vadd.f32 %v2272, %v2597
      %v2660 = vadd.f32 %v2273, %v2602
      %v2661 = vadd.f32 %v2274, %v2607
      %v2662 = vadd.f32 %v2275, %v2612
      %v2663 = vadd.f32 %v2276, %v2617
      %v2664 = vadd.f32 %v2277, %v2622
      %v2665 = vadd.f32 %v2278, %v2627
      %v2666 = vadd.f32 %v2279, %v2632
      %v2667 = vld [vmem:[%s906 + $0x1] sm:$0xff]
      %v2668 = vld [vmem:[%s906 + $0x9] sm:$0xff]
      %v2669 = vld [vmem:[%s906 + $0x19] sm:$0xff]
      %v2670 = vld [vmem:[%s906 + $0x21] sm:$0xff]
      %v2671 = vld [vmem:[%s906 + $0x31] sm:$0xff]
      %v2672 = vld [vmem:[%s906 + $0x39] sm:$0xff]
      %v2673 = vld [vmem:[%s906 + $0x49] sm:$0xff]
      %v2674 = vld [vmem:[%s906 + $0x51] sm:$0xff]
      %v2675 = vld [vmem:[%s906 + $0x61] sm:$0xff]
      %v2676 = vld [vmem:[%s906 + $0x69] sm:$0xff]
      %v2677 = vld [vmem:[%s906 + $0x79] sm:$0xff]
      %v2678 = vld [vmem:[%s906 + $0x81] sm:$0xff]
      %v2679 = vld [vmem:[%s906 + $0x91] sm:$0xff]
      %v2680 = vld [vmem:[%s906 + $0x99] sm:$0xff]
      %v2681 = vld [vmem:[%s906 + $0xa9] sm:$0xff]
      %v2682 = vld [vmem:[%s906 + $0xb1] sm:$0xff]
      %v2683 = vld [vmem:[%s906 + $0xc1] sm:$0xff]
      %v2684 = vld [vmem:[%s906 + $0xc9] sm:$0xff]
      %v2685 = vld [vmem:[%s906 + $0xd9] sm:$0xff]
      %v2686 = vld [vmem:[%s906 + $0xe1] sm:$0xff]
      %v2687 = vld [vmem:[%s906 + $0xf1] sm:$0xff]
      %v2688 = vld [vmem:[%s906 + $0xf9] sm:$0xff]
      %v2689 = vld [vmem:[%s906 + $0x109] sm:$0xff]
      %v2690 = vld [vmem:[%s906 + $0x111] sm:$0xff]
      %v2691 = vld [vmem:[%s906 + $0x121] sm:$0xff]
      %v2692 = vld [vmem:[%s906 + $0x129] sm:$0xff]
      %v2693 = vld [vmem:[%s906 + $0x139] sm:$0xff]
      %v2694 = vld [vmem:[%s906 + $0x141] sm:$0xff]
      %v2695 = vld [vmem:[%s906 + $0x151] sm:$0xff]
      %v2696 = vld [vmem:[%s906 + $0x159] sm:$0xff]
      %v2697 = vld [vmem:[%s906 + $0x169] sm:$0xff]
      %v2698 = vld [vmem:[%s906 + $0x171] sm:$0xff]
      %s2699 = scalar_lea.vmem %s5, 32
      %v2700 = vld [vmem:[%s2699] sm:$0xff]
      %v2702 = vsel %vm907, %v2667, 0
      %v2705 = vsel %vm907, %v2668, 0
      %v2708 = vsel %vm907, %v2669, 0
      %v2711 = vsel %vm907, %v2670, 0
      %v2714 = vsel %vm907, %v2671, 0
      %v2717 = vsel %vm907, %v2672, 0
      %v2720 = vsel %vm907, %v2673, 0
      %v2723 = vsel %vm907, %v2674, 0
      %v2726 = vsel %vm907, %v2675, 0
      %v2729 = vsel %vm907, %v2676, 0
      %v2732 = vsel %vm907, %v2677, 0
      %v2735 = vsel %vm907, %v2678, 0
      %v2738 = vsel %vm907, %v2679, 0
      %v2741 = vsel %vm907, %v2680, 0
      %v2744 = vsel %vm907, %v2681, 0
      %v2747 = vsel %vm907, %v2682, 0
      %v2750 = vsel %vm907, %v2683, 0
      %v2753 = vsel %vm907, %v2684, 0
      %v2756 = vsel %vm907, %v2685, 0
      %v2759 = vsel %vm907, %v2686, 0
      %v2762 = vsel %vm907, %v2687, 0
      %v2765 = vsel %vm907, %v2688, 0
      %v2768 = vsel %vm907, %v2689, 0
      %v2771 = vsel %vm907, %v2690, 0
      %v2774 = vsel %vm907, %v2691, 0
      %v2777 = vsel %vm907, %v2692, 0
      %v2780 = vsel %vm907, %v2693, 0
      %v2783 = vsel %vm907, %v2694, 0
      %v2786 = vsel %vm907, %v2695, 0
      %v2789 = vsel %vm907, %v2696, 0
      %v2792 = vsel %vm907, %v2697, 0
      %v2795 = vsel %vm907, %v2698, 0
      %2797 = vmatprep.subr.mxu0 0.0
      %2798 = vmatpush1.msra.mxu0 %v2700
      %2799 = vmatprep.subr.mxu0 0.0
      %2800 = vmatpush1.msra.mxu0 0.0
      %2801 = vmatprep.subr.mxu0 0.0
      %2802 = vmatpush1.msra.mxu0 0.0
      %2803 = vmatprep.subr.mxu0 0.0
      %2804 = vmatpush1.msra.mxu0 0.0
      %2805 = vmatprep.subr.mxu0 0.0
      %2806 = vmatpush1.msra.mxu0 0.0
      %2807 = vmatprep.subr.mxu0 0.0
      %2808 = vmatpush1.msra.mxu0 0.0
      %2809 = vmatprep.subr.mxu0 0.0
      %2810 = vmatpush1.msra.mxu0 0.0
      %2811 = vmatprep.subr.mxu0 0.0
      %2812 = vmatpush1.msra.mxu0 0.0
      %2813 = vmatprep.subr.mxu0 0.0
      %2814 = vmatpush1.msra.mxu0 0.0
      %2815 = vmatprep.subr.mxu0 0.0
      %2816 = vmatpush1.msra.mxu0 0.0
      %2817 = vmatprep.subr.mxu0 0.0
      %2818 = vmatpush1.msra.mxu0 0.0
      %2819 = vmatprep.subr.mxu0 0.0
      %2820 = vmatpush1.msra.mxu0 0.0
      %2821 = vmatprep.subr.mxu0 0.0
      %2822 = vmatpush1.msra.mxu0 0.0
      %2823 = vmatprep.subr.mxu0 0.0
      %2824 = vmatpush1.msra.mxu0 0.0
      %2825 = vmatprep.subr.mxu0 0.0
      %2826 = vmatpush1.msra.mxu0 0.0
      %2827 = vmatprep.subr.mxu0 0.0
      %2828 = vmatpush1.msra.mxu0 0.0
      %2829 = vmatprep.subr.mxu0 0.0
      %2830 = vmatpush1.msra.mxu0 0.0
      %2831 = vmatprep.subr.mxu0 0.0
      %2832 = vmatpush1.msra.mxu0 0.0
      %2833 = vmatprep.subr.mxu0 0.0
      %2834 = vmatpush1.msra.mxu0 0.0
      %2835 = vmatprep.subr.mxu0 0.0
      %2836 = vmatpush1.msra.mxu0 0.0
      %2837 = vmatprep.subr.mxu0 0.0
      %2838 = vmatpush1.msra.mxu0 0.0
      %2839 = vmatprep.subr.mxu0 0.0
      %2840 = vmatpush1.msra.mxu0 0.0
      %2841 = vmatprep.subr.mxu0 0.0
      %2842 = vmatpush1.msra.mxu0 0.0
      %2843 = vmatprep.subr.mxu0 0.0
      %2844 = vmatpush1.msra.mxu0 0.0
      %2845 = vmatprep.subr.mxu0 0.0
      %2846 = vmatpush1.msra.mxu0 0.0
      %2847 = vmatprep.subr.mxu0 0.0
      %2848 = vmatpush1.msra.mxu0 0.0
      %2849 = vmatprep.subr.mxu0 0.0
      %2850 = vmatpush1.msra.mxu0 0.0
      %2851 = vmatprep.subr.mxu0 0.0
      %2852 = vmatpush1.msra.mxu0 0.0
      %2853 = vmatprep.subr.mxu0 0.0
      %2854 = vmatpush1.msra.mxu0 0.0
      %2855 = vmatprep.subr.mxu0 0.0
      %2856 = vmatpush1.msra.mxu0 0.0
      %2857 = vmatprep.subr.mxu0 0.0
      %2858 = vmatpush1.msra.mxu0 0.0
      %2859 = vmatprep.subr.mxu0 0.0
      %2860 = vmatpush1.msra.mxu0 0.0
      %2861 = vmatprep.mubr.f32.mxu0 0.0
      %2862 = vmatmul.mubr.f32.gmra.mrb[0].mxu0 %v2702
      %v2863 = vpop.f32.mrb[0].mxu0
      %v2864 = vadd.f32 0.0, %v2863
      %v2865 = vpop.f32.mrb[0].mxu0
      %2866 = vmatprep.mubr.f32.mxu0 0.0
      %2867 = vmatmul.mubr.f32.gmra.mrb[0].mxu0 %v2705
      %v2868 = vpop.f32.mrb[0].mxu0
      %v2869 = vadd.f32 0.0, %v2868
      %v2870 = vpop.f32.mrb[0].mxu0
      %2871 = vmatprep.mubr.f32.mxu0 0.0
      %2872 = vmatmul.mubr.f32.gmra.mrb[0].mxu0 %v2708
      %v2873 = vpop.f32.mrb[0].mxu0
      %v2874 = vadd.f32 0.0, %v2873
      %v2875 = vpop.f32.mrb[0].mxu0
      %2876 = vmatprep.mubr.f32.mxu0 0.0
      %2877 = vmatmul.mubr.f32.gmra.mrb[0].mxu0 %v2711
      %v2878 = vpop.f32.mrb[0].mxu0
      %v2879 = vadd.f32 0.0, %v2878
      %v2880 = vpop.f32.mrb[0].mxu0
      %2881 = vmatprep.mubr.f32.mxu0 0.0
      %2882 = vmatmul.mubr.f32.gmra.mrb[0].mxu0 %v2714
      %v2883 = vpop.f32.mrb[0].mxu0
      %v2884 = vadd.f32 0.0, %v2883
      %v2885 = vpop.f32.mrb[0].mxu0
      %2886 = vmatprep.mubr.f32.mxu0 0.0
      %2887 = vmatmul.mubr.f32.gmra.mrb[0].mxu0 %v2717
      %v2888 = vpop.f32.mrb[0].mxu0
      %v2889 = vadd.f32 0.0, %v2888
      %v2890 = vpop.f32.mrb[0].mxu0
      %2891 = vmatprep.mubr.f32.mxu0 0.0
      %2892 = vmatmul.mubr.f32.gmra.mrb[0].mxu0 %v2720
      %v2893 = vpop.f32.mrb[0].mxu0
      %v2894 = vadd.f32 0.0, %v2893
      %v2895 = vpop.f32.mrb[0].mxu0
      %2896 = vmatprep.mubr.f32.mxu0 0.0
      %2897 = vmatmul.mubr.f32.gmra.mrb[0].mxu0 %v2723
      %v2898 = vpop.f32.mrb[0].mxu0
      %v2899 = vadd.f32 0.0, %v2898
      %v2900 = vpop.f32.mrb[0].mxu0
      %2901 = vmatprep.mubr.f32.mxu0 0.0
      %2902 = vmatmul.mubr.f32.gmra.mrb[0].mxu0 %v2726
      %v2903 = vpop.f32.mrb[0].mxu0
      %v2904 = vadd.f32 0.0, %v2903
      %v2905 = vpop.f32.mrb[0].mxu0
      %2906 = vmatprep.mubr.f32.mxu0 0.0
      %2907 = vmatmul.mubr.f32.gmra.mrb[0].mxu0 %v2729
      %v2908 = vpop.f32.mrb[0].mxu0
      %v2909 = vadd.f32 0.0, %v2908
      %v2910 = vpop.f32.mrb[0].mxu0
      %2911 = vmatprep.mubr.f32.mxu0 0.0
      %2912 = vmatmul.mubr.f32.gmra.mrb[0].mxu0 %v2732
      %v2913 = vpop.f32.mrb[0].mxu0
      %v2914 = vadd.f32 0.0, %v2913
      %v2915 = vpop.f32.mrb[0].mxu0
      %2916 = vmatprep.mubr.f32.mxu0 0.0
      %2917 = vmatmul.mubr.f32.gmra.mrb[0].mxu0 %v2735
      %v2918 = vpop.f32.mrb[0].mxu0
      %v2919 = vadd.f32 0.0, %v2918
      %v2920 = vpop.f32.mrb[0].mxu0
      %2921 = vmatprep.mubr.f32.mxu0 0.0
      %2922 = vmatmul.mubr.f32.gmra.mrb[0].mxu0 %v2738
      %v2923 = vpop.f32.mrb[0].mxu0
      %v2924 = vadd.f32 0.0, %v2923
      %v2925 = vpop.f32.mrb[0].mxu0
      %2926 = vmatprep.mubr.f32.mxu0 0.0
      %2927 = vmatmul.mubr.f32.gmra.mrb[0].mxu0 %v2741
      %v2928 = vpop.f32.mrb[0].mxu0
      %v2929 = vadd.f32 0.0, %v2928
      %v2930 = vpop.f32.mrb[0].mxu0
      %2931 = vmatprep.mubr.f32.mxu0 0.0
      %2932 = vmatmul.mubr.f32.gmra.mrb[0].mxu0 %v2744
      %v2933 = vpop.f32.mrb[0].mxu0
      %v2934 = vadd.f32 0.0, %v2933
      %v2935 = vpop.f32.mrb[0].mxu0
      %2936 = vmatprep.mubr.f32.mxu0 0.0
      %2937 = vmatmul.mubr.f32.gmra.mrb[0].mxu0 %v2747
      %v2938 = vpop.f32.mrb[0].mxu0
      %v2939 = vadd.f32 0.0, %v2938
      %v2940 = vpop.f32.mrb[0].mxu0
      %2941 = vmatprep.mubr.f32.mxu0 0.0
      %2942 = vmatmul.mubr.f32.gmra.mrb[0].mxu0 %v2750
      %v2943 = vpop.f32.mrb[0].mxu0
      %v2944 = vadd.f32 0.0, %v2943
      %v2945 = vpop.f32.mrb[0].mxu0
      %2946 = vmatprep.mubr.f32.mxu0 0.0
      %2947 = vmatmul.mubr.f32.gmra.mrb[0].mxu0 %v2753
      %v2948 = vpop.f32.mrb[0].mxu0
      %v2949 = vadd.f32 0.0, %v2948
      %v2950 = vpop.f32.mrb[0].mxu0
      %2951 = vmatprep.mubr.f32.mxu0 0.0
      %2952 = vmatmul.mubr.f32.gmra.mrb[0].mxu0 %v2756
      %v2953 = vpop.f32.mrb[0].mxu0
      %v2954 = vadd.f32 0.0, %v2953
      %v2955 = vpop.f32.mrb[0].mxu0
      %2956 = vmatprep.mubr.f32.mxu0 0.0
      %2957 = vmatmul.mubr.f32.gmra.mrb[0].mxu0 %v2759
      %v2958 = vpop.f32.mrb[0].mxu0
      %v2959 = vadd.f32 0.0, %v2958
      %v2960 = vpop.f32.mrb[0].mxu0
      %2961 = vmatprep.mubr.f32.mxu0 0.0
      %2962 = vmatmul.mubr.f32.gmra.mrb[0].mxu0 %v2762
      %v2963 = vpop.f32.mrb[0].mxu0
      %v2964 = vadd.f32 0.0, %v2963
      %v2965 = vpop.f32.mrb[0].mxu0
      %2966 = vmatprep.mubr.f32.mxu0 0.0
      %2967 = vmatmul.mubr.f32.gmra.mrb[0].mxu0 %v2765
      %v2968 = vpop.f32.mrb[0].mxu0
      %v2969 = vadd.f32 0.0, %v2968
      %v2970 = vpop.f32.mrb[0].mxu0
      %2971 = vmatprep.mubr.f32.mxu0 0.0
      %2972 = vmatmul.mubr.f32.gmra.mrb[0].mxu0 %v2768
      %v2973 = vpop.f32.mrb[0].mxu0
      %v2974 = vadd.f32 0.0, %v2973
      %v2975 = vpop.f32.mrb[0].mxu0
      %2976 = vmatprep.mubr.f32.mxu0 0.0
      %2977 = vmatmul.mubr.f32.gmra.mrb[0].mxu0 %v2771
      %v2978 = vpop.f32.mrb[0].mxu0
      %v2979 = vadd.f32 0.0, %v2978
      %v2980 = vpop.f32.mrb[0].mxu0
      %2981 = vmatprep.mubr.f32.mxu0 0.0
      %2982 = vmatmul.mubr.f32.gmra.mrb[0].mxu0 %v2774
      %v2983 = vpop.f32.mrb[0].mxu0
      %v2984 = vadd.f32 0.0, %v2983
      %v2985 = vpop.f32.mrb[0].mxu0
      %2986 = vmatprep.mubr.f32.mxu0 0.0
      %2987 = vmatmul.mubr.f32.gmra.mrb[0].mxu0 %v2777
      %v2988 = vpop.f32.mrb[0].mxu0
      %v2989 = vadd.f32 0.0, %v2988
      %v2990 = vpop.f32.mrb[0].mxu0
      %2991 = vmatprep.mubr.f32.mxu0 0.0
      %2992 = vmatmul.mubr.f32.gmra.mrb[0].mxu0 %v2780
      %v2993 = vpop.f32.mrb[0].mxu0
      %v2994 = vadd.f32 0.0, %v2993
      %v2995 = vpop.f32.mrb[0].mxu0
      %2996 = vmatprep.mubr.f32.mxu0 0.0
      %2997 = vmatmul.mubr.f32.gmra.mrb[0].mxu0 %v2783
      %v2998 = vpop.f32.mrb[0].mxu0
      %v2999 = vadd.f32 0.0, %v2998
      %v3000 = vpop.f32.mrb[0].mxu0
      %3001 = vmatprep.mubr.f32.mxu0 0.0
      %3002 = vmatmul.mubr.f32.gmra.mrb[0].mxu0 %v2786
      %v3003 = vpop.f32.mrb[0].mxu0
      %v3004 = vadd.f32 0.0, %v3003
      %v3005 = vpop.f32.mrb[0].mxu0
      %3006 = vmatprep.mubr.f32.mxu0 0.0
      %3007 = vmatmul.mubr.f32.gmra.mrb[0].mxu0 %v2789
      %v3008 = vpop.f32.mrb[0].mxu0
      %v3009 = vadd.f32 0.0, %v3008
      %v3010 = vpop.f32.mrb[0].mxu0
      %3011 = vmatprep.mubr.f32.mxu0 0.0
      %3012 = vmatmul.mubr.f32.gmra.mrb[0].mxu0 %v2792
      %v3013 = vpop.f32.mrb[0].mxu0
      %v3014 = vadd.f32 0.0, %v3013
      %v3015 = vpop.f32.mrb[0].mxu0
      %3016 = vmatprep.mubr.f32.mxu0 0.0
      %3017 = vmatmul.mubr.f32.gmra.mrb[0].mxu0 %v2795
      %v3018 = vpop.f32.mrb[0].mxu0
      %v3019 = vadd.f32 0.0, %v3018
      %v3020 = vpop.f32.mrb[0].mxu0
      %3021 = vdwg.mxu0
      %v3022 = vadd.f32 %v2635, %v2864
      %v3023 = vadd.f32 %v2636, %v2869
      %v3024 = vadd.f32 %v2637, %v2874
      %v3025 = vadd.f32 %v2638, %v2879
      %v3026 = vadd.f32 %v2639, %v2884
      %v3027 = vadd.f32 %v2640, %v2889
      %v3028 = vadd.f32 %v2641, %v2894
      %v3029 = vadd.f32 %v2642, %v2899
      %v3030 = vadd.f32 %v2643, %v2904
      %v3031 = vadd.f32 %v2644, %v2909
      %v3032 = vadd.f32 %v2645, %v2914
      %v3033 = vadd.f32 %v2646, %v2919
      %v3034 = vadd.f32 %v2647, %v2924
      %v3035 = vadd.f32 %v2648, %v2929
      %v3036 = vadd.f32 %v2649, %v2934
      %v3037 = vadd.f32 %v2650, %v2939
      %v3038 = vadd.f32 %v2651, %v2944
      %v3039 = vadd.f32 %v2652, %v2949
      %v3040 = vadd.f32 %v2653, %v2954
      %v3041 = vadd.f32 %v2654, %v2959
      %v3042 = vadd.f32 %v2655, %v2964
      %v3043 = vadd.f32 %v2656, %v2969
      %v3044 = vadd.f32 %v2657, %v2974
      %v3045 = vadd.f32 %v2658, %v2979
      %v3046 = vadd.f32 %v2659, %v2984
      %v3047 = vadd.f32 %v2660, %v2989
      %v3048 = vadd.f32 %v2661, %v2994
      %v3049 = vadd.f32 %v2662, %v2999
      %v3050 = vadd.f32 %v2663, %v3004
      %v3051 = vadd.f32 %v2664, %v3009
      %v3052 = vadd.f32 %v2665, %v3014
      %v3053 = vadd.f32 %v2666, %v3019
      %v3054 = vld [vmem:[%s906 + $0x2] sm:$0xff]
      %v3055 = vld [vmem:[%s906 + $0xa] sm:$0xff]
      %v3056 = vld [vmem:[%s906 + $0x1a] sm:$0xff]
      %v3057 = vld [vmem:[%s906 + $0x22] sm:$0xff]
      %v3058 = vld [vmem:[%s906 + $0x32] sm:$0xff]
      %v3059 = vld [vmem:[%s906 + $0x3a] sm:$0xff]
      %v3060 = vld [vmem:[%s906 + $0x4a] sm:$0xff]
      %v3061 = vld [vmem:[%s906 + $0x52] sm:$0xff]
      %v3062 = vld [vmem:[%s906 + $0x62] sm:$0xff]
      %v3063 = vld [vmem:[%s906 + $0x6a] sm:$0xff]
      %v3064 = vld [vmem:[%s906 + $0x7a] sm:$0xff]
      %v3065 = vld [vmem:[%s906 + $0x82] sm:$0xff]
      %v3066 = vld [vmem:[%s906 + $0x92] sm:$0xff]
      %v3067 = vld [vmem:[%s906 + $0x9a] sm:$0xff]
      %v3068 = vld [vmem:[%s906 + $0xaa] sm:$0xff]
      %v3069 = vld [vmem:[%s906 + $0xb2] sm:$0xff]
      %v3070 = vld [vmem:[%s906 + $0xc2] sm:$0xff]
      %v3071 = vld [vmem:[%s906 + $0xca] sm:$0xff]
      %v3072 = vld [vmem:[%s906 + $0xda] sm:$0xff]
      %v3073 = vld [vmem:[%s906 + $0xe2] sm:$0xff]
      %v3074 = vld [vmem:[%s906 + $0xf2] sm:$0xff]
      %v3075 = vld [vmem:[%s906 + $0xfa] sm:$0xff]
      %v3076 = vld [vmem:[%s906 + $0x10a] sm:$0xff]
      %v3077 = vld [vmem:[%s906 + $0x112] sm:$0xff]
      %v3078 = vld [vmem:[%s906 + $0x122] sm:$0xff]
      %v3079 = vld [vmem:[%s906 + $0x12a] sm:$0xff]
      %v3080 = vld [vmem:[%s906 + $0x13a] sm:$0xff]
      %v3081 = vld [vmem:[%s906 + $0x142] sm:$0xff]
      %v3082 = vld [vmem:[%s906 + $0x152] sm:$0xff]
      %v3083 = vld [vmem:[%s906 + $0x15a] sm:$0xff]
      %v3084 = vld [vmem:[%s906 + $0x16a] sm:$0xff]
      %v3085 = vld [vmem:[%s906 + $0x172] sm:$0xff]
      %s3086 = scalar_lea.vmem %s5, 40
      %v3087 = vld [vmem:[%s3086] sm:$0xff]
      %v3089 = vsel %vm907, %v3054, 0
      %v3092 = vsel %vm907, %v3055, 0
      %v3095 = vsel %vm907, %v3056, 0
      %v3098 = vsel %vm907, %v3057, 0
      %v3101 = vsel %vm907, %v3058, 0
      %v3104 = vsel %vm907, %v3059, 0
      %v3107 = vsel %vm907, %v3060, 0
      %v3110 = vsel %vm907, %v3061, 0
      %v3113 = vsel %vm907, %v3062, 0
      %v3116 = vsel %vm907, %v3063, 0
      %v3119 = vsel %vm907, %v3064, 0
      %v3122 = vsel %vm907, %v3065, 0
      %v3125 = vsel %vm907, %v3066, 0
      %v3128 = vsel %vm907, %v3067, 0
      %v3131 = vsel %vm907, %v3068, 0
      %v3134 = vsel %vm907, %v3069, 0
      %v3137 = vsel %vm907, %v3070, 0
      %v3140 = vsel %vm907, %v3071, 0
      %v3143 = vsel %vm907, %v3072, 0
      %v3146 = vsel %vm907, %v3073, 0
      %v3149 = vsel %vm907, %v3074, 0
      %v3152 = vsel %vm907, %v3075, 0
      %v3155 = vsel %vm907, %v3076, 0
      %v3158 = vsel %vm907, %v3077, 0
      %v3161 = vsel %vm907, %v3078, 0
      %v3164 = vsel %vm907, %v3079, 0
      %v3167 = vsel %vm907, %v3080, 0
      %v3170 = vsel %vm907, %v3081, 0
      %v3173 = vsel %vm907, %v3082, 0
      %v3176 = vsel %vm907, %v3083, 0
      %v3179 = vsel %vm907, %v3084, 0
      %v3182 = vsel %vm907, %v3085, 0
      %3184 = vmatprep.subr.mxu0 0.0
      %3185 = vmatpush1.msra.mxu0 %v3087
      %3186 = vmatprep.subr.mxu0 0.0
      %3187 = vmatpush1.msra.mxu0 0.0
      %3188 = vmatprep.subr.mxu0 0.0
      %3189 = vmatpush1.msra.mxu0 0.0
      %3190 = vmatprep.subr.mxu0 0.0
      %3191 = vmatpush1.msra.mxu0 0.0
      %3192 = vmatprep.subr.mxu0 0.0
      %3193 = vmatpush1.msra.mxu0 0.0
      %3194 = vmatprep.subr.mxu0 0.0
      %3195 = vmatpush1.msra.mxu0 0.0
      %3196 = vmatprep.subr.mxu0 0.0
      %3197 = vmatpush1.msra.mxu0 0.0
      %3198 = vmatprep.subr.mxu0 0.0
      %3199 = vmatpush1.msra.mxu0 0.0
      %3200 = vmatprep.subr.mxu0 0.0
      %3201 = vmatpush1.msra.mxu0 0.0
      %3202 = vmatprep.subr.mxu0 0.0
      %3203 = vmatpush1.msra.mxu0 0.0
      %3204 = vmatprep.subr.mxu0 0.0
      %3205 = vmatpush1.msra.mxu0 0.0
      %3206 = vmatprep.subr.mxu0 0.0
      %3207 = vmatpush1.msra.mxu0 0.0
      %3208 = vmatprep.subr.mxu0 0.0
      %3209 = vmatpush1.msra.mxu0 0.0
      %3210 = vmatprep.subr.mxu0 0.0
      %3211 = vmatpush1.msra.mxu0 0.0
      %3212 = vmatprep.subr.mxu0 0.0
      %3213 = vmatpush1.msra.mxu0 0.0
      %3214 = vmatprep.subr.mxu0 0.0
      %3215 = vmatpush1.msra.mxu0 0.0
      %3216 = vmatprep.subr.mxu0 0.0
      %3217 = vmatpush1.msra.mxu0 0.0
      %3218 = vmatprep.subr.mxu0 0.0
      %3219 = vmatpush1.msra.mxu0 0.0
      %3220 = vmatprep.subr.mxu0 0.0
      %3221 = vmatpush1.msra.mxu0 0.0
      %3222 = vmatprep.subr.mxu0 0.0
      %3223 = vmatpush1.msra.mxu0 0.0
      %3224 = vmatprep.subr.mxu0 0.0
      %3225 = vmatpush1.msra.mxu0 0.0
      %3226 = vmatprep.subr.mxu0 0.0
      %3227 = vmatpush1.msra.mxu0 0.0
      %3228 = vmatprep.subr.mxu0 0.0
      %3229 = vmatpush1.msra.mxu0 0.0
      %3230 = vmatprep.subr.mxu0 0.0
      %3231 = vmatpush1.msra.mxu0 0.0
      %3232 = vmatprep.subr.mxu0 0.0
      %3233 = vmatpush1.msra.mxu0 0.0
      %3234 = vmatprep.subr.mxu0 0.0
      %3235 = vmatpush1.msra.mxu0 0.0
      %3236 = vmatprep.subr.mxu0 0.0
      %3237 = vmatpush1.msra.mxu0 0.0
      %3238 = vmatprep.subr.mxu0 0.0
      %3239 = vmatpush1.msra.mxu0 0.0
      %3240 = vmatprep.subr.mxu0 0.0
      %3241 = vmatpush1.msra.mxu0 0.0
      %3242 = vmatprep.subr.mxu0 0.0
      %3243 = vmatpush1.msra.mxu0 0.0
      %3244 = vmatprep.subr.mxu0 0.0
      %3245 = vmatpush1.msra.mxu0 0.0
      %3246 = vmatprep.subr.mxu0 0.0
      %3247 = vmatpush1.msra.mxu0 0.0
      %3248 = vmatprep.mubr.f32.mxu0 0.0
      %3249 = vmatmul.mubr.f32.gmra.mrb[0].mxu0 %v3089
      %v3250 = vpop.f32.mrb[0].mxu0
      %v3251 = vadd.f32 0.0, %v3250
      %v3252 = vpop.f32.mrb[0].mxu0
      %3253 = vmatprep.mubr.f32.mxu0 0.0
      %3254 = vmatmul.mubr.f32.gmra.mrb[0].mxu0 %v3092
      %v3255 = vpop.f32.mrb[0].mxu0
      %v3256 = vadd.f32 0.0, %v3255
      %v3257 = vpop.f32.mrb[0].mxu0
      %3258 = vmatprep.mubr.f32.mxu0 0.0
      %3259 = vmatmul.mubr.f32.gmra.mrb[0].mxu0 %v3095
      %v3260 = vpop.f32.mrb[0].mxu0
      %v3261 = vadd.f32 0.0, %v3260
      %v3262 = vpop.f32.mrb[0].mxu0
      %3263 = vmatprep.mubr.f32.mxu0 0.0
      %3264 = vmatmul.mubr.f32.gmra.mrb[0].mxu0 %v3098
      %v3265 = vpop.f32.mrb[0].mxu0
      %v3266 = vadd.f32 0.0, %v3265
      %v3267 = vpop.f32.mrb[0].mxu0
      %3268 = vmatprep.mubr.f32.mxu0 0.0
      %3269 = vmatmul.mubr.f32.gmra.mrb[0].mxu0 %v3101
      %v3270 = vpop.f32.mrb[0].mxu0
      %v3271 = vadd.f32 0.0, %v3270
      %v3272 = vpop.f32.mrb[0].mxu0
      %3273 = vmatprep.mubr.f32.mxu0 0.0
      %3274 = vmatmul.mubr.f32.gmra.mrb[0].mxu0 %v3104
      %v3275 = vpop.f32.mrb[0].mxu0
      %v3276 = vadd.f32 0.0, %v3275
      %v3277 = vpop.f32.mrb[0].mxu0
      %3278 = vmatprep.mubr.f32.mxu0 0.0
      %3279 = vmatmul.mubr.f32.gmra.mrb[0].mxu0 %v3107
      %v3280 = vpop.f32.mrb[0].mxu0
      %v3281 = vadd.f32 0.0, %v3280
      %v3282 = vpop.f32.mrb[0].mxu0
      %3283 = vmatprep.mubr.f32.mxu0 0.0
      %3284 = vmatmul.mubr.f32.gmra.mrb[0].mxu0 %v3110
      %v3285 = vpop.f32.mrb[0].mxu0
      %v3286 = vadd.f32 0.0, %v3285
      %v3287 = vpop.f32.mrb[0].mxu0
      %3288 = vmatprep.mubr.f32.mxu0 0.0
      %3289 = vmatmul.mubr.f32.gmra.mrb[0].mxu0 %v3113
      %v3290 = vpop.f32.mrb[0].mxu0
      %v3291 = vadd.f32 0.0, %v3290
      %v3292 = vpop.f32.mrb[0].mxu0
      %3293 = vmatprep.mubr.f32.mxu0 0.0
      %3294 = vmatmul.mubr.f32.gmra.mrb[0].mxu0 %v3116
      %v3295 = vpop.f32.mrb[0].mxu0
      %v3296 = vadd.f32 0.0, %v3295
      %v3297 = vpop.f32.mrb[0].mxu0
      %3298 = vmatprep.mubr.f32.mxu0 0.0
      %3299 = vmatmul.mubr.f32.gmra.mrb[0].mxu0 %v3119
      %v3300 = vpop.f32.mrb[0].mxu0
      %v3301 = vadd.f32 0.0, %v3300
      %v3302 = vpop.f32.mrb[0].mxu0
      %3303 = vmatprep.mubr.f32.mxu0 0.0
      %3304 = vmatmul.mubr.f32.gmra.mrb[0].mxu0 %v3122
      %v3305 = vpop.f32.mrb[0].mxu0
      %v3306 = vadd.f32 0.0, %v3305
      %v3307 = vpop.f32.mrb[0].mxu0
      %3308 = vmatprep.mubr.f32.mxu0 0.0
      %3309 = vmatmul.mubr.f32.gmra.mrb[0].mxu0 %v3125
      %v3310 = vpop.f32.mrb[0].mxu0
      %v3311 = vadd.f32 0.0, %v3310
      %v3312 = vpop.f32.mrb[0].mxu0
      %3313 = vmatprep.mubr.f32.mxu0 0.0
      %3314 = vmatmul.mubr.f32.gmra.mrb[0].mxu0 %v3128
      %v3315 = vpop.f32.mrb[0].mxu0
      %v3316 = vadd.f32 0.0, %v3315
      %v3317 = vpop.f32.mrb[0].mxu0
      %3318 = vmatprep.mubr.f32.mxu0 0.0
      %3319 = vmatmul.mubr.f32.gmra.mrb[0].mxu0 %v3131
      %v3320 = vpop.f32.mrb[0].mxu0
      %v3321 = vadd.f32 0.0, %v3320
      %v3322 = vpop.f32.mrb[0].mxu0
      %3323 = vmatprep.mubr.f32.mxu0 0.0
      %3324 = vmatmul.mubr.f32.gmra.mrb[0].mxu0 %v3134
      %v3325 = vpop.f32.mrb[0].mxu0
      %v3326 = vadd.f32 0.0, %v3325
      %v3327 = vpop.f32.mrb[0].mxu0
      %3328 = vmatprep.mubr.f32.mxu0 0.0
      %3329 = vmatmul.mubr.f32.gmra.mrb[0].mxu0 %v3137
      %v3330 = vpop.f32.mrb[0].mxu0
      %v3331 = vadd.f32 0.0, %v3330
      %v3332 = vpop.f32.mrb[0].mxu0
      %3333 = vmatprep.mubr.f32.mxu0 0.0
      %3334 = vmatmul.mubr.f32.gmra.mrb[0].mxu0 %v3140
      %v3335 = vpop.f32.mrb[0].mxu0
      %v3336 = vadd.f32 0.0, %v3335
      %v3337 = vpop.f32.mrb[0].mxu0
      %3338 = vmatprep.mubr.f32.mxu0 0.0
      %3339 = vmatmul.mubr.f32.gmra.mrb[0].mxu0 %v3143
      %v3340 = vpop.f32.mrb[0].mxu0
      %v3341 = vadd.f32 0.0, %v3340
      %v3342 = vpop.f32.mrb[0].mxu0
      %3343 = vmatprep.mubr.f32.mxu0 0.0
      %3344 = vmatmul.mubr.f32.gmra.mrb[0].mxu0 %v3146
      %v3345 = vpop.f32.mrb[0].mxu0
      %v3346 = vadd.f32 0.0, %v3345
      %v3347 = vpop.f32.mrb[0].mxu0
      %3348 = vmatprep.mubr.f32.mxu0 0.0
      %3349 = vmatmul.mubr.f32.gmra.mrb[0].mxu0 %v3149
      %v3350 = vpop.f32.mrb[0].mxu0
      %v3351 = vadd.f32 0.0, %v3350
      %v3352 = vpop.f32.mrb[0].mxu0
      %3353 = vmatprep.mubr.f32.mxu0 0.0
      %3354 = vmatmul.mubr.f32.gmra.mrb[0].mxu0 %v3152
      %v3355 = vpop.f32.mrb[0].mxu0
      %v3356 = vadd.f32 0.0, %v3355
      %v3357 = vpop.f32.mrb[0].mxu0
      %3358 = vmatprep.mubr.f32.mxu0 0.0
      %3359 = vmatmul.mubr.f32.gmra.mrb[0].mxu0 %v3155
      %v3360 = vpop.f32.mrb[0].mxu0
      %v3361 = vadd.f32 0.0, %v3360
      %v3362 = vpop.f32.mrb[0].mxu0
      %3363 = vmatprep.mubr.f32.mxu0 0.0
      %3364 = vmatmul.mubr.f32.gmra.mrb[0].mxu0 %v3158
      %v3365 = vpop.f32.mrb[0].mxu0
      %v3366 = vadd.f32 0.0, %v3365
      %v3367 = vpop.f32.mrb[0].mxu0
      %3368 = vmatprep.mubr.f32.mxu0 0.0
      %3369 = vmatmul.mubr.f32.gmra.mrb[0].mxu0 %v3161
      %v3370 = vpop.f32.mrb[0].mxu0
      %v3371 = vadd.f32 0.0, %v3370
      %v3372 = vpop.f32.mrb[0].mxu0
      %3373 = vmatprep.mubr.f32.mxu0 0.0
      %3374 = vmatmul.mubr.f32.gmra.mrb[0].mxu0 %v3164
      %v3375 = vpop.f32.mrb[0].mxu0
      %v3376 = vadd.f32 0.0, %v3375
      %v3377 = vpop.f32.mrb[0].mxu0
      %3378 = vmatprep.mubr.f32.mxu0 0.0
      %3379 = vmatmul.mubr.f32.gmra.mrb[0].mxu0 %v3167
      %v3380 = vpop.f32.mrb[0].mxu0
      %v3381 = vadd.f32 0.0, %v3380
      %v3382 = vpop.f32.mrb[0].mxu0
      %3383 = vmatprep.mubr.f32.mxu0 0.0
      %3384 = vmatmul.mubr.f32.gmra.mrb[0].mxu0 %v3170
      %v3385 = vpop.f32.mrb[0].mxu0
      %v3386 = vadd.f32 0.0, %v3385
      %v3387 = vpop.f32.mrb[0].mxu0
      %3388 = vmatprep.mubr.f32.mxu0 0.0
      %3389 = vmatmul.mubr.f32.gmra.mrb[0].mxu0 %v3173
      %v3390 = vpop.f32.mrb[0].mxu0
      %v3391 = vadd.f32 0.0, %v3390
      %v3392 = vpop.f32.mrb[0].mxu0
      %3393 = vmatprep.mubr.f32.mxu0 0.0
      %3394 = vmatmul.mubr.f32.gmra.mrb[0].mxu0 %v3176
      %v3395 = vpop.f32.mrb[0].mxu0
      %v3396 = vadd.f32 0.0, %v3395
      %v3397 = vpop.f32.mrb[0].mxu0
      %3398 = vmatprep.mubr.f32.mxu0 0.0
      %3399 = vmatmul.mubr.f32.gmra.mrb[0].mxu0 %v3179
      %v3400 = vpop.f32.mrb[0].mxu0
      %v3401 = vadd.f32 0.0, %v3400
      %v3402 = vpop.f32.mrb[0].mxu0
      %3403 = vmatprep.mubr.f32.mxu0 0.0
      %3404 = vmatmul.mubr.f32.gmra.mrb[0].mxu0 %v3182
      %v3405 = vpop.f32.mrb[0].mxu0
      %v3406 = vadd.f32 0.0, %v3405
      %v3407 = vpop.f32.mrb[0].mxu0
      %3408 = vdwg.mxu0
      %v3409 = vadd.f32 %v3022, %v3251
      %v3410 = vadd.f32 %v3023, %v3256
      %v3411 = vadd.f32 %v3024, %v3261
      %v3412 = vadd.f32 %v3025, %v3266
      %v3413 = vadd.f32 %v3026, %v3271
      %v3414 = vadd.f32 %v3027, %v3276
      %v3415 = vadd.f32 %v3028, %v3281
      %v3416 = vadd.f32 %v3029, %v3286
      %v3417 = vadd.f32 %v3030, %v3291
      %v3418 = vadd.f32 %v3031, %v3296
      %v3419 = vadd.f32 %v3032, %v3301
      %v3420 = vadd.f32 %v3033, %v3306
      %v3421 = vadd.f32 %v3034, %v3311
      %v3422 = vadd.f32 %v3035, %v3316
      %v3423 = vadd.f32 %v3036, %v3321
      %v3424 = vadd.f32 %v3037, %v3326
      %v3425 = vadd.f32 %v3038, %v3331
      %v3426 = vadd.f32 %v3039, %v3336
      %v3427 = vadd.f32 %v3040, %v3341
      %v3428 = vadd.f32 %v3041, %v3346
      %v3429 = vadd.f32 %v3042, %v3351
      %v3430 = vadd.f32 %v3043, %v3356
      %v3431 = vadd.f32 %v3044, %v3361
      %v3432 = vadd.f32 %v3045, %v3366
      %v3433 = vadd.f32 %v3046, %v3371
      %v3434 = vadd.f32 %v3047, %v3376
      %v3435 = vadd.f32 %v3048, %v3381
      %v3436 = vadd.f32 %v3049, %v3386
      %v3437 = vadd.f32 %v3050, %v3391
      %v3438 = vadd.f32 %v3051, %v3396
      %v3439 = vadd.f32 %v3052, %v3401
      %v3440 = vadd.f32 %v3053, %v3406
      %s3441 = scalar_lea.vmem [#allocation2], 48
      %v3442 = vld [vmem:[%s3441] sm:$0xff]
      %v3443 = vld [vmem:[%s3441 + $0x8] sm:$0xff]
      %v3444 = vld [vmem:[%s3441 + $0x18] sm:$0xff]
      %v3445 = vld [vmem:[%s3441 + $0x20] sm:$0xff]
      %v3446 = vld [vmem:[%s3441 + $0x30] sm:$0xff]
      %v3447 = vld [vmem:[%s3441 + $0x38] sm:$0xff]
      %v3448 = vld [vmem:[%s3441 + $0x48] sm:$0xff]
      %v3449 = vld [vmem:[%s3441 + $0x50] sm:$0xff]
      %v3450 = vld [vmem:[%s3441 + $0x60] sm:$0xff]
      %v3451 = vld [vmem:[%s3441 + $0x68] sm:$0xff]
      %v3452 = vld [vmem:[%s3441 + $0x78] sm:$0xff]
      %v3453 = vld [vmem:[%s3441 + $0x80] sm:$0xff]
      %v3454 = vld [vmem:[%s3441 + $0x90] sm:$0xff]
      %v3455 = vld [vmem:[%s3441 + $0x98] sm:$0xff]
      %v3456 = vld [vmem:[%s3441 + $0xa8] sm:$0xff]
      %v3457 = vld [vmem:[%s3441 + $0xb0] sm:$0xff]
      %v3458 = vld [vmem:[%s3441 + $0xc0] sm:$0xff]
      %v3459 = vld [vmem:[%s3441 + $0xc8] sm:$0xff]
      %v3460 = vld [vmem:[%s3441 + $0xd8] sm:$0xff]
      %v3461 = vld [vmem:[%s3441 + $0xe0] sm:$0xff]
      %v3462 = vld [vmem:[%s3441 + $0xf0] sm:$0xff]
      %v3463 = vld [vmem:[%s3441 + $0xf8] sm:$0xff]
      %v3464 = vld [vmem:[%s3441 + $0x108] sm:$0xff]
      %v3465 = vld [vmem:[%s3441 + $0x110] sm:$0xff]
      %v3466 = vld [vmem:[%s3441 + $0x120] sm:$0xff]
      %v3467 = vld [vmem:[%s3441 + $0x128] sm:$0xff]
      %v3468 = vld [vmem:[%s3441 + $0x138] sm:$0xff]
      %v3469 = vld [vmem:[%s3441 + $0x140] sm:$0xff]
      %v3470 = vld [vmem:[%s3441 + $0x150] sm:$0xff]
      %v3471 = vld [vmem:[%s3441 + $0x158] sm:$0xff]
      %v3472 = vld [vmem:[%s3441 + $0x168] sm:$0xff]
      %v3473 = vld [vmem:[%s3441 + $0x170] sm:$0xff]
      %s3474 = scalar_lea.vmem %s5, 48
      %v3475 = vld [vmem:[%s3474] sm:$0xff]
      %v3477 = vsel %vm907, %v3442, 0
      %v3480 = vsel %vm907, %v3443, 0
      %v3483 = vsel %vm907, %v3444, 0
      %v3486 = vsel %vm907, %v3445, 0
      %v3489 = vsel %vm907, %v3446, 0
      %v3492 = vsel %vm907, %v3447, 0
      %v3495 = vsel %vm907, %v3448, 0
      %v3498 = vsel %vm907, %v3449, 0
      %v3501 = vsel %vm907, %v3450, 0
      %v3504 = vsel %vm907, %v3451, 0
      %v3507 = vsel %vm907, %v3452, 0
      %v3510 = vsel %vm907, %v3453, 0
      %v3513 = vsel %vm907, %v3454, 0
      %v3516 = vsel %vm907, %v3455, 0
      %v3519 = vsel %vm907, %v3456, 0
      %v3522 = vsel %vm907, %v3457, 0
      %v3525 = vsel %vm907, %v3458, 0
      %v3528 = vsel %vm907, %v3459, 0
      %v3531 = vsel %vm907, %v3460, 0
      %v3534 = vsel %vm907, %v3461, 0
      %v3537 = vsel %vm907, %v3462, 0
      %v3540 = vsel %vm907, %v3463, 0
      %v3543 = vsel %vm907, %v3464, 0
      %v3546 = vsel %vm907, %v3465, 0
      %v3549 = vsel %vm907, %v3466, 0
      %v3552 = vsel %vm907, %v3467, 0
      %v3555 = vsel %vm907, %v3468, 0
      %v3558 = vsel %vm907, %v3469, 0
      %v3561 = vsel %vm907, %v3470, 0
      %v3564 = vsel %vm907, %v3471, 0
      %v3567 = vsel %vm907, %v3472, 0
      %v3570 = vsel %vm907, %v3473, 0
      %3572 = vmatprep.subr.mxu0 0.0
      %3573 = vmatpush1.msra.mxu0 %v3475
      %3574 = vmatprep.subr.mxu0 0.0
      %3575 = vmatpush1.msra.mxu0 0.0
      %3576 = vmatprep.subr.mxu0 0.0
      %3577 = vmatpush1.msra.mxu0 0.0
      %3578 = vmatprep.subr.mxu0 0.0
      %3579 = vmatpush1.msra.mxu0 0.0
      %3580 = vmatprep.subr.mxu0 0.0
      %3581 = vmatpush1.msra.mxu0 0.0
      %3582 = vmatprep.subr.mxu0 0.0
      %3583 = vmatpush1.msra.mxu0 0.0
      %3584 = vmatprep.subr.mxu0 0.0
      %3585 = vmatpush1.msra.mxu0 0.0
      %3586 = vmatprep.subr.mxu0 0.0
      %3587 = vmatpush1.msra.mxu0 0.0
      %3588 = vmatprep.subr.mxu0 0.0
      %3589 = vmatpush1.msra.mxu0 0.0
      %3590 = vmatprep.subr.mxu0 0.0
      %3591 = vmatpush1.msra.mxu0 0.0
      %3592 = vmatprep.subr.mxu0 0.0
      %3593 = vmatpush1.msra.mxu0 0.0
      %3594 = vmatprep.subr.mxu0 0.0
      %3595 = vmatpush1.msra.mxu0 0.0
      %3596 = vmatprep.subr.mxu0 0.0
      %3597 = vmatpush1.msra.mxu0 0.0
      %3598 = vmatprep.subr.mxu0 0.0
      %3599 = vmatpush1.msra.mxu0 0.0
      %3600 = vmatprep.subr.mxu0 0.0
      %3601 = vmatpush1.msra.mxu0 0.0
      %3602 = vmatprep.subr.mxu0 0.0
      %3603 = vmatpush1.msra.mxu0 0.0
      %3604 = vmatprep.subr.mxu0 0.0
      %3605 = vmatpush1.msra.mxu0 0.0
      %3606 = vmatprep.subr.mxu0 0.0
      %3607 = vmatpush1.msra.mxu0 0.0
      %3608 = vmatprep.subr.mxu0 0.0
      %3609 = vmatpush1.msra.mxu0 0.0
      %3610 = vmatprep.subr.mxu0 0.0
      %3611 = vmatpush1.msra.mxu0 0.0
      %3612 = vmatprep.subr.mxu0 0.0
      %3613 = vmatpush1.msra.mxu0 0.0
      %3614 = vmatprep.subr.mxu0 0.0
      %3615 = vmatpush1.msra.mxu0 0.0
      %3616 = vmatprep.subr.mxu0 0.0
      %3617 = vmatpush1.msra.mxu0 0.0
      %3618 = vmatprep.subr.mxu0 0.0
      %3619 = vmatpush1.msra.mxu0 0.0
      %3620 = vmatprep.subr.mxu0 0.0
      %3621 = vmatpush1.msra.mxu0 0.0
      %3622 = vmatprep.subr.mxu0 0.0
      %3623 = vmatpush1.msra.mxu0 0.0
      %3624 = vmatprep.subr.mxu0 0.0
      %3625 = vmatpush1.msra.mxu0 0.0
      %3626 = vmatprep.subr.mxu0 0.0
      %3627 = vmatpush1.msra.mxu0 0.0
      %3628 = vmatprep.subr.mxu0 0.0
      %3629 = vmatpush1.msra.mxu0 0.0
      %3630 = vmatprep.subr.mxu0 0.0
      %3631 = vmatpush1.msra.mxu0 0.0
      %3632 = vmatprep.subr.mxu0 0.0
      %3633 = vmatpush1.msra.mxu0 0.0
      %3634 = vmatprep.subr.mxu0 0.0
      %3635 = vmatpush1.msra.mxu0 0.0
      %3636 = vmatprep.mubr.f32.mxu0 0.0
      %3637 = vmatmul.mubr.f32.gmra.mrb[0].mxu0 %v3477
      %v3638 = vpop.f32.mrb[0].mxu0
      %v3639 = vadd.f32 0.0, %v3638
      %v3640 = vpop.f32.mrb[0].mxu0
      %3641 = vmatprep.mubr.f32.mxu0 0.0
      %3642 = vmatmul.mubr.f32.gmra.mrb[0].mxu0 %v3480
      %v3643 = vpop.f32.mrb[0].mxu0
      %v3644 = vadd.f32 0.0, %v3643
      %v3645 = vpop.f32.mrb[0].mxu0
      %3646 = vmatprep.mubr.f32.mxu0 0.0
      %3647 = vmatmul.mubr.f32.gmra.mrb[0].mxu0 %v3483
      %v3648 = vpop.f32.mrb[0].mxu0
      %v3649 = vadd.f32 0.0, %v3648
      %v3650 = vpop.f32.mrb[0].mxu0
      %3651 = vmatprep.mubr.f32.mxu0 0.0
      %3652 = vmatmul.mubr.f32.gmra.mrb[0].mxu0 %v3486
      %v3653 = vpop.f32.mrb[0].mxu0
      %v3654 = vadd.f32 0.0, %v3653
      %v3655 = vpop.f32.mrb[0].mxu0
      %3656 = vmatprep.mubr.f32.mxu0 0.0
      %3657 = vmatmul.mubr.f32.gmra.mrb[0].mxu0 %v3489
      %v3658 = vpop.f32.mrb[0].mxu0
      %v3659 = vadd.f32 0.0, %v3658
      %v3660 = vpop.f32.mrb[0].mxu0
      %3661 = vmatprep.mubr.f32.mxu0 0.0
      %3662 = vmatmul.mubr.f32.gmra.mrb[0].mxu0 %v3492
      %v3663 = vpop.f32.mrb[0].mxu0
      %v3664 = vadd.f32 0.0, %v3663
      %v3665 = vpop.f32.mrb[0].mxu0
      %3666 = vmatprep.mubr.f32.mxu0 0.0
      %3667 = vmatmul.mubr.f32.gmra.mrb[0].mxu0 %v3495
      %v3668 = vpop.f32.mrb[0].mxu0
      %v3669 = vadd.f32 0.0, %v3668
      %v3670 = vpop.f32.mrb[0].mxu0
      %3671 = vmatprep.mubr.f32.mxu0 0.0
      %3672 = vmatmul.mubr.f32.gmra.mrb[0].mxu0 %v3498
      %v3673 = vpop.f32.mrb[0].mxu0
      %v3674 = vadd.f32 0.0, %v3673
      %v3675 = vpop.f32.mrb[0].mxu0
      %3676 = vmatprep.mubr.f32.mxu0 0.0
      %3677 = vmatmul.mubr.f32.gmra.mrb[0].mxu0 %v3501
      %v3678 = vpop.f32.mrb[0].mxu0
      %v3679 = vadd.f32 0.0, %v3678
      %v3680 = vpop.f32.mrb[0].mxu0
      %3681 = vmatprep.mubr.f32.mxu0 0.0
      %3682 = vmatmul.mubr.f32.gmra.mrb[0].mxu0 %v3504
      %v3683 = vpop.f32.mrb[0].mxu0
      %v3684 = vadd.f32 0.0, %v3683
      %v3685 = vpop.f32.mrb[0].mxu0
      %3686 = vmatprep.mubr.f32.mxu0 0.0
      %3687 = vmatmul.mubr.f32.gmra.mrb[0].mxu0 %v3507
      %v3688 = vpop.f32.mrb[0].mxu0
      %v3689 = vadd.f32 0.0, %v3688
      %v3690 = vpop.f32.mrb[0].mxu0
      %3691 = vmatprep.mubr.f32.mxu0 0.0
      %3692 = vmatmul.mubr.f32.gmra.mrb[0].mxu0 %v3510
      %v3693 = vpop.f32.mrb[0].mxu0
      %v3694 = vadd.f32 0.0, %v3693
      %v3695 = vpop.f32.mrb[0].mxu0
      %3696 = vmatprep.mubr.f32.mxu0 0.0
      %3697 = vmatmul.mubr.f32.gmra.mrb[0].mxu0 %v3513
      %v3698 = vpop.f32.mrb[0].mxu0
      %v3699 = vadd.f32 0.0, %v3698
      %v3700 = vpop.f32.mrb[0].mxu0
      %3701 = vmatprep.mubr.f32.mxu0 0.0
      %3702 = vmatmul.mubr.f32.gmra.mrb[0].mxu0 %v3516
      %v3703 = vpop.f32.mrb[0].mxu0
      %v3704 = vadd.f32 0.0, %v3703
      %v3705 = vpop.f32.mrb[0].mxu0
      %3706 = vmatprep.mubr.f32.mxu0 0.0
      %3707 = vmatmul.mubr.f32.gmra.mrb[0].mxu0 %v3519
      %v3708 = vpop.f32.mrb[0].mxu0
      %v3709 = vadd.f32 0.0, %v3708
      %v3710 = vpop.f32.mrb[0].mxu0
      %3711 = vmatprep.mubr.f32.mxu0 0.0
      %3712 = vmatmul.mubr.f32.gmra.mrb[0].mxu0 %v3522
      %v3713 = vpop.f32.mrb[0].mxu0
      %v3714 = vadd.f32 0.0, %v3713
      %v3715 = vpop.f32.mrb[0].mxu0
      %3716 = vmatprep.mubr.f32.mxu0 0.0
      %3717 = vmatmul.mubr.f32.gmra.mrb[0].mxu0 %v3525
      %v3718 = vpop.f32.mrb[0].mxu0
      %v3719 = vadd.f32 0.0, %v3718
      %v3720 = vpop.f32.mrb[0].mxu0
      %3721 = vmatprep.mubr.f32.mxu0 0.0
      %3722 = vmatmul.mubr.f32.gmra.mrb[0].mxu0 %v3528
      %v3723 = vpop.f32.mrb[0].mxu0
      %v3724 = vadd.f32 0.0, %v3723
      %v3725 = vpop.f32.mrb[0].mxu0
      %3726 = vmatprep.mubr.f32.mxu0 0.0
      %3727 = vmatmul.mubr.f32.gmra.mrb[0].mxu0 %v3531
      %v3728 = vpop.f32.mrb[0].mxu0
      %v3729 = vadd.f32 0.0, %v3728
      %v3730 = vpop.f32.mrb[0].mxu0
      %3731 = vmatprep.mubr.f32.mxu0 0.0
      %3732 = vmatmul.mubr.f32.gmra.mrb[0].mxu0 %v3534
      %v3733 = vpop.f32.mrb[0].mxu0
      %v3734 = vadd.f32 0.0, %v3733
      %v3735 = vpop.f32.mrb[0].mxu0
      %3736 = vmatprep.mubr.f32.mxu0 0.0
      %3737 = vmatmul.mubr.f32.gmra.mrb[0].mxu0 %v3537
      %v3738 = vpop.f32.mrb[0].mxu0
      %v3739 = vadd.f32 0.0, %v3738
      %v3740 = vpop.f32.mrb[0].mxu0
      %3741 = vmatprep.mubr.f32.mxu0 0.0
      %3742 = vmatmul.mubr.f32.gmra.mrb[0].mxu0 %v3540
      %v3743 = vpop.f32.mrb[0].mxu0
      %v3744 = vadd.f32 0.0, %v3743
      %v3745 = vpop.f32.mrb[0].mxu0
      %3746 = vmatprep.mubr.f32.mxu0 0.0
      %3747 = vmatmul.mubr.f32.gmra.mrb[0].mxu0 %v3543
      %v3748 = vpop.f32.mrb[0].mxu0
      %v3749 = vadd.f32 0.0, %v3748
      %v3750 = vpop.f32.mrb[0].mxu0
      %3751 = vmatprep.mubr.f32.mxu0 0.0
      %3752 = vmatmul.mubr.f32.gmra.mrb[0].mxu0 %v3546
      %v3753 = vpop.f32.mrb[0].mxu0
      %v3754 = vadd.f32 0.0, %v3753
      %v3755 = vpop.f32.mrb[0].mxu0
      %3756 = vmatprep.mubr.f32.mxu0 0.0
      %3757 = vmatmul.mubr.f32.gmra.mrb[0].mxu0 %v3549
      %v3758 = vpop.f32.mrb[0].mxu0
      %v3759 = vadd.f32 0.0, %v3758
      %v3760 = vpop.f32.mrb[0].mxu0
      %3761 = vmatprep.mubr.f32.mxu0 0.0
      %3762 = vmatmul.mubr.f32.gmra.mrb[0].mxu0 %v3552
      %v3763 = vpop.f32.mrb[0].mxu0
      %v3764 = vadd.f32 0.0, %v3763
      %v3765 = vpop.f32.mrb[0].mxu0
      %3766 = vmatprep.mubr.f32.mxu0 0.0
      %3767 = vmatmul.mubr.f32.gmra.mrb[0].mxu0 %v3555
      %v3768 = vpop.f32.mrb[0].mxu0
      %v3769 = vadd.f32 0.0, %v3768
      %v3770 = vpop.f32.mrb[0].mxu0
      %3771 = vmatprep.mubr.f32.mxu0 0.0
      %3772 = vmatmul.mubr.f32.gmra.mrb[0].mxu0 %v3558
      %v3773 = vpop.f32.mrb[0].mxu0
      %v3774 = vadd.f32 0.0, %v3773
      %v3775 = vpop.f32.mrb[0].mxu0
      %3776 = vmatprep.mubr.f32.mxu0 0.0
      %3777 = vmatmul.mubr.f32.gmra.mrb[0].mxu0 %v3561
      %v3778 = vpop.f32.mrb[0].mxu0
      %v3779 = vadd.f32 0.0, %v3778
      %v3780 = vpop.f32.mrb[0].mxu0
      %3781 = vmatprep.mubr.f32.mxu0 0.0
      %3782 = vmatmul.mubr.f32.gmra.mrb[0].mxu0 %v3564
      %v3783 = vpop.f32.mrb[0].mxu0
      %v3784 = vadd.f32 0.0, %v3783
      %v3785 = vpop.f32.mrb[0].mxu0
      %3786 = vmatprep.mubr.f32.mxu0 0.0
      %3787 = vmatmul.mubr.f32.gmra.mrb[0].mxu0 %v3567
      %v3788 = vpop.f32.mrb[0].mxu0
      %v3789 = vadd.f32 0.0, %v3788
      %v3790 = vpop.f32.mrb[0].mxu0
      %3791 = vmatprep.mubr.f32.mxu0 0.0
      %3792 = vmatmul.mubr.f32.gmra.mrb[0].mxu0 %v3570
      %v3793 = vpop.f32.mrb[0].mxu0
      %v3794 = vadd.f32 0.0, %v3793
      %v3795 = vpop.f32.mrb[0].mxu0
      %3796 = vdwg.mxu0
      %v3797 = vadd.f32 %v3409, %v3639
      %v3798 = vadd.f32 %v3410, %v3644
      %v3799 = vadd.f32 %v3411, %v3649
      %v3800 = vadd.f32 %v3412, %v3654
      %v3801 = vadd.f32 %v3413, %v3659
      %v3802 = vadd.f32 %v3414, %v3664
      %v3803 = vadd.f32 %v3415, %v3669
      %v3804 = vadd.f32 %v3416, %v3674
      %v3805 = vadd.f32 %v3417, %v3679
      %v3806 = vadd.f32 %v3418, %v3684
      %v3807 = vadd.f32 %v3419, %v3689
      %v3808 = vadd.f32 %v3420, %v3694
      %v3809 = vadd.f32 %v3421, %v3699
      %v3810 = vadd.f32 %v3422, %v3704
      %v3811 = vadd.f32 %v3423, %v3709
      %v3812 = vadd.f32 %v3424, %v3714
      %v3813 = vadd.f32 %v3425, %v3719
      %v3814 = vadd.f32 %v3426, %v3724
      %v3815 = vadd.f32 %v3427, %v3729
      %v3816 = vadd.f32 %v3428, %v3734
      %v3817 = vadd.f32 %v3429, %v3739
      %v3818 = vadd.f32 %v3430, %v3744
      %v3819 = vadd.f32 %v3431, %v3749
      %v3820 = vadd.f32 %v3432, %v3754
      %v3821 = vadd.f32 %v3433, %v3759
      %v3822 = vadd.f32 %v3434, %v3764
      %v3823 = vadd.f32 %v3435, %v3769
      %v3824 = vadd.f32 %v3436, %v3774
      %v3825 = vadd.f32 %v3437, %v3779
      %v3826 = vadd.f32 %v3438, %v3784
      %v3827 = vadd.f32 %v3439, %v3789
      %v3828 = vadd.f32 %v3440, %v3794
      %v3829 = vld [vmem:[%s3441 + $0x1] sm:$0xff]
      %v3830 = vld [vmem:[%s3441 + $0x9] sm:$0xff]
      %v3831 = vld [vmem:[%s3441 + $0x19] sm:$0xff]
      %v3832 = vld [vmem:[%s3441 + $0x21] sm:$0xff]
      %v3833 = vld [vmem:[%s3441 + $0x31] sm:$0xff]
      %v3834 = vld [vmem:[%s3441 + $0x39] sm:$0xff]
      %v3835 = vld [vmem:[%s3441 + $0x49] sm:$0xff]
      %v3836 = vld [vmem:[%s3441 + $0x51] sm:$0xff]
      %v3837 = vld [vmem:[%s3441 + $0x61] sm:$0xff]
      %v3838 = vld [vmem:[%s3441 + $0x69] sm:$0xff]
      %v3839 = vld [vmem:[%s3441 + $0x79] sm:$0xff]
      %v3840 = vld [vmem:[%s3441 + $0x81] sm:$0xff]
      %v3841 = vld [vmem:[%s3441 + $0x91] sm:$0xff]
      %v3842 = vld [vmem:[%s3441 + $0x99] sm:$0xff]
      %v3843 = vld [vmem:[%s3441 + $0xa9] sm:$0xff]
      %v3844 = vld [vmem:[%s3441 + $0xb1] sm:$0xff]
      %v3845 = vld [vmem:[%s3441 + $0xc1] sm:$0xff]
      %v3846 = vld [vmem:[%s3441 + $0xc9] sm:$0xff]
      %v3847 = vld [vmem:[%s3441 + $0xd9] sm:$0xff]
      %v3848 = vld [vmem:[%s3441 + $0xe1] sm:$0xff]
      %v3849 = vld [vmem:[%s3441 + $0xf1] sm:$0xff]
      %v3850 = vld [vmem:[%s3441 + $0xf9] sm:$0xff]
      %v3851 = vld [vmem:[%s3441 + $0x109] sm:$0xff]
      %v3852 = vld [vmem:[%s3441 + $0x111] sm:$0xff]
      %v3853 = vld [vmem:[%s3441 + $0x121] sm:$0xff]
      %v3854 = vld [vmem:[%s3441 + $0x129] sm:$0xff]
      %v3855 = vld [vmem:[%s3441 + $0x139] sm:$0xff]
      %v3856 = vld [vmem:[%s3441 + $0x141] sm:$0xff]
      %v3857 = vld [vmem:[%s3441 + $0x151] sm:$0xff]
      %v3858 = vld [vmem:[%s3441 + $0x159] sm:$0xff]
      %v3859 = vld [vmem:[%s3441 + $0x169] sm:$0xff]
      %v3860 = vld [vmem:[%s3441 + $0x171] sm:$0xff]
      %s3861 = scalar_lea.vmem %s5, 56
      %v3862 = vld [vmem:[%s3861] sm:$0xff]
      %v3864 = vsel %vm907, %v3829, 0
      %v3867 = vsel %vm907, %v3830, 0
      %v3870 = vsel %vm907, %v3831, 0
      %v3873 = vsel %vm907, %v3832, 0
      %v3876 = vsel %vm907, %v3833, 0
      %v3879 = vsel %vm907, %v3834, 0
      %v3882 = vsel %vm907, %v3835, 0
      %v3885 = vsel %vm907, %v3836, 0
      %v3888 = vsel %vm907, %v3837, 0
      %v3891 = vsel %vm907, %v3838, 0
      %v3894 = vsel %vm907, %v3839, 0
      %v3897 = vsel %vm907, %v3840, 0
      %v3900 = vsel %vm907, %v3841, 0
      %v3903 = vsel %vm907, %v3842, 0
      %v3906 = vsel %vm907, %v3843, 0
      %v3909 = vsel %vm907, %v3844, 0
      %v3912 = vsel %vm907, %v3845, 0
      %v3915 = vsel %vm907, %v3846, 0
      %v3918 = vsel %vm907, %v3847, 0
      %v3921 = vsel %vm907, %v3848, 0
      %v3924 = vsel %vm907, %v3849, 0
      %v3927 = vsel %vm907, %v3850, 0
      %v3930 = vsel %vm907, %v3851, 0
      %v3933 = vsel %vm907, %v3852, 0
      %v3936 = vsel %vm907, %v3853, 0
      %v3939 = vsel %vm907, %v3854, 0
      %v3942 = vsel %vm907, %v3855, 0
      %v3945 = vsel %vm907, %v3856, 0
      %v3948 = vsel %vm907, %v3857, 0
      %v3951 = vsel %vm907, %v3858, 0
      %v3954 = vsel %vm907, %v3859, 0
      %v3957 = vsel %vm907, %v3860, 0
      %3959 = vmatprep.subr.mxu0 0.0
      %3960 = vmatpush1.msra.mxu0 %v3862
      %3961 = vmatprep.subr.mxu0 0.0
      %3962 = vmatpush1.msra.mxu0 0.0
      %3963 = vmatprep.subr.mxu0 0.0
      %3964 = vmatpush1.msra.mxu0 0.0
      %3965 = vmatprep.subr.mxu0 0.0
      %3966 = vmatpush1.msra.mxu0 0.0
      %3967 = vmatprep.subr.mxu0 0.0
      %3968 = vmatpush1.msra.mxu0 0.0
      %3969 = vmatprep.subr.mxu0 0.0
      %3970 = vmatpush1.msra.mxu0 0.0
      %3971 = vmatprep.subr.mxu0 0.0
      %3972 = vmatpush1.msra.mxu0 0.0
      %3973 = vmatprep.subr.mxu0 0.0
      %3974 = vmatpush1.msra.mxu0 0.0
      %3975 = vmatprep.subr.mxu0 0.0
      %3976 = vmatpush1.msra.mxu0 0.0
      %3977 = vmatprep.subr.mxu0 0.0
      %3978 = vmatpush1.msra.mxu0 0.0
      %3979 = vmatprep.subr.mxu0 0.0
      %3980 = vmatpush1.msra.mxu0 0.0
      %3981 = vmatprep.subr.mxu0 0.0
      %3982 = vmatpush1.msra.mxu0 0.0
      %3983 = vmatprep.subr.mxu0 0.0
      %3984 = vmatpush1.msra.mxu0 0.0
      %3985 = vmatprep.subr.mxu0 0.0
      %3986 = vmatpush1.msra.mxu0 0.0
      %3987 = vmatprep.subr.mxu0 0.0
      %3988 = vmatpush1.msra.mxu0 0.0
      %3989 = vmatprep.subr.mxu0 0.0
      %3990 = vmatpush1.msra.mxu0 0.0
      %3991 = vmatprep.subr.mxu0 0.0
      %3992 = vmatpush1.msra.mxu0 0.0
      %3993 = vmatprep.subr.mxu0 0.0
      %3994 = vmatpush1.msra.mxu0 0.0
      %3995 = vmatprep.subr.mxu0 0.0
      %3996 = vmatpush1.msra.mxu0 0.0
      %3997 = vmatprep.subr.mxu0 0.0
      %3998 = vmatpush1.msra.mxu0 0.0
      %3999 = vmatprep.subr.mxu0 0.0
      %4000 = vmatpush1.msra.mxu0 0.0
      %4001 = vmatprep.subr.mxu0 0.0
      %4002 = vmatpush1.msra.mxu0 0.0
      %4003 = vmatprep.subr.mxu0 0.0
      %4004 = vmatpush1.msra.mxu0 0.0
      %4005 = vmatprep.subr.mxu0 0.0
      %4006 = vmatpush1.msra.mxu0 0.0
      %4007 = vmatprep.subr.mxu0 0.0
      %4008 = vmatpush1.msra.mxu0 0.0
      %4009 = vmatprep.subr.mxu0 0.0
      %4010 = vmatpush1.msra.mxu0 0.0
      %4011 = vmatprep.subr.mxu0 0.0
      %4012 = vmatpush1.msra.mxu0 0.0
      %4013 = vmatprep.subr.mxu0 0.0
      %4014 = vmatpush1.msra.mxu0 0.0
      %4015 = vmatprep.subr.mxu0 0.0
      %4016 = vmatpush1.msra.mxu0 0.0
      %4017 = vmatprep.subr.mxu0 0.0
      %4018 = vmatpush1.msra.mxu0 0.0
      %4019 = vmatprep.subr.mxu0 0.0
      %4020 = vmatpush1.msra.mxu0 0.0
      %4021 = vmatprep.subr.mxu0 0.0
      %4022 = vmatpush1.msra.mxu0 0.0
      %4023 = vmatprep.mubr.f32.mxu0 0.0
      %4024 = vmatmul.mubr.f32.gmra.mrb[0].mxu0 %v3864
      %v4025 = vpop.f32.mrb[0].mxu0
      %v4026 = vadd.f32 0.0, %v4025
      %v4027 = vpop.f32.mrb[0].mxu0
      %4028 = vmatprep.mubr.f32.mxu0 0.0
      %4029 = vmatmul.mubr.f32.gmra.mrb[0].mxu0 %v3867
      %v4030 = vpop.f32.mrb[0].mxu0
      %v4031 = vadd.f32 0.0, %v4030
      %v4032 = vpop.f32.mrb[0].mxu0
      %4033 = vmatprep.mubr.f32.mxu0 0.0
      %4034 = vmatmul.mubr.f32.gmra.mrb[0].mxu0 %v3870
      %v4035 = vpop.f32.mrb[0].mxu0
      %v4036 = vadd.f32 0.0, %v4035
      %v4037 = vpop.f32.mrb[0].mxu0
      %4038 = vmatprep.mubr.f32.mxu0 0.0
      %4039 = vmatmul.mubr.f32.gmra.mrb[0].mxu0 %v3873
      %v4040 = vpop.f32.mrb[0].mxu0
      %v4041 = vadd.f32 0.0, %v4040
      %v4042 = vpop.f32.mrb[0].mxu0
      %4043 = vmatprep.mubr.f32.mxu0 0.0
      %4044 = vmatmul.mubr.f32.gmra.mrb[0].mxu0 %v3876
      %v4045 = vpop.f32.mrb[0].mxu0
      %v4046 = vadd.f32 0.0, %v4045
      %v4047 = vpop.f32.mrb[0].mxu0
      %4048 = vmatprep.mubr.f32.mxu0 0.0
      %4049 = vmatmul.mubr.f32.gmra.mrb[0].mxu0 %v3879
      %v4050 = vpop.f32.mrb[0].mxu0
      %v4051 = vadd.f32 0.0, %v4050
      %v4052 = vpop.f32.mrb[0].mxu0
      %4053 = vmatprep.mubr.f32.mxu0 0.0
      %4054 = vmatmul.mubr.f32.gmra.mrb[0].mxu0 %v3882
      %v4055 = vpop.f32.mrb[0].mxu0
      %v4056 = vadd.f32 0.0, %v4055
      %v4057 = vpop.f32.mrb[0].mxu0
      %4058 = vmatprep.mubr.f32.mxu0 0.0
      %4059 = vmatmul.mubr.f32.gmra.mrb[0].mxu0 %v3885
      %v4060 = vpop.f32.mrb[0].mxu0
      %v4061 = vadd.f32 0.0, %v4060
      %v4062 = vpop.f32.mrb[0].mxu0
      %4063 = vmatprep.mubr.f32.mxu0 0.0
      %4064 = vmatmul.mubr.f32.gmra.mrb[0].mxu0 %v3888
      %v4065 = vpop.f32.mrb[0].mxu0
      %v4066 = vadd.f32 0.0, %v4065
      %v4067 = vpop.f32.mrb[0].mxu0
      %4068 = vmatprep.mubr.f32.mxu0 0.0
      %4069 = vmatmul.mubr.f32.gmra.mrb[0].mxu0 %v3891
      %v4070 = vpop.f32.mrb[0].mxu0
      %v4071 = vadd.f32 0.0, %v4070
      %v4072 = vpop.f32.mrb[0].mxu0
      %4073 = vmatprep.mubr.f32.mxu0 0.0
      %4074 = vmatmul.mubr.f32.gmra.mrb[0].mxu0 %v3894
      %v4075 = vpop.f32.mrb[0].mxu0
      %v4076 = vadd.f32 0.0, %v4075
      %v4077 = vpop.f32.mrb[0].mxu0
      %4078 = vmatprep.mubr.f32.mxu0 0.0
      %4079 = vmatmul.mubr.f32.gmra.mrb[0].mxu0 %v3897
      %v4080 = vpop.f32.mrb[0].mxu0
      %v4081 = vadd.f32 0.0, %v4080
      %v4082 = vpop.f32.mrb[0].mxu0
      %4083 = vmatprep.mubr.f32.mxu0 0.0
      %4084 = vmatmul.mubr.f32.gmra.mrb[0].mxu0 %v3900
      %v4085 = vpop.f32.mrb[0].mxu0
      %v4086 = vadd.f32 0.0, %v4085
      %v4087 = vpop.f32.mrb[0].mxu0
      %4088 = vmatprep.mubr.f32.mxu0 0.0
      %4089 = vmatmul.mubr.f32.gmra.mrb[0].mxu0 %v3903
      %v4090 = vpop.f32.mrb[0].mxu0
      %v4091 = vadd.f32 0.0, %v4090
      %v4092 = vpop.f32.mrb[0].mxu0
      %4093 = vmatprep.mubr.f32.mxu0 0.0
      %4094 = vmatmul.mubr.f32.gmra.mrb[0].mxu0 %v3906
      %v4095 = vpop.f32.mrb[0].mxu0
      %v4096 = vadd.f32 0.0, %v4095
      %v4097 = vpop.f32.mrb[0].mxu0
      %4098 = vmatprep.mubr.f32.mxu0 0.0
      %4099 = vmatmul.mubr.f32.gmra.mrb[0].mxu0 %v3909
      %v4100 = vpop.f32.mrb[0].mxu0
      %v4101 = vadd.f32 0.0, %v4100
      %v4102 = vpop.f32.mrb[0].mxu0
      %4103 = vmatprep.mubr.f32.mxu0 0.0
      %4104 = vmatmul.mubr.f32.gmra.mrb[0].mxu0 %v3912
      %v4105 = vpop.f32.mrb[0].mxu0
      %v4106 = vadd.f32 0.0, %v4105
      %v4107 = vpop.f32.mrb[0].mxu0
      %4108 = vmatprep.mubr.f32.mxu0 0.0
      %4109 = vmatmul.mubr.f32.gmra.mrb[0].mxu0 %v3915
      %v4110 = vpop.f32.mrb[0].mxu0
      %v4111 = vadd.f32 0.0, %v4110
      %v4112 = vpop.f32.mrb[0].mxu0
      %4113 = vmatprep.mubr.f32.mxu0 0.0
      %4114 = vmatmul.mubr.f32.gmra.mrb[0].mxu0 %v3918
      %v4115 = vpop.f32.mrb[0].mxu0
      %v4116 = vadd.f32 0.0, %v4115
      %v4117 = vpop.f32.mrb[0].mxu0
      %4118 = vmatprep.mubr.f32.mxu0 0.0
      %4119 = vmatmul.mubr.f32.gmra.mrb[0].mxu0 %v3921
      %v4120 = vpop.f32.mrb[0].mxu0
      %v4121 = vadd.f32 0.0, %v4120
      %v4122 = vpop.f32.mrb[0].mxu0
      %4123 = vmatprep.mubr.f32.mxu0 0.0
      %4124 = vmatmul.mubr.f32.gmra.mrb[0].mxu0 %v3924
      %v4125 = vpop.f32.mrb[0].mxu0
      %v4126 = vadd.f32 0.0, %v4125
      %v4127 = vpop.f32.mrb[0].mxu0
      %4128 = vmatprep.mubr.f32.mxu0 0.0
      %4129 = vmatmul.mubr.f32.gmra.mrb[0].mxu0 %v3927
      %v4130 = vpop.f32.mrb[0].mxu0
      %v4131 = vadd.f32 0.0, %v4130
      %v4132 = vpop.f32.mrb[0].mxu0
      %4133 = vmatprep.mubr.f32.mxu0 0.0
      %4134 = vmatmul.mubr.f32.gmra.mrb[0].mxu0 %v3930
      %v4135 = vpop.f32.mrb[0].mxu0
      %v4136 = vadd.f32 0.0, %v4135
      %v4137 = vpop.f32.mrb[0].mxu0
      %4138 = vmatprep.mubr.f32.mxu0 0.0
      %4139 = vmatmul.mubr.f32.gmra.mrb[0].mxu0 %v3933
      %v4140 = vpop.f32.mrb[0].mxu0
      %v4141 = vadd.f32 0.0, %v4140
      %v4142 = vpop.f32.mrb[0].mxu0
      %4143 = vmatprep.mubr.f32.mxu0 0.0
      %4144 = vmatmul.mubr.f32.gmra.mrb[0].mxu0 %v3936
      %v4145 = vpop.f32.mrb[0].mxu0
      %v4146 = vadd.f32 0.0, %v4145
      %v4147 = vpop.f32.mrb[0].mxu0
      %4148 = vmatprep.mubr.f32.mxu0 0.0
      %4149 = vmatmul.mubr.f32.gmra.mrb[0].mxu0 %v3939
      %v4150 = vpop.f32.mrb[0].mxu0
      %v4151 = vadd.f32 0.0, %v4150
      %v4152 = vpop.f32.mrb[0].mxu0
      %4153 = vmatprep.mubr.f32.mxu0 0.0
      %4154 = vmatmul.mubr.f32.gmra.mrb[0].mxu0 %v3942
      %v4155 = vpop.f32.mrb[0].mxu0
      %v4156 = vadd.f32 0.0, %v4155
      %v4157 = vpop.f32.mrb[0].mxu0
      %4158 = vmatprep.mubr.f32.mxu0 0.0
      %4159 = vmatmul.mubr.f32.gmra.mrb[0].mxu0 %v3945
      %v4160 = vpop.f32.mrb[0].mxu0
      %v4161 = vadd.f32 0.0, %v4160
      %v4162 = vpop.f32.mrb[0].mxu0
      %4163 = vmatprep.mubr.f32.mxu0 0.0
      %4164 = vmatmul.mubr.f32.gmra.mrb[0].mxu0 %v3948
      %v4165 = vpop.f32.mrb[0].mxu0
      %v4166 = vadd.f32 0.0, %v4165
      %v4167 = vpop.f32.mrb[0].mxu0
      %4168 = vmatprep.mubr.f32.mxu0 0.0
      %4169 = vmatmul.mubr.f32.gmra.mrb[0].mxu0 %v3951
      %v4170 = vpop.f32.mrb[0].mxu0
      %v4171 = vadd.f32 0.0, %v4170
      %v4172 = vpop.f32.mrb[0].mxu0
      %4173 = vmatprep.mubr.f32.mxu0 0.0
      %4174 = vmatmul.mubr.f32.gmra.mrb[0].mxu0 %v3954
      %v4175 = vpop.f32.mrb[0].mxu0
      %v4176 = vadd.f32 0.0, %v4175
      %v4177 = vpop.f32.mrb[0].mxu0
      %4178 = vmatprep.mubr.f32.mxu0 0.0
      %4179 = vmatmul.mubr.f32.gmra.mrb[0].mxu0 %v3957
      %v4180 = vpop.f32.mrb[0].mxu0
      %v4181 = vadd.f32 0.0, %v4180
      %v4182 = vpop.f32.mrb[0].mxu0
      %4183 = vdwg.mxu0
      %v4184 = vadd.f32 %v3797, %v4026
      %v4185 = vadd.f32 %v3798, %v4031
      %v4186 = vadd.f32 %v3799, %v4036
      %v4187 = vadd.f32 %v3800, %v4041
      %v4188 = vadd.f32 %v3801, %v4046
      %v4189 = vadd.f32 %v3802, %v4051
      %v4190 = vadd.f32 %v3803, %v4056
      %v4191 = vadd.f32 %v3804, %v4061
      %v4192 = vadd.f32 %v3805, %v4066
      %v4193 = vadd.f32 %v3806, %v4071
      %v4194 = vadd.f32 %v3807, %v4076
      %v4195 = vadd.f32 %v3808, %v4081
      %v4196 = vadd.f32 %v3809, %v4086
      %v4197 = vadd.f32 %v3810, %v4091
      %v4198 = vadd.f32 %v3811, %v4096
      %v4199 = vadd.f32 %v3812, %v4101
      %v4200 = vadd.f32 %v3813, %v4106
      %v4201 = vadd.f32 %v3814, %v4111
      %v4202 = vadd.f32 %v3815, %v4116
      %v4203 = vadd.f32 %v3816, %v4121
      %v4204 = vadd.f32 %v3817, %v4126
      %v4205 = vadd.f32 %v3818, %v4131
      %v4206 = vadd.f32 %v3819, %v4136
      %v4207 = vadd.f32 %v3820, %v4141
      %v4208 = vadd.f32 %v3821, %v4146
      %v4209 = vadd.f32 %v3822, %v4151
      %v4210 = vadd.f32 %v3823, %v4156
      %v4211 = vadd.f32 %v3824, %v4161
      %v4212 = vadd.f32 %v3825, %v4166
      %v4213 = vadd.f32 %v3826, %v4171
      %v4214 = vadd.f32 %v3827, %v4176
      %v4215 = vadd.f32 %v3828, %v4181
      %v4216 = vld [vmem:[%s3441 + $0x2] sm:$0xff]
      %v4217 = vld [vmem:[%s3441 + $0xa] sm:$0xff]
      %v4218 = vld [vmem:[%s3441 + $0x1a] sm:$0xff]
      %v4219 = vld [vmem:[%s3441 + $0x22] sm:$0xff]
      %v4220 = vld [vmem:[%s3441 + $0x32] sm:$0xff]
      %v4221 = vld [vmem:[%s3441 + $0x3a] sm:$0xff]
      %v4222 = vld [vmem:[%s3441 + $0x4a] sm:$0xff]
      %v4223 = vld [vmem:[%s3441 + $0x52] sm:$0xff]
      %v4224 = vld [vmem:[%s3441 + $0x62] sm:$0xff]
      %v4225 = vld [vmem:[%s3441 + $0x6a] sm:$0xff]
      %v4226 = vld [vmem:[%s3441 + $0x7a] sm:$0xff]
      %v4227 = vld [vmem:[%s3441 + $0x82] sm:$0xff]
      %v4228 = vld [vmem:[%s3441 + $0x92] sm:$0xff]
      %v4229 = vld [vmem:[%s3441 + $0x9a] sm:$0xff]
      %v4230 = vld [vmem:[%s3441 + $0xaa] sm:$0xff]
      %v4231 = vld [vmem:[%s3441 + $0xb2] sm:$0xff]
      %v4232 = vld [vmem:[%s3441 + $0xc2] sm:$0xff]
      %v4233 = vld [vmem:[%s3441 + $0xca] sm:$0xff]
      %v4234 = vld [vmem:[%s3441 + $0xda] sm:$0xff]
      %v4235 = vld [vmem:[%s3441 + $0xe2] sm:$0xff]
      %v4236 = vld [vmem:[%s3441 + $0xf2] sm:$0xff]
      %v4237 = vld [vmem:[%s3441 + $0xfa] sm:$0xff]
      %v4238 = vld [vmem:[%s3441 + $0x10a] sm:$0xff]
      %v4239 = vld [vmem:[%s3441 + $0x112] sm:$0xff]
      %v4240 = vld [vmem:[%s3441 + $0x122] sm:$0xff]
      %v4241 = vld [vmem:[%s3441 + $0x12a] sm:$0xff]
      %v4242 = vld [vmem:[%s3441 + $0x13a] sm:$0xff]
      %v4243 = vld [vmem:[%s3441 + $0x142] sm:$0xff]
      %v4244 = vld [vmem:[%s3441 + $0x152] sm:$0xff]
      %v4245 = vld [vmem:[%s3441 + $0x15a] sm:$0xff]
      %v4246 = vld [vmem:[%s3441 + $0x16a] sm:$0xff]
      %v4247 = vld [vmem:[%s3441 + $0x172] sm:$0xff]
      %s4248 = scalar_lea.vmem %s5, 64
      %v4249 = vld [vmem:[%s4248] sm:$0xff]
      %v4251 = vsel %vm907, %v4216, 0
      %v4254 = vsel %vm907, %v4217, 0
      %v4257 = vsel %vm907, %v4218, 0
      %v4260 = vsel %vm907, %v4219, 0
      %v4263 = vsel %vm907, %v4220, 0
      %v4266 = vsel %vm907, %v4221, 0
      %v4269 = vsel %vm907, %v4222, 0
      %v4272 = vsel %vm907, %v4223, 0
      %v4275 = vsel %vm907, %v4224, 0
      %v4278 = vsel %vm907, %v4225, 0
      %v4281 = vsel %vm907, %v4226, 0
      %v4284 = vsel %vm907, %v4227, 0
      %v4287 = vsel %vm907, %v4228, 0
      %v4290 = vsel %vm907, %v4229, 0
      %v4293 = vsel %vm907, %v4230, 0
      %v4296 = vsel %vm907, %v4231, 0
      %v4299 = vsel %vm907, %v4232, 0
      %v4302 = vsel %vm907, %v4233, 0
      %v4305 = vsel %vm907, %v4234, 0
      %v4308 = vsel %vm907, %v4235, 0
      %v4311 = vsel %vm907, %v4236, 0
      %v4314 = vsel %vm907, %v4237, 0
      %v4317 = vsel %vm907, %v4238, 0
      %v4320 = vsel %vm907, %v4239, 0
      %v4323 = vsel %vm907, %v4240, 0
      %v4326 = vsel %vm907, %v4241, 0
      %v4329 = vsel %vm907, %v4242, 0
      %v4332 = vsel %vm907, %v4243, 0
      %v4335 = vsel %vm907, %v4244, 0
      %v4338 = vsel %vm907, %v4245, 0
      %v4341 = vsel %vm907, %v4246, 0
      %v4344 = vsel %vm907, %v4247, 0
      %4346 = vmatprep.subr.mxu0 0.0
      %4347 = vmatpush1.msra.mxu0 %v4249
      %4348 = vmatprep.subr.mxu0 0.0
      %4349 = vmatpush1.msra.mxu0 0.0
      %4350 = vmatprep.subr.mxu0 0.0
      %4351 = vmatpush1.msra.mxu0 0.0
      %4352 = vmatprep.subr.mxu0 0.0
      %4353 = vmatpush1.msra.mxu0 0.0
      %4354 = vmatprep.subr.mxu0 0.0
      %4355 = vmatpush1.msra.mxu0 0.0
      %4356 = vmatprep.subr.mxu0 0.0
      %4357 = vmatpush1.msra.mxu0 0.0
      %4358 = vmatprep.subr.mxu0 0.0
      %4359 = vmatpush1.msra.mxu0 0.0
      %4360 = vmatprep.subr.mxu0 0.0
      %4361 = vmatpush1.msra.mxu0 0.0
      %4362 = vmatprep.subr.mxu0 0.0
      %4363 = vmatpush1.msra.mxu0 0.0
      %4364 = vmatprep.subr.mxu0 0.0
      %4365 = vmatpush1.msra.mxu0 0.0
      %4366 = vmatprep.subr.mxu0 0.0
      %4367 = vmatpush1.msra.mxu0 0.0
      %4368 = vmatprep.subr.mxu0 0.0
      %4369 = vmatpush1.msra.mxu0 0.0
      %4370 = vmatprep.subr.mxu0 0.0
      %4371 = vmatpush1.msra.mxu0 0.0
      %4372 = vmatprep.subr.mxu0 0.0
      %4373 = vmatpush1.msra.mxu0 0.0
      %4374 = vmatprep.subr.mxu0 0.0
      %4375 = vmatpush1.msra.mxu0 0.0
      %4376 = vmatprep.subr.mxu0 0.0
      %4377 = vmatpush1.msra.mxu0 0.0
      %4378 = vmatprep.subr.mxu0 0.0
      %4379 = vmatpush1.msra.mxu0 0.0
      %4380 = vmatprep.subr.mxu0 0.0
      %4381 = vmatpush1.msra.mxu0 0.0
      %4382 = vmatprep.subr.mxu0 0.0
      %4383 = vmatpush1.msra.mxu0 0.0
      %4384 = vmatprep.subr.mxu0 0.0
      %4385 = vmatpush1.msra.mxu0 0.0
      %4386 = vmatprep.subr.mxu0 0.0
      %4387 = vmatpush1.msra.mxu0 0.0
      %4388 = vmatprep.subr.mxu0 0.0
      %4389 = vmatpush1.msra.mxu0 0.0
      %4390 = vmatprep.subr.mxu0 0.0
      %4391 = vmatpush1.msra.mxu0 0.0
      %4392 = vmatprep.subr.mxu0 0.0
      %4393 = vmatpush1.msra.mxu0 0.0
      %4394 = vmatprep.subr.mxu0 0.0
      %4395 = vmatpush1.msra.mxu0 0.0
      %4396 = vmatprep.subr.mxu0 0.0
      %4397 = vmatpush1.msra.mxu0 0.0
      %4398 = vmatprep.subr.mxu0 0.0
      %4399 = vmatpush1.msra.mxu0 0.0
      %4400 = vmatprep.subr.mxu0 0.0
      %4401 = vmatpush1.msra.mxu0 0.0
      %4402 = vmatprep.subr.mxu0 0.0
      %4403 = vmatpush1.msra.mxu0 0.0
      %4404 = vmatprep.subr.mxu0 0.0
      %4405 = vmatpush1.msra.mxu0 0.0
      %4406 = vmatprep.subr.mxu0 0.0
      %4407 = vmatpush1.msra.mxu0 0.0
      %4408 = vmatprep.subr.mxu0 0.0
      %4409 = vmatpush1.msra.mxu0 0.0
      %4410 = vmatprep.mubr.f32.mxu0 0.0
      %4411 = vmatmul.mubr.f32.gmra.mrb[0].mxu0 %v4251
      %v4412 = vpop.f32.mrb[0].mxu0
      %v4413 = vadd.f32 0.0, %v4412
      %v4414 = vpop.f32.mrb[0].mxu0
      %4415 = vmatprep.mubr.f32.mxu0 0.0
      %4416 = vmatmul.mubr.f32.gmra.mrb[0].mxu0 %v4254
      %v4417 = vpop.f32.mrb[0].mxu0
      %v4418 = vadd.f32 0.0, %v4417
      %v4419 = vpop.f32.mrb[0].mxu0
      %4420 = vmatprep.mubr.f32.mxu0 0.0
      %4421 = vmatmul.mubr.f32.gmra.mrb[0].mxu0 %v4257
      %v4422 = vpop.f32.mrb[0].mxu0
      %v4423 = vadd.f32 0.0, %v4422
      %v4424 = vpop.f32.mrb[0].mxu0
      %4425 = vmatprep.mubr.f32.mxu0 0.0
      %4426 = vmatmul.mubr.f32.gmra.mrb[0].mxu0 %v4260
      %v4427 = vpop.f32.mrb[0].mxu0
      %v4428 = vadd.f32 0.0, %v4427
      %v4429 = vpop.f32.mrb[0].mxu0
      %4430 = vmatprep.mubr.f32.mxu0 0.0
      %4431 = vmatmul.mubr.f32.gmra.mrb[0].mxu0 %v4263
      %v4432 = vpop.f32.mrb[0].mxu0
      %v4433 = vadd.f32 0.0, %v4432
      %v4434 = vpop.f32.mrb[0].mxu0
      %4435 = vmatprep.mubr.f32.mxu0 0.0
      %4436 = vmatmul.mubr.f32.gmra.mrb[0].mxu0 %v4266
      %v4437 = vpop.f32.mrb[0].mxu0
      %v4438 = vadd.f32 0.0, %v4437
      %v4439 = vpop.f32.mrb[0].mxu0
      %4440 = vmatprep.mubr.f32.mxu0 0.0
      %4441 = vmatmul.mubr.f32.gmra.mrb[0].mxu0 %v4269
      %v4442 = vpop.f32.mrb[0].mxu0
      %v4443 = vadd.f32 0.0, %v4442
      %v4444 = vpop.f32.mrb[0].mxu0
      %4445 = vmatprep.mubr.f32.mxu0 0.0
      %4446 = vmatmul.mubr.f32.gmra.mrb[0].mxu0 %v4272
      %v4447 = vpop.f32.mrb[0].mxu0
      %v4448 = vadd.f32 0.0, %v4447
      %v4449 = vpop.f32.mrb[0].mxu0
      %4450 = vmatprep.mubr.f32.mxu0 0.0
      %4451 = vmatmul.mubr.f32.gmra.mrb[0].mxu0 %v4275
      %v4452 = vpop.f32.mrb[0].mxu0
      %v4453 = vadd.f32 0.0, %v4452
      %v4454 = vpop.f32.mrb[0].mxu0
      %4455 = vmatprep.mubr.f32.mxu0 0.0
      %4456 = vmatmul.mubr.f32.gmra.mrb[0].mxu0 %v4278
      %v4457 = vpop.f32.mrb[0].mxu0
      %v4458 = vadd.f32 0.0, %v4457
      %v4459 = vpop.f32.mrb[0].mxu0
      %4460 = vmatprep.mubr.f32.mxu0 0.0
      %4461 = vmatmul.mubr.f32.gmra.mrb[0].mxu0 %v4281
      %v4462 = vpop.f32.mrb[0].mxu0
      %v4463 = vadd.f32 0.0, %v4462
      %v4464 = vpop.f32.mrb[0].mxu0
      %4465 = vmatprep.mubr.f32.mxu0 0.0
      %4466 = vmatmul.mubr.f32.gmra.mrb[0].mxu0 %v4284
      %v4467 = vpop.f32.mrb[0].mxu0
      %v4468 = vadd.f32 0.0, %v4467
      %v4469 = vpop.f32.mrb[0].mxu0
      %4470 = vmatprep.mubr.f32.mxu0 0.0
      %4471 = vmatmul.mubr.f32.gmra.mrb[0].mxu0 %v4287
      %v4472 = vpop.f32.mrb[0].mxu0
      %v4473 = vadd.f32 0.0, %v4472
      %v4474 = vpop.f32.mrb[0].mxu0
      %4475 = vmatprep.mubr.f32.mxu0 0.0
      %4476 = vmatmul.mubr.f32.gmra.mrb[0].mxu0 %v4290
      %v4477 = vpop.f32.mrb[0].mxu0
      %v4478 = vadd.f32 0.0, %v4477
      %v4479 = vpop.f32.mrb[0].mxu0
      %4480 = vmatprep.mubr.f32.mxu0 0.0
      %4481 = vmatmul.mubr.f32.gmra.mrb[0].mxu0 %v4293
      %v4482 = vpop.f32.mrb[0].mxu0
      %v4483 = vadd.f32 0.0, %v4482
      %v4484 = vpop.f32.mrb[0].mxu0
      %4485 = vmatprep.mubr.f32.mxu0 0.0
      %4486 = vmatmul.mubr.f32.gmra.mrb[0].mxu0 %v4296
      %v4487 = vpop.f32.mrb[0].mxu0
      %v4488 = vadd.f32 0.0, %v4487
      %v4489 = vpop.f32.mrb[0].mxu0
      %4490 = vmatprep.mubr.f32.mxu0 0.0
      %4491 = vmatmul.mubr.f32.gmra.mrb[0].mxu0 %v4299
      %v4492 = vpop.f32.mrb[0].mxu0
      %v4493 = vadd.f32 0.0, %v4492
      %v4494 = vpop.f32.mrb[0].mxu0
      %4495 = vmatprep.mubr.f32.mxu0 0.0
      %4496 = vmatmul.mubr.f32.gmra.mrb[0].mxu0 %v4302
      %v4497 = vpop.f32.mrb[0].mxu0
      %v4498 = vadd.f32 0.0, %v4497
      %v4499 = vpop.f32.mrb[0].mxu0
      %4500 = vmatprep.mubr.f32.mxu0 0.0
      %4501 = vmatmul.mubr.f32.gmra.mrb[0].mxu0 %v4305
      %v4502 = vpop.f32.mrb[0].mxu0
      %v4503 = vadd.f32 0.0, %v4502
      %v4504 = vpop.f32.mrb[0].mxu0
      %4505 = vmatprep.mubr.f32.mxu0 0.0
      %4506 = vmatmul.mubr.f32.gmra.mrb[0].mxu0 %v4308
      %v4507 = vpop.f32.mrb[0].mxu0
      %v4508 = vadd.f32 0.0, %v4507
      %v4509 = vpop.f32.mrb[0].mxu0
      %4510 = vmatprep.mubr.f32.mxu0 0.0
      %4511 = vmatmul.mubr.f32.gmra.mrb[0].mxu0 %v4311
      %v4512 = vpop.f32.mrb[0].mxu0
      %v4513 = vadd.f32 0.0, %v4512
      %v4514 = vpop.f32.mrb[0].mxu0
      %4515 = vmatprep.mubr.f32.mxu0 0.0
      %4516 = vmatmul.mubr.f32.gmra.mrb[0].mxu0 %v4314
      %v4517 = vpop.f32.mrb[0].mxu0
      %v4518 = vadd.f32 0.0, %v4517
      %v4519 = vpop.f32.mrb[0].mxu0
      %4520 = vmatprep.mubr.f32.mxu0 0.0
      %4521 = vmatmul.mubr.f32.gmra.mrb[0].mxu0 %v4317
      %v4522 = vpop.f32.mrb[0].mxu0
      %v4523 = vadd.f32 0.0, %v4522
      %v4524 = vpop.f32.mrb[0].mxu0
      %4525 = vmatprep.mubr.f32.mxu0 0.0
      %4526 = vmatmul.mubr.f32.gmra.mrb[0].mxu0 %v4320
      %v4527 = vpop.f32.mrb[0].mxu0
      %v4528 = vadd.f32 0.0, %v4527
      %v4529 = vpop.f32.mrb[0].mxu0
      %4530 = vmatprep.mubr.f32.mxu0 0.0
      %4531 = vmatmul.mubr.f32.gmra.mrb[0].mxu0 %v4323
      %v4532 = vpop.f32.mrb[0].mxu0
      %v4533 = vadd.f32 0.0, %v4532
      %v4534 = vpop.f32.mrb[0].mxu0
      %4535 = vmatprep.mubr.f32.mxu0 0.0
      %4536 = vmatmul.mubr.f32.gmra.mrb[0].mxu0 %v4326
      %v4537 = vpop.f32.mrb[0].mxu0
      %v4538 = vadd.f32 0.0, %v4537
      %v4539 = vpop.f32.mrb[0].mxu0
      %4540 = vmatprep.mubr.f32.mxu0 0.0
      %4541 = vmatmul.mubr.f32.gmra.mrb[0].mxu0 %v4329
      %v4542 = vpop.f32.mrb[0].mxu0
      %v4543 = vadd.f32 0.0, %v4542
      %v4544 = vpop.f32.mrb[0].mxu0
      %4545 = vmatprep.mubr.f32.mxu0 0.0
      %4546 = vmatmul.mubr.f32.gmra.mrb[0].mxu0 %v4332
      %v4547 = vpop.f32.mrb[0].mxu0
      %v4548 = vadd.f32 0.0, %v4547
      %v4549 = vpop.f32.mrb[0].mxu0
      %4550 = vmatprep.mubr.f32.mxu0 0.0
      %4551 = vmatmul.mubr.f32.gmra.mrb[0].mxu0 %v4335
      %v4552 = vpop.f32.mrb[0].mxu0
      %v4553 = vadd.f32 0.0, %v4552
      %v4554 = vpop.f32.mrb[0].mxu0
      %4555 = vmatprep.mubr.f32.mxu0 0.0
      %4556 = vmatmul.mubr.f32.gmra.mrb[0].mxu0 %v4338
      %v4557 = vpop.f32.mrb[0].mxu0
      %v4558 = vadd.f32 0.0, %v4557
      %v4559 = vpop.f32.mrb[0].mxu0
      %4560 = vmatprep.mubr.f32.mxu0 0.0
      %4561 = vmatmul.mubr.f32.gmra.mrb[0].mxu0 %v4341
      %v4562 = vpop.f32.mrb[0].mxu0
      %v4563 = vadd.f32 0.0, %v4562
      %v4564 = vpop.f32.mrb[0].mxu0
      %4565 = vmatprep.mubr.f32.mxu0 0.0
      %4566 = vmatmul.mubr.f32.gmra.mrb[0].mxu0 %v4344
      %v4567 = vpop.f32.mrb[0].mxu0
      %v4568 = vadd.f32 0.0, %v4567
      %v4569 = vpop.f32.mrb[0].mxu0
      %4570 = vdwg.mxu0
      %v4571 = vadd.f32 %v4184, %v4413
      %v4572 = vadd.f32 %v4185, %v4418
      %v4573 = vadd.f32 %v4186, %v4423
      %v4574 = vadd.f32 %v4187, %v4428
      %v4575 = vadd.f32 %v4188, %v4433
      %v4576 = vadd.f32 %v4189, %v4438
      %v4577 = vadd.f32 %v4190, %v4443
      %v4578 = vadd.f32 %v4191, %v4448
      %v4579 = vadd.f32 %v4192, %v4453
      %v4580 = vadd.f32 %v4193, %v4458
      %v4581 = vadd.f32 %v4194, %v4463
      %v4582 = vadd.f32 %v4195, %v4468
      %v4583 = vadd.f32 %v4196, %v4473
      %v4584 = vadd.f32 %v4197, %v4478
      %v4585 = vadd.f32 %v4198, %v4483
      %v4586 = vadd.f32 %v4199, %v4488
      %v4587 = vadd.f32 %v4200, %v4493
      %v4588 = vadd.f32 %v4201, %v4498
      %v4589 = vadd.f32 %v4202, %v4503
      %v4590 = vadd.f32 %v4203, %v4508
      %v4591 = vadd.f32 %v4204, %v4513
      %v4592 = vadd.f32 %v4205, %v4518
      %v4593 = vadd.f32 %v4206, %v4523
      %v4594 = vadd.f32 %v4207, %v4528
      %v4595 = vadd.f32 %v4208, %v4533
      %v4596 = vadd.f32 %v4209, %v4538
      %v4597 = vadd.f32 %v4210, %v4543
      %v4598 = vadd.f32 %v4211, %v4548
      %v4599 = vadd.f32 %v4212, %v4553
      %v4600 = vadd.f32 %v4213, %v4558
      %v4601 = vadd.f32 %v4214, %v4563
      %v4602 = vadd.f32 %v4215, %v4568
      %v4603 = vld [vmem:[%s6] sm:$0x1]
      %v4605 = vlaneseq
      %v4606 = vshrl.u32 %v4605, 7
      %v4607 = vsub.s32 0, %v4606
      %v4608 = vrot.slane %v4603, %v4607
      %v4610 = vadd.f32 %v4571, %v4608
      %v4611 = vadd.f32 %v4572, %v4608
      %v4612 = vadd.f32 %v4573, %v4608
      %v4613 = vadd.f32 %v4574, %v4608
      %v4614 = vadd.f32 %v4575, %v4608
      %v4615 = vadd.f32 %v4576, %v4608
      %v4616 = vadd.f32 %v4577, %v4608
      %v4617 = vadd.f32 %v4578, %v4608
      %v4618 = vadd.f32 %v4579, %v4608
      %v4619 = vadd.f32 %v4580, %v4608
      %v4620 = vadd.f32 %v4581, %v4608
      %v4621 = vadd.f32 %v4582, %v4608
      %v4622 = vadd.f32 %v4583, %v4608
      %v4623 = vadd.f32 %v4584, %v4608
      %v4624 = vadd.f32 %v4585, %v4608
      %v4625 = vadd.f32 %v4586, %v4608
      %v4626 = vadd.f32 %v4587, %v4608
      %v4627 = vadd.f32 %v4588, %v4608
      %v4628 = vadd.f32 %v4589, %v4608
      %v4629 = vadd.f32 %v4590, %v4608
      %v4630 = vadd.f32 %v4591, %v4608
      %v4631 = vadd.f32 %v4592, %v4608
      %v4632 = vadd.f32 %v4593, %v4608
      %v4633 = vadd.f32 %v4594, %v4608
      %v4634 = vadd.f32 %v4595, %v4608
      %v4635 = vadd.f32 %v4596, %v4608
      %v4636 = vadd.f32 %v4597, %v4608
      %v4637 = vadd.f32 %v4598, %v4608
      %v4638 = vadd.f32 %v4599, %v4608
      %v4639 = vadd.f32 %v4600, %v4608
      %v4640 = vadd.f32 %v4601, %v4608
      %v4641 = vadd.f32 %v4602, %v4608
      %vm4642 = vcmp.gt.f32.partialorder %v4610, 0.0
      %vm4643 = vcmp.gt.f32.partialorder %v4611, 0.0
      %vm4644 = vcmp.gt.f32.partialorder %v4612, 0.0
      %vm4645 = vcmp.gt.f32.partialorder %v4613, 0.0
      %vm4646 = vcmp.gt.f32.partialorder %v4614, 0.0
      %vm4647 = vcmp.gt.f32.partialorder %v4615, 0.0
      %vm4648 = vcmp.gt.f32.partialorder %v4616, 0.0
      %vm4649 = vcmp.gt.f32.partialorder %v4617, 0.0
      %vm4650 = vcmp.gt.f32.partialorder %v4618, 0.0
      %vm4651 = vcmp.gt.f32.partialorder %v4619, 0.0
      %vm4652 = vcmp.gt.f32.partialorder %v4620, 0.0
      %vm4653 = vcmp.gt.f32.partialorder %v4621, 0.0
      %vm4654 = vcmp.gt.f32.partialorder %v4622, 0.0
      %vm4655 = vcmp.gt.f32.partialorder %v4623, 0.0
      %vm4656 = vcmp.gt.f32.partialorder %v4624, 0.0
      %vm4657 = vcmp.gt.f32.partialorder %v4625, 0.0
      %vm4658 = vcmp.gt.f32.partialorder %v4626, 0.0
      %vm4659 = vcmp.gt.f32.partialorder %v4627, 0.0
      %vm4660 = vcmp.gt.f32.partialorder %v4628, 0.0
      %vm4661 = vcmp.gt.f32.partialorder %v4629, 0.0
      %vm4662 = vcmp.gt.f32.partialorder %v4630, 0.0
      %vm4663 = vcmp.gt.f32.partialorder %v4631, 0.0
      %vm4664 = vcmp.gt.f32.partialorder %v4632, 0.0
      %vm4665 = vcmp.gt.f32.partialorder %v4633, 0.0
      %vm4666 = vcmp.gt.f32.partialorder %v4634, 0.0
      %vm4667 = vcmp.gt.f32.partialorder %v4635, 0.0
      %vm4668 = vcmp.gt.f32.partialorder %v4636, 0.0
      %vm4669 = vcmp.gt.f32.partialorder %v4637, 0.0
      %vm4670 = vcmp.gt.f32.partialorder %v4638, 0.0
      %vm4671 = vcmp.gt.f32.partialorder %v4639, 0.0
      %vm4672 = vcmp.gt.f32.partialorder %v4640, 0.0
      %vm4673 = vcmp.gt.f32.partialorder %v4641, 0.0
      %v4674 = vmul.f32 %v4610, 0.1
      %v4675 = vmul.f32 %v4611, 0.1
      %v4676 = vmul.f32 %v4612, 0.1
      %v4677 = vmul.f32 %v4613, 0.1
      %v4678 = vmul.f32 %v4614, 0.1
      %v4679 = vmul.f32 %v4615, 0.1
      %v4680 = vmul.f32 %v4616, 0.1
      %v4681 = vmul.f32 %v4617, 0.1
      %v4682 = vmul.f32 %v4618, 0.1
      %v4683 = vmul.f32 %v4619, 0.1
      %v4684 = vmul.f32 %v4620, 0.1
      %v4685 = vmul.f32 %v4621, 0.1
      %v4686 = vmul.f32 %v4622, 0.1
      %v4687 = vmul.f32 %v4623, 0.1
      %v4688 = vmul.f32 %v4624, 0.1
      %v4689 = vmul.f32 %v4625, 0.1
      %v4690 = vmul.f32 %v4626, 0.1
      %v4691 = vmul.f32 %v4627, 0.1
      %v4692 = vmul.f32 %v4628, 0.1
      %v4693 = vmul.f32 %v4629, 0.1
      %v4694 = vmul.f32 %v4630, 0.1
      %v4695 = vmul.f32 %v4631, 0.1
      %v4696 = vmul.f32 %v4632, 0.1
      %v4697 = vmul.f32 %v4633, 0.1
      %v4698 = vmul.f32 %v4634, 0.1
      %v4699 = vmul.f32 %v4635, 0.1
      %v4700 = vmul.f32 %v4636, 0.1
      %v4701 = vmul.f32 %v4637, 0.1
      %v4702 = vmul.f32 %v4638, 0.1
      %v4703 = vmul.f32 %v4639, 0.1
      %v4704 = vmul.f32 %v4640, 0.1
      %v4705 = vmul.f32 %v4641, 0.1
      %v4706 = vsel %vm4642, %v4610, %v4674
      %v4707 = vsel %vm4643, %v4611, %v4675
      %v4708 = vsel %vm4644, %v4612, %v4676
      %v4709 = vsel %vm4645, %v4613, %v4677
      %v4710 = vsel %vm4646, %v4614, %v4678
      %v4711 = vsel %vm4647, %v4615, %v4679
      %v4712 = vsel %vm4648, %v4616, %v4680
      %v4713 = vsel %vm4649, %v4617, %v4681
      %v4714 = vsel %vm4650, %v4618, %v4682
      %v4715 = vsel %vm4651, %v4619, %v4683
      %v4716 = vsel %vm4652, %v4620, %v4684
      %v4717 = vsel %vm4653, %v4621, %v4685
      %v4718 = vsel %vm4654, %v4622, %v4686
      %v4719 = vsel %vm4655, %v4623, %v4687
      %v4720 = vsel %vm4656, %v4624, %v4688
      %v4721 = vsel %vm4657, %v4625, %v4689
      %v4722 = vsel %vm4658, %v4626, %v4690
      %v4723 = vsel %vm4659, %v4627, %v4691
      %v4724 = vsel %vm4660, %v4628, %v4692
      %v4725 = vsel %vm4661, %v4629, %v4693
      %v4726 = vsel %vm4662, %v4630, %v4694
      %v4727 = vsel %vm4663, %v4631, %v4695
      %v4728 = vsel %vm4664, %v4632, %v4696
      %v4729 = vsel %vm4665, %v4633, %v4697
      %v4730 = vsel %vm4666, %v4634, %v4698
      %v4731 = vsel %vm4667, %v4635, %v4699
      %v4732 = vsel %vm4668, %v4636, %v4700
      %v4733 = vsel %vm4669, %v4637, %v4701
      %v4734 = vsel %vm4670, %v4638, %v4702
      %v4735 = vsel %vm4671, %v4639, %v4703
      %v4736 = vsel %vm4672, %v4640, %v4704
      %v4737 = vsel %vm4673, %v4641, %v4705
      %v4738 = vadd.f32 %v4706, %v450
      %v4739 = vadd.f32 %v4707, %v451
      %v4740 = vadd.f32 %v4708, %v452
      %v4741 = vadd.f32 %v4709, %v453
      %v4742 = vadd.f32 %v4710, %v454
      %v4743 = vadd.f32 %v4711, %v455
      %v4744 = vadd.f32 %v4712, %v456
      %v4745 = vadd.f32 %v4713, %v457
      %v4746 = vadd.f32 %v4714, %v458
      %v4747 = vadd.f32 %v4715, %v459
      %v4748 = vadd.f32 %v4716, %v460
      %v4749 = vadd.f32 %v4717, %v461
      %v4750 = vadd.f32 %v4718, %v462
      %v4751 = vadd.f32 %v4719, %v463
      %v4752 = vadd.f32 %v4720, %v464
      %v4753 = vadd.f32 %v4721, %v465
      %v4754 = vadd.f32 %v4722, %v466
      %v4755 = vadd.f32 %v4723, %v467
      %v4756 = vadd.f32 %v4724, %v468
      %v4757 = vadd.f32 %v4725, %v469
      %v4758 = vadd.f32 %v4726, %v470
      %v4759 = vadd.f32 %v4727, %v471
      %v4760 = vadd.f32 %v4728, %v472
      %v4761 = vadd.f32 %v4729, %v473
      %v4762 = vadd.f32 %v4730, %v474
      %v4763 = vadd.f32 %v4731, %v475
      %v4764 = vadd.f32 %v4732, %v476
      %v4765 = vadd.f32 %v4733, %v477
      %v4766 = vadd.f32 %v4734, %v478
      %v4767 = vadd.f32 %v4735, %v479
      %v4768 = vadd.f32 %v4736, %v480
      %v4769 = vadd.f32 %v4737, %v481
      %4770 = vst.msk [vmem:[%s445] sm:$0xff] %vm488, %v4738
      %4771 = vst.msk [vmem:[%s445 + $0x8] sm:$0xff] %vm488, %v4739
      %4772 = vst.msk [vmem:[%s445 + $0x10] sm:$0xff] %vm488, %v4740
      %4773 = vst.msk [vmem:[%s445 + $0x18] sm:$0xff] %vm488, %v4741
      %4774 = vst.msk [vmem:[%s445 + $0x20] sm:$0xff] %vm488, %v4742
      %4775 = vst.msk [vmem:[%s445 + $0x28] sm:$0xff] %vm488, %v4743
      %4776 = vst.msk [vmem:[%s445 + $0x30] sm:$0xff] %vm488, %v4744
      %4777 = vst.msk [vmem:[%s445 + $0x38] sm:$0xff] %vm488, %v4745
      %4778 = vst.msk [vmem:[%s445 + $0x40] sm:$0xff] %vm488, %v4746
      %4779 = vst.msk [vmem:[%s445 + $0x48] sm:$0xff] %vm488, %v4747
      %4780 = vst.msk [vmem:[%s445 + $0x50] sm:$0xff] %vm488, %v4748
      %4781 = vst.msk [vmem:[%s445 + $0x58] sm:$0xff] %vm488, %v4749
      %4782 = vst.msk [vmem:[%s445 + $0x60] sm:$0xff] %vm488, %v4750
      %4783 = vst.msk [vmem:[%s445 + $0x68] sm:$0xff] %vm488, %v4751
      %4784 = vst.msk [vmem:[%s445 + $0x70] sm:$0xff] %vm488, %v4752
      %4785 = vst.msk [vmem:[%s445 + $0x78] sm:$0xff] %vm488, %v4753
      %4786 = vst.msk [vmem:[%s445 + $0x80] sm:$0xff] %vm488, %v4754
      %4787 = vst.msk [vmem:[%s445 + $0x88] sm:$0xff] %vm488, %v4755
      %4788 = vst.msk [vmem:[%s445 + $0x90] sm:$0xff] %vm488, %v4756
      %4789 = vst.msk [vmem:[%s445 + $0x98] sm:$0xff] %vm488, %v4757
      %4790 = vst.msk [vmem:[%s445 + $0xa0] sm:$0xff] %vm488, %v4758
      %4791 = vst.msk [vmem:[%s445 + $0xa8] sm:$0xff] %vm488, %v4759
      %4792 = vst.msk [vmem:[%s445 + $0xb0] sm:$0xff] %vm488, %v4760
      %4793 = vst.msk [vmem:[%s445 + $0xb8] sm:$0xff] %vm488, %v4761
      %4794 = vst.msk [vmem:[%s445 + $0xc0] sm:$0xff] %vm488, %v4762
      %4795 = vst.msk [vmem:[%s445 + $0xc8] sm:$0xff] %vm488, %v4763
      %4796 = vst.msk [vmem:[%s445 + $0xd0] sm:$0xff] %vm488, %v4764
      %4797 = vst.msk [vmem:[%s445 + $0xd8] sm:$0xff] %vm488, %v4765
      %4798 = vst.msk [vmem:[%s445 + $0xe0] sm:$0xff] %vm488, %v4766
      %4799 = vst.msk [vmem:[%s445 + $0xe8] sm:$0xff] %vm488, %v4767
      %4800 = vst.msk [vmem:[%s445 + $0xf0] sm:$0xff] %vm488, %v4768
      %4801 = vst.msk [vmem:[%s445 + $0xf8] sm:$0xff] %vm488, %v4769
      %s4802 = smul.u32 16, %s23
      %p4803 = scmp.lt.s32.totalorder %s22, 1
      %s4804 = scalar_select %p4803, %s22, 1
      %p4805 = scmp.lt.s32.totalorder %s4802, 15
      %s4806 = scalar_select %p4805, %s4802, 15
      %s4807 = smul.addr %s4806, 2
      %s4808 = smul.addr %s4804, 32
      %s4809 = sadd.s32 %s4807, %s4808
      %s4810 = smul.addr %s4809, 8
      %s4811 = scalar_lea.vmem %s7, %s4810
      // Predicated region
      $region65: #{res_block_forward.2} parent=47 // pred_check
        %p4812 = pneg %p234
      $region66: #{res_block_forward.2} parent=47 // pred_check_branch
        %4814 = sbr.rel (%p4812) target = $region68
      $region67: #{res_block_forward.2} parent=47 // pred_region
        %s4815 = smul.u32 16, %s23
      $region68: #{res_block_forward.2} parent=47 // pred_fallthru
        _
    $region48: #{res_block_forward.2} parent=5 // pred_fallthru
      _
    %p4816 = scmp.le.s32.totalorder 2, %s13
    // Predicated region
    $region69: #{res_block_forward.2} parent=5 // pred_check
      %p4817 = pneg %p4816
    $region70: #{res_block_forward.2} parent=5 // pred_check_branch
      %4819 = sbr.rel (%p4817) target = $region72
    $region71: #{res_block_forward.2} parent=5 // pred_region
      %s4820 = ssub.s32 %s13, 2
      // Predicated region
      $region73: #{res_block_forward.2} parent=71 // pred_check
        %p4821 = pneg %p240
      $region74: #{res_block_forward.2} parent=71 // pred_check_branch
        %4823 = sbr.rel (%p4821) target = $region76
      $region75: #{res_block_forward.2} parent=71 // pred_region
        %s4824 = smul.u32 16, %s25
        %p4825 = scmp.lt.s32.totalorder %s24, 1
        %s4826 = scalar_select %p4825, %s24, 1
        %p4827 = scmp.lt.s32.totalorder %s4824, 15
        %s4828 = scalar_select %p4827, %s4824, 15
        %s4829 = smul.addr %s4828, 2
        %s4830 = smul.addr %s4826, 32
        %s4831 = sadd.s32 %s4829, %s4830
        %s4832 = smul.addr %s4831, 8
        %s4833 = scalar_lea.vmem %s7, %s4832
      $region76: #{res_block_forward.2} parent=71 // pred_fallthru
        _
    $region72: #{res_block_forward.2} parent=5 // pred_fallthru
      _
  $region6: #{res_block_forward.2} parent=0 // loop_footer
    %s17 = sadd.s32 1, %s13
  $region7: #{res_block_forward.2} parent=0 // loop_footer_branch
    %12 = sbr.rel target = $region3
  $region8: #{res_block_forward.2} parent=0 // loop_exit
    _

</llo_original>
